<compile_context>
chip_gen: v6e
topology: v6e:2x2x1
jax: 0.10.0
libtpu: 0.0.40
codegen_flags: <defaults>
</compile_context>

<pallas_src>
import functools

import jax
import jax.numpy as jnp
from jax.experimental import pallas as pl
from jax.experimental.pallas import tpu as pltpu

EPS = 1e-5            # nn.BatchNorm2d default
NEG_SLOPE = 0.01      # nn.LeakyReLU default


def _round_up(v, m):
    return (v + m - 1) // m * m


def _vmem_capacity_bytes():
    """Generation-aware VMEM capacity (v5e/v6e: 128 MiB, v7x: 64 MiB per TC)."""
    try:
        return int(pltpu.get_tpu_info().vmem_capacity_bytes)
    except Exception:
        return 64 * 1024 * 1024   # conservative fallback (v7x per-TensorCore)


def _pick_batch_tile(N, per_img_bytes, vmem_budget):
    """Largest divisor of N whose per-step footprint fits `vmem_budget` while
    keeping >= 2 grid steps (>= 4 when N allows) for pipelining / megacore."""
    min_steps = 4 if N >= 4 else (2 if N >= 2 else 1)
    best = 1
    for cand in range(1, N + 1):
        if N % cand:
            continue
        if cand * per_img_bytes > vmem_budget:
            continue
        if N // cand < min_steps:
            continue
        best = cand
    return best


# ---------------------------------------------------------------------------
# Phase 1: per-channel partial sum / sum-of-squares.  Every grid step writes
# its own (1, C, 1) partials row ("parallel" grid, no cross-step accumulator),
# reading x lane-dense over H*W in its native NCHW-flattened layout.
# ---------------------------------------------------------------------------
def _stats_kernel(x_ref, sum_ref, sq_ref):
    xs = x_ref[...]                                                # (NB, C, HW) f32
    sum_ref[...] = jnp.sum(jnp.sum(xs, axis=2, keepdims=True),
                           axis=0, keepdims=True)                  # (1, C, 1)
    sq_ref[...] = jnp.sum(jnp.sum(xs * xs, axis=2, keepdims=True),
                          axis=0, keepdims=True)                   # (1, C, 1)


# ---------------------------------------------------------------------------
# Phase 2: BN (folded scale/shift) + LeakyReLU + Conv2d('same') + residual.
#
# Flat shifted-window conv trick: activations are staged per (n, c) into a
# flat scratch of length Lf = 2*halo + H*W with halo = KP*(W+1) zeros on each
# side (this is the row-major flattening of a height-only zero-padded image
# plus KP extra zeros front/back).  For output position p = h*W + w, the tap
# (kh, kw) reads scratch[p + kh*W + kw]; a per-kw lane mask zeroes the columns
# that would otherwise wrap across image rows (i.e. the width padding).
# ---------------------------------------------------------------------------
def _norm_conv_kernel(x_ref, mask_ref, scale_ref, shift_ref, w_ref, b_ref,
                      o_ref, apad_ref, *, NB, H, W, C, K, KP):
    HW = H * W
    halo = KP * (W + 1)

    # Zero only the halo; the interior is fully overwritten below.  Done every
    # step so it stays correct when the "parallel" grid is split across cores
    # (each core owns its own scratch instance).
    if halo > 0:
        apad_ref[:, :, :halo] = jnp.zeros((NB, C, halo), jnp.float32)
        apad_ref[:, :, halo + HW:] = jnp.zeros((NB, C, halo), jnp.float32)

    # BatchNorm (folded scale/shift SMEM scalars) + LeakyReLU, lane-dense over
    # HW, staged into the zero-padded flat scratch.
    for c in range(C):
        a = x_ref[:, c:c + 1, :] * scale_ref[c] + shift_ref[c]     # (NB, 1, HW)
        a = jnp.where(a > 0, a, NEG_SLOPE * a)
        apad_ref[:, c:c + 1, halo:halo + HW] = a

    # Conv as C*K*K shifted-window VPU multiply-adds (weight taps are SMEM
    # scalars).  Each window is masked once and reused for all C outputs.
    # TODO(synk): for large channel counts (C >= ~64) an im2col slab + a single
    # MXU matmul per step would be the better path; this VPU path targets small
    # C where the MXU would run nearly empty.
    accs = [jnp.zeros((NB, 1, HW), jnp.float32) for _ in range(C)]
    for ci in range(C):
        for kh in range(K):
            for kw in range(K):
                start = kh * W + kw
                win = (apad_ref[:, ci:ci + 1, start:start + HW]
                       * mask_ref[kw:kw + 1, :])                   # (NB, 1, HW)
                for co in range(C):
                    widx = ((co * C + ci) * K + kh) * K + kw
                    accs[co] = accs[co] + w_ref[widx] * win

    # Conv bias + residual skip; lane-dense (HW-wide) stores.
    for co in range(C):
        o_ref[:, co:co + 1, :] = (accs[co] + b_ref[co]
                                  + x_ref[:, co:co + 1, :]).astype(o_ref.dtype)


@functools.partial(jax.jit, static_argnames=("kernel_size",))
def residual_conv(x_nchw, weight_oikk, bias, gamma, beta, *, kernel_size):
    """Pallas implementation of ResidualConv.forward.  x_nchw: (N, C, H, W)."""
    N, C, H, W = x_nchw.shape
    K = kernel_size
    # TODO(synk): even kernel_size needs PyTorch's asymmetric 'same' padding.
    assert K % 2 == 1, "padding='same' with even kernel_size is not supported"
    KP = (K - 1) // 2
    HW = H * W
    halo = KP * (W + 1)
    Lf = 2 * halo + HW
    M = N * H * W

    vmem_cap = _vmem_capacity_bytes()
    vmem_limit = min(int(vmem_cap * 0.80), 100 * 1024 * 1024)
    step_budget = vmem_cap // 4

    # Padding-aware per-image VMEM footprints (f32, sublane->8 / lane->128).
    c_pad = _round_up(C, 8)
    hw_pad = _round_up(HW, 128)
    lf_pad = _round_up(Lf, 128)
    per_img_stats = 4 * c_pad * (2 * hw_pad)                  # dbl-buffered input
    per_img_conv = 4 * c_pad * (2 * 2 * hw_pad + lf_pad)      # in+out dbl-buf + scratch

    nb1 = _pick_batch_tile(N, per_img_stats, step_budget)
    nb2 = _pick_batch_tile(N, per_img_conv, step_budget)
    g1, g2 = N // nb1, N // nb2
    # TODO(synk): when N // nb2 < 4, additionally tile H (with a KP-row halo)
    # so each v7x TensorCore still gets >= 2 pipelined steps.

    # Free reshapes only (contiguous trailing-dim merges) -- no HBM layout pass.
    x = x_nchw.reshape(N, C, HW).astype(jnp.float32)
    wflat = weight_oikk.astype(jnp.float32).reshape(C * C * K * K)   # (O,I,Kh,Kw) row-major
    bvec = bias.astype(jnp.float32).reshape(C)
    gam = gamma.astype(jnp.float32).reshape(C)
    bet = beta.astype(jnp.float32).reshape(C)

    # Per-kw column-validity masks for the flat shifted-window conv.
    col = jnp.arange(HW, dtype=jnp.int32) % W
    masks = jnp.stack(
        [((col + (kw - KP) >= 0) & (col + (kw - KP) < W)).astype(jnp.float32)
         for kw in range(K)], axis=0)                                # (K, HW)

    smem_spec = pl.BlockSpec(memory_space=pltpu.MemorySpace.SMEM)

    # ---- Phase 1: per-channel partial sums (parallel over batch tiles) ----
    psum, psq = pl.pallas_call(
        _stats_kernel,
        out_shape=(jax.ShapeDtypeStruct((g1, C, 1), jnp.float32),
                   jax.ShapeDtypeStruct((g1, C, 1), jnp.float32)),
        grid=(g1,),
        in_specs=[pl.BlockSpec((nb1, C, HW), lambda i: (i, 0, 0))],
        out_specs=(pl.BlockSpec((1, C, 1), lambda i: (i, 0, 0)),
                   pl.BlockSpec((1, C, 1), lambda i: (i, 0, 0))),
        compiler_params=pltpu.CompilerParams(
            dimension_semantics=("parallel",),
            vmem_limit_bytes=vmem_limit),
    )(x)

    # ---- Finalize BN statistics (tiny (C,) math; biased variance) ----
    xsum = jnp.sum(psum[:, :, 0], axis=0)
    xsq = jnp.sum(psq[:, :, 0], axis=0)
    mean = xsum / M
    # TODO(synk): E[x^2]-mean^2 can cancel for |mean| >> std; a centered second
    # pass (Welford-style) would be more robust on non-normalized inputs.
    var = jnp.maximum(xsq / M - mean * mean, 0.0)
    inv_std = jax.lax.rsqrt(var + EPS)
    scale = gam * inv_std
    shift = bet - mean * scale

    # ---- Phase 2: BN + LeakyReLU + conv + residual (parallel over batch) ----
    conv_kernel = functools.partial(_norm_conv_kernel,
                                    NB=nb2, H=H, W=W, C=C, K=K, KP=KP)
    out = pl.pallas_call(
        conv_kernel,
        out_shape=jax.ShapeDtypeStruct((N, C, HW), jnp.float32),
        grid=(g2,),
        in_specs=[
            pl.BlockSpec((nb2, C, HW), lambda i: (i, 0, 0)),   # x (lane-dense)
            pl.BlockSpec((K, HW), lambda i: (0, 0)),           # kw masks
            smem_spec,                                         # scale  (C,)
            smem_spec,                                         # shift  (C,)
            smem_spec,                                         # conv w (C*C*K*K,)
            smem_spec,                                         # conv b (C,)
        ],
        out_specs=pl.BlockSpec((nb2, C, HW), lambda i: (i, 0, 0)),
        scratch_shapes=[pltpu.VMEM((nb2, C, Lf), jnp.float32)],
        compiler_params=pltpu.CompilerParams(
            dimension_semantics=("parallel",),
            vmem_limit_bytes=vmem_limit),
    )(x, masks, scale, shift, wflat, bvec)

    # Free reshape back to NCHW (no layout pass).
    return out.reshape(N, C, H, W).astype(x_nchw.dtype)


def residual_conv_ref(x, weight, bias, gamma, beta):
    """Pure-JAX reference mirroring the PyTorch forward (training-mode BN)."""
    mean = x.mean(axis=(0, 2, 3), keepdims=True)
    var = ((x - mean) ** 2).mean(axis=(0, 2, 3), keepdims=True)
    a = (x - mean) / jnp.sqrt(var + EPS)
    a = a * gamma.reshape(1, -1, 1, 1) + beta.reshape(1, -1, 1, 1)
    a = jnp.where(a > 0, a, NEG_SLOPE * a)
    y = jax.lax.conv_general_dilated(
        a, weight, window_strides=(1, 1), padding="SAME",
        dimension_numbers=("NCHW", "OIHW", "NCHW"))
    return y + bias.reshape(1, -1, 1, 1) + x


if __name__ == "__main__":
    N, C, H, W, K = 2, 4, 16, 16, 3

    key = jax.random.PRNGKey(0)
    k1, k2, k3, k4, k5 = jax.random.split(key, 5)
    x = jax.random.normal(k1, (N, C, H, W), dtype=jnp.float32)
    conv_w = 0.1 * jax.random.normal(k2, (C, C, K, K), dtype=jnp.float32)  # (O, I, Kh, Kw)
    conv_b = 0.1 * jax.random.normal(k3, (C,), dtype=jnp.float32)
    bn_gamma = 1.0 + 0.1 * jax.random.normal(k4, (C,), dtype=jnp.float32)
    bn_beta = 0.1 * jax.random.normal(k5, (C,), dtype=jnp.float32)

    out = residual_conv(x, conv_w, conv_b, bn_gamma, bn_beta, kernel_size=K)
    out = jax.block_until_ready(out)

    ref = residual_conv_ref(x, conv_w, conv_b, bn_gamma, bn_beta)
    assert out.shape == x.shape and out.dtype == x.dtype
    max_err = float(jnp.max(jnp.abs(out - ref)))
    if not bool(jnp.allclose(out, ref, atol=1e-4, rtol=1e-4)):
        raise AssertionError(f"Pallas kernel mismatch vs reference (max abs err = {max_err})")

    print("KERNEL_OK")
</pallas_src>

<mosaic_0001>
module attributes {stable_mosaic.version = 11 : i64} {
  func.func @_stats_kernel(%arg0: i32, %arg1: memref<1x4x256xf32, #tpu.memory_space<vmem>>, %arg2: memref<1x4x1xf32, #tpu.memory_space<vmem>>, %arg3: memref<1x4x1xf32, #tpu.memory_space<vmem>>) attributes {dimension_semantics = [#tpu.dimension_semantics<parallel>], iteration_bounds = array<i64: 2>, scalar_prefetch = 0 : i64, scratch_operands = 0 : i64, tpu.core_type = #tpu.core_type<tc>, window_params = [{transform_indices = @transform_0, window_bounds = array<i64: 1, 4, 256>}, {transform_indices = @transform_1, window_bounds = array<i64: 1, 4, 1>}, {transform_indices = @transform_2, window_bounds = array<i64: 1, 4, 1>}]} {
    %c0 = arith.constant 0 : index
    %c0_0 = arith.constant 0 : index
    %c0_1 = arith.constant 0 : index
    %0 = vector.load %arg1[%c0, %c0_0, %c0_1] : memref<1x4x256xf32, #tpu.memory_space<vmem>>, vector<1x4x256xf32>
    %cst = arith.constant dense<0.000000e+00> : vector<1x4xf32>
    %1 = vector.multi_reduction <add>, %0, %cst [2] : vector<1x4x256xf32> to vector<1x4xf32>
    %2 = vector.shape_cast %1 : vector<1x4xf32> to vector<1x4x1xf32>
    %cst_2 = arith.constant dense<0.000000e+00> : vector<4x1xf32>
    %3 = vector.multi_reduction <add>, %2, %cst_2 [0] : vector<1x4x1xf32> to vector<4x1xf32>
    %4 = vector.shape_cast %3 : vector<4x1xf32> to vector<1x4x1xf32>
    %c0_3 = arith.constant 0 : index
    %c0_4 = arith.constant 0 : index
    %c0_5 = arith.constant 0 : index
    %5 = vector.load %arg2[%c0_3, %c0_4, %c0_5] : memref<1x4x1xf32, #tpu.memory_space<vmem>>, vector<1x4x1xf32>
    tpu.vector_store %arg2[%c0_3, %c0_4, %c0_5], %4 {strides = array<i32>} : memref<1x4x1xf32, #tpu.memory_space<vmem>>, vector<1x4x1xf32>,
    %6 = arith.mulf %0, %0 : vector<1x4x256xf32>
    %cst_6 = arith.constant dense<0.000000e+00> : vector<1x4xf32>
    %7 = vector.multi_reduction <add>, %6, %cst_6 [2] : vector<1x4x256xf32> to vector<1x4xf32>
    %8 = vector.shape_cast %7 : vector<1x4xf32> to vector<1x4x1xf32>
    %cst_7 = arith.constant dense<0.000000e+00> : vector<4x1xf32>
    %9 = vector.multi_reduction <add>, %8, %cst_7 [0] : vector<1x4x1xf32> to vector<4x1xf32>
    %10 = vector.shape_cast %9 : vector<4x1xf32> to vector<1x4x1xf32>
    %c0_8 = arith.constant 0 : index
    %c0_9 = arith.constant 0 : index
    %c0_10 = arith.constant 0 : index
    %11 = vector.load %arg3[%c0_8, %c0_9, %c0_10] : memref<1x4x1xf32, #tpu.memory_space<vmem>>, vector<1x4x1xf32>
    tpu.vector_store %arg3[%c0_8, %c0_9, %c0_10], %10 {strides = array<i32>} : memref<1x4x1xf32, #tpu.memory_space<vmem>>, vector<1x4x1xf32>,
    return
  }
  func.func @transform_0(%arg0: i32) -> (i32, i32, i32) {
    %c0_i32 = arith.constant 0 : i32
    %c0_i32_0 = arith.constant 0 : i32
    %c0_i32_1 = arith.constant 0 : i32
    return %arg0, %c0_i32, %c0_i32_0 : i32, i32, i32
  }
  func.func @transform_1(%arg0: i32) -> (i32, i32, i32) {
    %c0_i32 = arith.constant 0 : i32
    %c0_i32_0 = arith.constant 0 : i32
    %c0_i32_1 = arith.constant 0 : i32
    return %arg0, %c0_i32, %c0_i32_0 : i32, i32, i32
  }
  func.func @transform_2(%arg0: i32) -> (i32, i32, i32) {
    %c0_i32 = arith.constant 0 : i32
    %c0_i32_0 = arith.constant 0 : i32
    %c0_i32_1 = arith.constant 0 : i32
    return %arg0, %c0_i32, %c0_i32_0 : i32, i32, i32
  }
}

module attributes {stable_mosaic.version = 11 : i64} {
  func.func @_norm_conv_kernel(%arg0: i32, %arg1: memref<1x4x256xf32, #tpu.memory_space<vmem>>, %arg2: memref<3x256xf32, #tpu.memory_space<vmem>>, %arg3: memref<4xf32, #tpu.memory_space<smem>>, %arg4: memref<4xf32, #tpu.memory_space<smem>>, %arg5: memref<144xf32, #tpu.memory_space<smem>>, %arg6: memref<4xf32, #tpu.memory_space<smem>>, %arg7: memref<1x4x256xf32, #tpu.memory_space<vmem>>, %arg8: memref<1x4x290xf32, #tpu.memory_space<vmem>>) attributes {dimension_semantics = [#tpu.dimension_semantics<parallel>], iteration_bounds = array<i64: 2>, scalar_prefetch = 0 : i64, scratch_operands = 1 : i64, tpu.core_type = #tpu.core_type<tc>, window_params = [{transform_indices = @transform_0, window_bounds = array<i64: 1, 4, 256>}, {pipeline_mode = #tpu.pipeline_mode<synchronous>, transform_indices = @transform_1, window_bounds = array<i64: 3, 256>}, {transform_indices = @transform_2, window_bounds = array<i64: 4>}, {transform_indices = @transform_3, window_bounds = array<i64: 4>}, {transform_indices = @transform_4, window_bounds = array<i64: 144>}, {transform_indices = @transform_5, window_bounds = array<i64: 4>}, {transform_indices = @transform_6, window_bounds = array<i64: 1, 4, 256>}]} {
    %cst = arith.constant 0.000000e+00 : f32
    %0 = vector.broadcast %cst : f32 to vector<1x4x17xf32>
    %c0 = arith.constant 0 : index
    %c0_0 = arith.constant 0 : index
    %c0_1 = arith.constant 0 : index
    %1 = vector.load %arg8[%c0, %c0_0, %c0_1] : memref<1x4x290xf32, #tpu.memory_space<vmem>>, vector<1x4x17xf32>
    tpu.vector_store %arg8[%c0, %c0_0, %c0_1], %0 {strides = array<i32>} : memref<1x4x290xf32, #tpu.memory_space<vmem>>, vector<1x4x17xf32>,
    %cst_2 = arith.constant 0.000000e+00 : f32
    %2 = vector.broadcast %cst_2 : f32 to vector<1x4x17xf32>
    %c0_3 = arith.constant 0 : index
    %c0_4 = arith.constant 0 : index
    %c273 = arith.constant 273 : index
    %3 = vector.load %arg8[%c0_3, %c0_4, %c273] : memref<1x4x290xf32, #tpu.memory_space<vmem>>, vector<1x4x17xf32>
    tpu.vector_store %arg8[%c0_3, %c0_4, %c273], %2 {strides = array<i32>} : memref<1x4x290xf32, #tpu.memory_space<vmem>>, vector<1x4x17xf32>,
    %c0_5 = arith.constant 0 : index
    %c0_6 = arith.constant 0 : index
    %c0_7 = arith.constant 0 : index
    %4 = vector.load %arg1[%c0_5, %c0_6, %c0_7] : memref<1x4x256xf32, #tpu.memory_space<vmem>>, vector<1x1x256xf32>
    %c0_8 = arith.constant 0 : index
    %5 = memref.load %arg3[%c0_8] : memref<4xf32, #tpu.memory_space<smem>>
    %6 = vector.broadcast %5 : f32 to vector<1x1x256xf32>
    %7 = arith.mulf %4, %6 : vector<1x1x256xf32>
    %c0_9 = arith.constant 0 : index
    %8 = memref.load %arg4[%c0_9] : memref<4xf32, #tpu.memory_space<smem>>
    %9 = vector.broadcast %8 : f32 to vector<1x1x256xf32>
    %10 = arith.addf %7, %9 : vector<1x1x256xf32>
    %cst_10 = arith.constant 0.000000e+00 : f32
    %11 = vector.broadcast %cst_10 : f32 to vector<1x1x256xf32>
    %12 = arith.cmpf ogt, %10, %11 : vector<1x1x256xf32>
    %cst_11 = arith.constant 0.00999999977 : f32
    %13 = vector.broadcast %cst_11 : f32 to vector<1x1x256xf32>
    %14 = arith.mulf %13, %10 : vector<1x1x256xf32>
    %15 = arith.select %12, %10, %14 : vector<1x1x256xi1>, vector<1x1x256xf32>
    %c0_12 = arith.constant 0 : index
    %c0_13 = arith.constant 0 : index
    %c17 = arith.constant 17 : index
    %16 = vector.load %arg8[%c0_12, %c0_13, %c17] : memref<1x4x290xf32, #tpu.memory_space<vmem>>, vector<1x1x256xf32>
    tpu.vector_store %arg8[%c0_12, %c0_13, %c17], %15 {strides = array<i32>} : memref<1x4x290xf32, #tpu.memory_space<vmem>>, vector<1x1x256xf32>,
    %c0_14 = arith.constant 0 : index
    %c1 = arith.constant 1 : index
    %c0_15 = arith.constant 0 : index
    %17 = vector.load %arg1[%c0_14, %c1, %c0_15] : memref<1x4x256xf32, #tpu.memory_space<vmem>>, vector<1x1x256xf32>
    %c1_16 = arith.constant 1 : index
    %18 = memref.load %arg3[%c1_16] : memref<4xf32, #tpu.memory_space<smem>>
    %19 = vector.broadcast %18 : f32 to vector<1x1x256xf32>
    %20 = arith.mulf %17, %19 : vector<1x1x256xf32>
    %c1_17 = arith.constant 1 : index
    %21 = memref.load %arg4[%c1_17] : memref<4xf32, #tpu.memory_space<smem>>
    %22 = vector.broadcast %21 : f32 to vector<1x1x256xf32>
    %23 = arith.addf %20, %22 : vector<1x1x256xf32>
    %cst_18 = arith.constant 0.000000e+00 : f32
    %24 = vector.broadcast %cst_18 : f32 to vector<1x1x256xf32>
    %25 = arith.cmpf ogt, %23, %24 : vector<1x1x256xf32>
    %cst_19 = arith.constant 0.00999999977 : f32
    %26 = vector.broadcast %cst_19 : f32 to vector<1x1x256xf32>
    %27 = arith.mulf %26, %23 : vector<1x1x256xf32>
    %28 = arith.select %25, %23, %27 : vector<1x1x256xi1>, vector<1x1x256xf32>
    %c0_20 = arith.constant 0 : index
    %c1_21 = arith.constant 1 : index
    %c17_22 = arith.constant 17 : index
    %29 = vector.load %arg8[%c0_20, %c1_21, %c17_22] : memref<1x4x290xf32, #tpu.memory_space<vmem>>, vector<1x1x256xf32>
    tpu.vector_store %arg8[%c0_20, %c1_21, %c17_22], %28 {strides = array<i32>} : memref<1x4x290xf32, #tpu.memory_space<vmem>>, vector<1x1x256xf32>,
    %c0_23 = arith.constant 0 : index
    %c2 = arith.constant 2 : index
    %c0_24 = arith.constant 0 : index
    %30 = vector.load %arg1[%c0_23, %c2, %c0_24] : memref<1x4x256xf32, #tpu.memory_space<vmem>>, vector<1x1x256xf32>
    %c2_25 = arith.constant 2 : index
    %31 = memref.load %arg3[%c2_25] : memref<4xf32, #tpu.memory_space<smem>>
    %32 = vector.broadcast %31 : f32 to vector<1x1x256xf32>
    %33 = arith.mulf %30, %32 : vector<1x1x256xf32>
    %c2_26 = arith.constant 2 : index
    %34 = memref.load %arg4[%c2_26] : memref<4xf32, #tpu.memory_space<smem>>
    %35 = vector.broadcast %34 : f32 to vector<1x1x256xf32>
    %36 = arith.addf %33, %35 : vector<1x1x256xf32>
    %cst_27 = arith.constant 0.000000e+00 : f32
    %37 = vector.broadcast %cst_27 : f32 to vector<1x1x256xf32>
    %38 = arith.cmpf ogt, %36, %37 : vector<1x1x256xf32>
    %cst_28 = arith.constant 0.00999999977 : f32
    %39 = vector.broadcast %cst_28 : f32 to vector<1x1x256xf32>
    %40 = arith.mulf %39, %36 : vector<1x1x256xf32>
    %41 = arith.select %38, %36, %40 : vector<1x1x256xi1>, vector<1x1x256xf32>
    %c0_29 = arith.constant 0 : index
    %c2_30 = arith.constant 2 : index
    %c17_31 = arith.constant 17 : index
    %42 = vector.load %arg8[%c0_29, %c2_30, %c17_31] : memref<1x4x290xf32, #tpu.memory_space<vmem>>, vector<1x1x256xf32>
    tpu.vector_store %arg8[%c0_29, %c2_30, %c17_31], %41 {strides = array<i32>} : memref<1x4x290xf32, #tpu.memory_space<vmem>>, vector<1x1x256xf32>,
    %c0_32 = arith.constant 0 : index
    %c3 = arith.constant 3 : index
    %c0_33 = arith.constant 0 : index
    %43 = vector.load %arg1[%c0_32, %c3, %c0_33] : memref<1x4x256xf32, #tpu.memory_space<vmem>>, vector<1x1x256xf32>
    %c3_34 = arith.constant 3 : index
    %44 = memref.load %arg3[%c3_34] : memref<4xf32, #tpu.memory_space<smem>>
    %45 = vector.broadcast %44 : f32 to vector<1x1x256xf32>
    %46 = arith.mulf %43, %45 : vector<1x1x256xf32>
    %c3_35 = arith.constant 3 : index
    %47 = memref.load %arg4[%c3_35] : memref<4xf32, #tpu.memory_space<smem>>
    %48 = vector.broadcast %47 : f32 to vector<1x1x256xf32>
    %49 = arith.addf %46, %48 : vector<1x1x256xf32>
    %cst_36 = arith.constant 0.000000e+00 : f32
    %50 = vector.broadcast %cst_36 : f32 to vector<1x1x256xf32>
    %51 = arith.cmpf ogt, %49, %50 : vector<1x1x256xf32>
    %cst_37 = arith.constant 0.00999999977 : f32
    %52 = vector.broadcast %cst_37 : f32 to vector<1x1x256xf32>
    %53 = arith.mulf %52, %49 : vector<1x1x256xf32>
    %54 = arith.select %51, %49, %53 : vector<1x1x256xi1>, vector<1x1x256xf32>
    %c0_38 = arith.constant 0 : index
    %c3_39 = arith.constant 3 : index
    %c17_40 = arith.constant 17 : index
    %55 = vector.load %arg8[%c0_38, %c3_39, %c17_40] : memref<1x4x290xf32, #tpu.memory_space<vmem>>, vector<1x1x256xf32>
    tpu.vector_store %arg8[%c0_38, %c3_39, %c17_40], %54 {strides = array<i32>} : memref<1x4x290xf32, #tpu.memory_space<vmem>>, vector<1x1x256xf32>,
    %cst_41 = arith.constant 0.000000e+00 : f32
    %56 = vector.broadcast %cst_41 : f32 to vector<1x1x256xf32>
    %cst_42 = arith.constant 0.000000e+00 : f32
    %57 = vector.broadcast %cst_42 : f32 to vector<1x1x256xf32>
    %cst_43 = arith.constant 0.000000e+00 : f32
    %58 = vector.broadcast %cst_43 : f32 to vector<1x1x256xf32>
    %cst_44 = arith.constant 0.000000e+00 : f32
    %59 = vector.broadcast %cst_44 : f32 to vector<1x1x256xf32>
    %c0_45 = arith.constant 0 : index
    %c0_46 = arith.constant 0 : index
    %c0_47 = arith.constant 0 : index
    %60 = vector.load %arg8[%c0_45, %c0_46, %c0_47] : memref<1x4x290xf32, #tpu.memory_space<vmem>>, vector<1x1x256xf32>
    %c0_48 = arith.constant 0 : index
    %c0_49 = arith.constant 0 : index
    %61 = vector.load %arg2[%c0_48, %c0_49] : memref<3x256xf32, #tpu.memory_space<vmem>>, vector<1x256xf32>
    %62 = vector.shape_cast %61 : vector<1x256xf32> to vector<1x1x256xf32>
    %63 = arith.mulf %60, %62 : vector<1x1x256xf32>
    %c0_50 = arith.constant 0 : index
    %64 = memref.load %arg5[%c0_50] : memref<144xf32, #tpu.memory_space<smem>>
    %65 = vector.broadcast %64 : f32 to vector<1x1x256xf32>
    %66 = arith.mulf %65, %63 : vector<1x1x256xf32>
    %67 = arith.addf %56, %66 : vector<1x1x256xf32>
    %c36 = arith.constant 36 : index
    %68 = memref.load %arg5[%c36] : memref<144xf32, #tpu.memory_space<smem>>
    %69 = vector.broadcast %68 : f32 to vector<1x1x256xf32>
    %70 = arith.mulf %69, %63 : vector<1x1x256xf32>
    %71 = arith.addf %57, %70 : vector<1x1x256xf32>
    %c72 = arith.constant 72 : index
    %72 = memref.load %arg5[%c72] : memref<144xf32, #tpu.memory_space<smem>>
    %73 = vector.broadcast %72 : f32 to vector<1x1x256xf32>
    %74 = arith.mulf %73, %63 : vector<1x1x256xf32>
    %75 = arith.addf %58, %74 : vector<1x1x256xf32>
    %c108 = arith.constant 108 : index
    %76 = memref.load %arg5[%c108] : memref<144xf32, #tpu.memory_space<smem>>
    %77 = vector.broadcast %76 : f32 to vector<1x1x256xf32>
    %78 = arith.mulf %77, %63 : vector<1x1x256xf32>
    %79 = arith.addf %59, %78 : vector<1x1x256xf32>
    %c0_51 = arith.constant 0 : index
    %c0_52 = arith.constant 0 : index
    %c1_53 = arith.constant 1 : index
    %80 = vector.load %arg8[%c0_51, %c0_52, %c1_53] : memref<1x4x290xf32, #tpu.memory_space<vmem>>, vector<1x1x256xf32>
    %c1_54 = arith.constant 1 : index
    %c0_55 = arith.constant 0 : index
    %81 = vector.load %arg2[%c1_54, %c0_55] : memref<3x256xf32, #tpu.memory_space<vmem>>, vector<1x256xf32>
    %82 = vector.shape_cast %81 : vector<1x256xf32> to vector<1x1x256xf32>
    %83 = arith.mulf %80, %82 : vector<1x1x256xf32>
    %c1_56 = arith.constant 1 : index
    %84 = memref.load %arg5[%c1_56] : memref<144xf32, #tpu.memory_space<smem>>
    %85 = vector.broadcast %84 : f32 to vector<1x1x256xf32>
    %86 = arith.mulf %85, %83 : vector<1x1x256xf32>
    %87 = arith.addf %67, %86 : vector<1x1x256xf32>
    %c37 = arith.constant 37 : index
    %88 = memref.load %arg5[%c37] : memref<144xf32, #tpu.memory_space<smem>>
    %89 = vector.broadcast %88 : f32 to vector<1x1x256xf32>
    %90 = arith.mulf %89, %83 : vector<1x1x256xf32>
    %91 = arith.addf %71, %90 : vector<1x1x256xf32>
    %c73 = arith.constant 73 : index
    %92 = memref.load %arg5[%c73] : memref<144xf32, #tpu.memory_space<smem>>
    %93 = vector.broadcast %92 : f32 to vector<1x1x256xf32>
    %94 = arith.mulf %93, %83 : vector<1x1x256xf32>
    %95 = arith.addf %75, %94 : vector<1x1x256xf32>
    %c109 = arith.constant 109 : index
    %96 = memref.load %arg5[%c109] : memref<144xf32, #tpu.memory_space<smem>>
    %97 = vector.broadcast %96 : f32 to vector<1x1x256xf32>
    %98 = arith.mulf %97, %83 : vector<1x1x256xf32>
    %99 = arith.addf %79, %98 : vector<1x1x256xf32>
    %c0_57 = arith.constant 0 : index
    %c0_58 = arith.constant 0 : index
    %c2_59 = arith.constant 2 : index
    %100 = vector.load %arg8[%c0_57, %c0_58, %c2_59] : memref<1x4x290xf32, #tpu.memory_space<vmem>>, vector<1x1x256xf32>
    %c2_60 = arith.constant 2 : index
    %c0_61 = arith.constant 0 : index
    %101 = vector.load %arg2[%c2_60, %c0_61] : memref<3x256xf32, #tpu.memory_space<vmem>>, vector<1x256xf32>
    %102 = vector.shape_cast %101 : vector<1x256xf32> to vector<1x1x256xf32>
    %103 = arith.mulf %100, %102 : vector<1x1x256xf32>
    %c2_62 = arith.constant 2 : index
    %104 = memref.load %arg5[%c2_62] : memref<144xf32, #tpu.memory_space<smem>>
    %105 = vector.broadcast %104 : f32 to vector<1x1x256xf32>
    %106 = arith.mulf %105, %103 : vector<1x1x256xf32>
    %107 = arith.addf %87, %106 : vector<1x1x256xf32>
    %c38 = arith.constant 38 : index
    %108 = memref.load %arg5[%c38] : memref<144xf32, #tpu.memory_space<smem>>
    %109 = vector.broadcast %108 : f32 to vector<1x1x256xf32>
    %110 = arith.mulf %109, %103 : vector<1x1x256xf32>
    %111 = arith.addf %91, %110 : vector<1x1x256xf32>
    %c74 = arith.constant 74 : index
    %112 = memref.load %arg5[%c74] : memref<144xf32, #tpu.memory_space<smem>>
    %113 = vector.broadcast %112 : f32 to vector<1x1x256xf32>
    %114 = arith.mulf %113, %103 : vector<1x1x256xf32>
    %115 = arith.addf %95, %114 : vector<1x1x256xf32>
    %c110 = arith.constant 110 : index
    %116 = memref.load %arg5[%c110] : memref<144xf32, #tpu.memory_space<smem>>
    %117 = vector.broadcast %116 : f32 to vector<1x1x256xf32>
    %118 = arith.mulf %117, %103 : vector<1x1x256xf32>
    %119 = arith.addf %99, %118 : vector<1x1x256xf32>
    %c0_63 = arith.constant 0 : index
    %c0_64 = arith.constant 0 : index
    %c16 = arith.constant 16 : index
    %120 = vector.load %arg8[%c0_63, %c0_64, %c16] : memref<1x4x290xf32, #tpu.memory_space<vmem>>, vector<1x1x256xf32>
    %c0_65 = arith.constant 0 : index
    %c0_66 = arith.constant 0 : index
    %121 = vector.load %arg2[%c0_65, %c0_66] : memref<3x256xf32, #tpu.memory_space<vmem>>, vector<1x256xf32>
    %122 = vector.shape_cast %121 : vector<1x256xf32> to vector<1x1x256xf32>
    %123 = arith.mulf %120, %122 : vector<1x1x256xf32>
    %c3_67 = arith.constant 3 : index
    %124 = memref.load %arg5[%c3_67] : memref<144xf32, #tpu.memory_space<smem>>
    %125 = vector.broadcast %124 : f32 to vector<1x1x256xf32>
    %126 = arith.mulf %125, %123 : vector<1x1x256xf32>
    %127 = arith.addf %107, %126 : vector<1x1x256xf32>
    %c39 = arith.constant 39 : index
    %128 = memref.load %arg5[%c39] : memref<144xf32, #tpu.memory_space<smem>>
    %129 = vector.broadcast %128 : f32 to vector<1x1x256xf32>
    %130 = arith.mulf %129, %123 : vector<1x1x256xf32>
    %131 = arith.addf %111, %130 : vector<1x1x256xf32>
    %c75 = arith.constant 75 : index
    %132 = memref.load %arg5[%c75] : memref<144xf32, #tpu.memory_space<smem>>
    %133 = vector.broadcast %132 : f32 to vector<1x1x256xf32>
    %134 = arith.mulf %133, %123 : vector<1x1x256xf32>
    %135 = arith.addf %115, %134 : vector<1x1x256xf32>
    %c111 = arith.constant 111 : index
    %136 = memref.load %arg5[%c111] : memref<144xf32, #tpu.memory_space<smem>>
    %137 = vector.broadcast %136 : f32 to vector<1x1x256xf32>
    %138 = arith.mulf %137, %123 : vector<1x1x256xf32>
    %139 = arith.addf %119, %138 : vector<1x1x256xf32>
    %c0_68 = arith.constant 0 : index
    %c0_69 = arith.constant 0 : index
    %c17_70 = arith.constant 17 : index
    %140 = vector.load %arg8[%c0_68, %c0_69, %c17_70] : memref<1x4x290xf32, #tpu.memory_space<vmem>>, vector<1x1x256xf32>
    %c1_71 = arith.constant 1 : index
    %c0_72 = arith.constant 0 : index
    %141 = vector.load %arg2[%c1_71, %c0_72] : memref<3x256xf32, #tpu.memory_space<vmem>>, vector<1x256xf32>
    %142 = vector.shape_cast %141 : vector<1x256xf32> to vector<1x1x256xf32>
    %143 = arith.mulf %140, %142 : vector<1x1x256xf32>
    %c4 = arith.constant 4 : index
    %144 = memref.load %arg5[%c4] : memref<144xf32, #tpu.memory_space<smem>>
    %145 = vector.broadcast %144 : f32 to vector<1x1x256xf32>
    %146 = arith.mulf %145, %143 : vector<1x1x256xf32>
    %147 = arith.addf %127, %146 : vector<1x1x256xf32>
    %c40 = arith.constant 40 : index
    %148 = memref.load %arg5[%c40] : memref<144xf32, #tpu.memory_space<smem>>
    %149 = vector.broadcast %148 : f32 to vector<1x1x256xf32>
    %150 = arith.mulf %149, %143 : vector<1x1x256xf32>
    %151 = arith.addf %131, %150 : vector<1x1x256xf32>
    %c76 = arith.constant 76 : index
    %152 = memref.load %arg5[%c76] : memref<144xf32, #tpu.memory_space<smem>>
    %153 = vector.broadcast %152 : f32 to vector<1x1x256xf32>
    %154 = arith.mulf %153, %143 : vector<1x1x256xf32>
    %155 = arith.addf %135, %154 : vector<1x1x256xf32>
    %c112 = arith.constant 112 : index
    %156 = memref.load %arg5[%c112] : memref<144xf32, #tpu.memory_space<smem>>
    %157 = vector.broadcast %156 : f32 to vector<1x1x256xf32>
    %158 = arith.mulf %157, %143 : vector<1x1x256xf32>
    %159 = arith.addf %139, %158 : vector<1x1x256xf32>
    %c0_73 = arith.constant 0 : index
    %c0_74 = arith.constant 0 : index
    %c18 = arith.constant 18 : index
    %160 = vector.load %arg8[%c0_73, %c0_74, %c18] : memref<1x4x290xf32, #tpu.memory_space<vmem>>, vector<1x1x256xf32>
    %c2_75 = arith.constant 2 : index
    %c0_76 = arith.constant 0 : index
    %161 = vector.load %arg2[%c2_75, %c0_76] : memref<3x256xf32, #tpu.memory_space<vmem>>, vector<1x256xf32>
    %162 = vector.shape_cast %161 : vector<1x256xf32> to vector<1x1x256xf32>
    %163 = arith.mulf %160, %162 : vector<1x1x256xf32>
    %c5 = arith.constant 5 : index
    %164 = memref.load %arg5[%c5] : memref<144xf32, #tpu.memory_space<smem>>
    %165 = vector.broadcast %164 : f32 to vector<1x1x256xf32>
    %166 = arith.mulf %165, %163 : vector<1x1x256xf32>
    %167 = arith.addf %147, %166 : vector<1x1x256xf32>
    %c41 = arith.constant 41 : index
    %168 = memref.load %arg5[%c41] : memref<144xf32, #tpu.memory_space<smem>>
    %169 = vector.broadcast %168 : f32 to vector<1x1x256xf32>
    %170 = arith.mulf %169, %163 : vector<1x1x256xf32>
    %171 = arith.addf %151, %170 : vector<1x1x256xf32>
    %c77 = arith.constant 77 : index
    %172 = memref.load %arg5[%c77] : memref<144xf32, #tpu.memory_space<smem>>
    %173 = vector.broadcast %172 : f32 to vector<1x1x256xf32>
    %174 = arith.mulf %173, %163 : vector<1x1x256xf32>
    %175 = arith.addf %155, %174 : vector<1x1x256xf32>
    %c113 = arith.constant 113 : index
    %176 = memref.load %arg5[%c113] : memref<144xf32, #tpu.memory_space<smem>>
    %177 = vector.broadcast %176 : f32 to vector<1x1x256xf32>
    %178 = arith.mulf %177, %163 : vector<1x1x256xf32>
    %179 = arith.addf %159, %178 : vector<1x1x256xf32>
    %c0_77 = arith.constant 0 : index
    %c0_78 = arith.constant 0 : index
    %c32 = arith.constant 32 : index
    %180 = vector.load %arg8[%c0_77, %c0_78, %c32] : memref<1x4x290xf32, #tpu.memory_space<vmem>>, vector<1x1x256xf32>
    %c0_79 = arith.constant 0 : index
    %c0_80 = arith.constant 0 : index
    %181 = vector.load %arg2[%c0_79, %c0_80] : memref<3x256xf32, #tpu.memory_space<vmem>>, vector<1x256xf32>
    %182 = vector.shape_cast %181 : vector<1x256xf32> to vector<1x1x256xf32>
    %183 = arith.mulf %180, %182 : vector<1x1x256xf32>
    %c6 = arith.constant 6 : index
    %184 = memref.load %arg5[%c6] : memref<144xf32, #tpu.memory_space<smem>>
    %185 = vector.broadcast %184 : f32 to vector<1x1x256xf32>
    %186 = arith.mulf %185, %183 : vector<1x1x256xf32>
    %187 = arith.addf %167, %186 : vector<1x1x256xf32>
    %c42 = arith.constant 42 : index
    %188 = memref.load %arg5[%c42] : memref<144xf32, #tpu.memory_space<smem>>
    %189 = vector.broadcast %188 : f32 to vector<1x1x256xf32>
    %190 = arith.mulf %189, %183 : vector<1x1x256xf32>
    %191 = arith.addf %171, %190 : vector<1x1x256xf32>
    %c78 = arith.constant 78 : index
    %192 = memref.load %arg5[%c78] : memref<144xf32, #tpu.memory_space<smem>>
    %193 = vector.broadcast %192 : f32 to vector<1x1x256xf32>
    %194 = arith.mulf %193, %183 : vector<1x1x256xf32>
    %195 = arith.addf %175, %194 : vector<1x1x256xf32>
    %c114 = arith.constant 114 : index
    %196 = memref.load %arg5[%c114] : memref<144xf32, #tpu.memory_space<smem>>
    %197 = vector.broadcast %196 : f32 to vector<1x1x256xf32>
    %198 = arith.mulf %197, %183 : vector<1x1x256xf32>
    %199 = arith.addf %179, %198 : vector<1x1x256xf32>
    %c0_81 = arith.constant 0 : index
    %c0_82 = arith.constant 0 : index
    %c33 = arith.constant 33 : index
    %200 = vector.load %arg8[%c0_81, %c0_82, %c33] : memref<1x4x290xf32, #tpu.memory_space<vmem>>, vector<1x1x256xf32>
    %c1_83 = arith.constant 1 : index
    %c0_84 = arith.constant 0 : index
    %201 = vector.load %arg2[%c1_83, %c0_84] : memref<3x256xf32, #tpu.memory_space<vmem>>, vector<1x256xf32>
    %202 = vector.shape_cast %201 : vector<1x256xf32> to vector<1x1x256xf32>
    %203 = arith.mulf %200, %202 : vector<1x1x256xf32>
    %c7 = arith.constant 7 : index
    %204 = memref.load %arg5[%c7] : memref<144xf32, #tpu.memory_space<smem>>
    %205 = vector.broadcast %204 : f32 to vector<1x1x256xf32>
    %206 = arith.mulf %205, %203 : vector<1x1x256xf32>
    %207 = arith.addf %187, %206 : vector<1x1x256xf32>
    %c43 = arith.constant 43 : index
    %208 = memref.load %arg5[%c43] : memref<144xf32, #tpu.memory_space<smem>>
    %209 = vector.broadcast %208 : f32 to vector<1x1x256xf32>
    %210 = arith.mulf %209, %203 : vector<1x1x256xf32>
    %211 = arith.addf %191, %210 : vector<1x1x256xf32>
    %c79 = arith.constant 79 : index
    %212 = memref.load %arg5[%c79] : memref<144xf32, #tpu.memory_space<smem>>
    %213 = vector.broadcast %212 : f32 to vector<1x1x256xf32>
    %214 = arith.mulf %213, %203 : vector<1x1x256xf32>
    %215 = arith.addf %195, %214 : vector<1x1x256xf32>
    %c115 = arith.constant 115 : index
    %216 = memref.load %arg5[%c115] : memref<144xf32, #tpu.memory_space<smem>>
    %217 = vector.broadcast %216 : f32 to vector<1x1x256xf32>
    %218 = arith.mulf %217, %203 : vector<1x1x256xf32>
    %219 = arith.addf %199, %218 : vector<1x1x256xf32>
    %c0_85 = arith.constant 0 : index
    %c0_86 = arith.constant 0 : index
    %c34 = arith.constant 34 : index
    %220 = vector.load %arg8[%c0_85, %c0_86, %c34] : memref<1x4x290xf32, #tpu.memory_space<vmem>>, vector<1x1x256xf32>
    %c2_87 = arith.constant 2 : index
    %c0_88 = arith.constant 0 : index
    %221 = vector.load %arg2[%c2_87, %c0_88] : memref<3x256xf32, #tpu.memory_space<vmem>>, vector<1x256xf32>
    %222 = vector.shape_cast %221 : vector<1x256xf32> to vector<1x1x256xf32>
    %223 = arith.mulf %220, %222 : vector<1x1x256xf32>
    %c8 = arith.constant 8 : index
    %224 = memref.load %arg5[%c8] : memref<144xf32, #tpu.memory_space<smem>>
    %225 = vector.broadcast %224 : f32 to vector<1x1x256xf32>
    %226 = arith.mulf %225, %223 : vector<1x1x256xf32>
    %227 = arith.addf %207, %226 : vector<1x1x256xf32>
    %c44 = arith.constant 44 : index
    %228 = memref.load %arg5[%c44] : memref<144xf32, #tpu.memory_space<smem>>
    %229 = vector.broadcast %228 : f32 to vector<1x1x256xf32>
    %230 = arith.mulf %229, %223 : vector<1x1x256xf32>
    %231 = arith.addf %211, %230 : vector<1x1x256xf32>
    %c80 = arith.constant 80 : index
    %232 = memref.load %arg5[%c80] : memref<144xf32, #tpu.memory_space<smem>>
    %233 = vector.broadcast %232 : f32 to vector<1x1x256xf32>
    %234 = arith.mulf %233, %223 : vector<1x1x256xf32>
    %235 = arith.addf %215, %234 : vector<1x1x256xf32>
    %c116 = arith.constant 116 : index
    %236 = memref.load %arg5[%c116] : memref<144xf32, #tpu.memory_space<smem>>
    %237 = vector.broadcast %236 : f32 to vector<1x1x256xf32>
    %238 = arith.mulf %237, %223 : vector<1x1x256xf32>
    %239 = arith.addf %219, %238 : vector<1x1x256xf32>
    %c0_89 = arith.constant 0 : index
    %c1_90 = arith.constant 1 : index
    %c0_91 = arith.constant 0 : index
    %240 = vector.load %arg8[%c0_89, %c1_90, %c0_91] : memref<1x4x290xf32, #tpu.memory_space<vmem>>, vector<1x1x256xf32>
    %c0_92 = arith.constant 0 : index
    %c0_93 = arith.constant 0 : index
    %241 = vector.load %arg2[%c0_92, %c0_93] : memref<3x256xf32, #tpu.memory_space<vmem>>, vector<1x256xf32>
    %242 = vector.shape_cast %241 : vector<1x256xf32> to vector<1x1x256xf32>
    %243 = arith.mulf %240, %242 : vector<1x1x256xf32>
    %c9 = arith.constant 9 : index
    %244 = memref.load %arg5[%c9] : memref<144xf32, #tpu.memory_space<smem>>
    %245 = vector.broadcast %244 : f32 to vector<1x1x256xf32>
    %246 = arith.mulf %245, %243 : vector<1x1x256xf32>
    %247 = arith.addf %227, %246 : vector<1x1x256xf32>
    %c45 = arith.constant 45 : index
    %248 = memref.load %arg5[%c45] : memref<144xf32, #tpu.memory_space<smem>>
    %249 = vector.broadcast %248 : f32 to vector<1x1x256xf32>
    %250 = arith.mulf %249, %243 : vector<1x1x256xf32>
    %251 = arith.addf %231, %250 : vector<1x1x256xf32>
    %c81 = arith.constant 81 : index
    %252 = memref.load %arg5[%c81] : memref<144xf32, #tpu.memory_space<smem>>
    %253 = vector.broadcast %252 : f32 to vector<1x1x256xf32>
    %254 = arith.mulf %253, %243 : vector<1x1x256xf32>
    %255 = arith.addf %235, %254 : vector<1x1x256xf32>
    %c117 = arith.constant 117 : index
    %256 = memref.load %arg5[%c117] : memref<144xf32, #tpu.memory_space<smem>>
    %257 = vector.broadcast %256 : f32 to vector<1x1x256xf32>
    %258 = arith.mulf %257, %243 : vector<1x1x256xf32>
    %259 = arith.addf %239, %258 : vector<1x1x256xf32>
    %c0_94 = arith.constant 0 : index
    %c1_95 = arith.constant 1 : index
    %c1_96 = arith.constant 1 : index
    %260 = vector.load %arg8[%c0_94, %c1_95, %c1_96] : memref<1x4x290xf32, #tpu.memory_space<vmem>>, vector<1x1x256xf32>
    %c1_97 = arith.constant 1 : index
    %c0_98 = arith.constant 0 : index
    %261 = vector.load %arg2[%c1_97, %c0_98] : memref<3x256xf32, #tpu.memory_space<vmem>>, vector<1x256xf32>
    %262 = vector.shape_cast %261 : vector<1x256xf32> to vector<1x1x256xf32>
    %263 = arith.mulf %260, %262 : vector<1x1x256xf32>
    %c10 = arith.constant 10 : index
    %264 = memref.load %arg5[%c10] : memref<144xf32, #tpu.memory_space<smem>>
    %265 = vector.broadcast %264 : f32 to vector<1x1x256xf32>
    %266 = arith.mulf %265, %263 : vector<1x1x256xf32>
    %267 = arith.addf %247, %266 : vector<1x1x256xf32>
    %c46 = arith.constant 46 : index
    %268 = memref.load %arg5[%c46] : memref<144xf32, #tpu.memory_space<smem>>
    %269 = vector.broadcast %268 : f32 to vector<1x1x256xf32>
    %270 = arith.mulf %269, %263 : vector<1x1x256xf32>
    %271 = arith.addf %251, %270 : vector<1x1x256xf32>
    %c82 = arith.constant 82 : index
    %272 = memref.load %arg5[%c82] : memref<144xf32, #tpu.memory_space<smem>>
    %273 = vector.broadcast %272 : f32 to vector<1x1x256xf32>
    %274 = arith.mulf %273, %263 : vector<1x1x256xf32>
    %275 = arith.addf %255, %274 : vector<1x1x256xf32>
    %c118 = arith.constant 118 : index
    %276 = memref.load %arg5[%c118] : memref<144xf32, #tpu.memory_space<smem>>
    %277 = vector.broadcast %276 : f32 to vector<1x1x256xf32>
    %278 = arith.mulf %277, %263 : vector<1x1x256xf32>
    %279 = arith.addf %259, %278 : vector<1x1x256xf32>
    %c0_99 = arith.constant 0 : index
    %c1_100 = arith.constant 1 : index
    %c2_101 = arith.constant 2 : index
    %280 = vector.load %arg8[%c0_99, %c1_100, %c2_101] : memref<1x4x290xf32, #tpu.memory_space<vmem>>, vector<1x1x256xf32>
    %c2_102 = arith.constant 2 : index
    %c0_103 = arith.constant 0 : index
    %281 = vector.load %arg2[%c2_102, %c0_103] : memref<3x256xf32, #tpu.memory_space<vmem>>, vector<1x256xf32>
    %282 = vector.shape_cast %281 : vector<1x256xf32> to vector<1x1x256xf32>
    %283 = arith.mulf %280, %282 : vector<1x1x256xf32>
    %c11 = arith.constant 11 : index
    %284 = memref.load %arg5[%c11] : memref<144xf32, #tpu.memory_space<smem>>
    %285 = vector.broadcast %284 : f32 to vector<1x1x256xf32>
    %286 = arith.mulf %285, %283 : vector<1x1x256xf32>
    %287 = arith.addf %267, %286 : vector<1x1x256xf32>
    %c47 = arith.constant 47 : index
    %288 = memref.load %arg5[%c47] : memref<144xf32, #tpu.memory_space<smem>>
    %289 = vector.broadcast %288 : f32 to vector<1x1x256xf32>
    %290 = arith.mulf %289, %283 : vector<1x1x256xf32>
    %291 = arith.addf %271, %290 : vector<1x1x256xf32>
    %c83 = arith.constant 83 : index
    %292 = memref.load %arg5[%c83] : memref<144xf32, #tpu.memory_space<smem>>
    %293 = vector.broadcast %292 : f32 to vector<1x1x256xf32>
    %294 = arith.mulf %293, %283 : vector<1x1x256xf32>
    %295 = arith.addf %275, %294 : vector<1x1x256xf32>
    %c119 = arith.constant 119 : index
    %296 = memref.load %arg5[%c119] : memref<144xf32, #tpu.memory_space<smem>>
    %297 = vector.broadcast %296 : f32 to vector<1x1x256xf32>
    %298 = arith.mulf %297, %283 : vector<1x1x256xf32>
    %299 = arith.addf %279, %298 : vector<1x1x256xf32>
    %c0_104 = arith.constant 0 : index
    %c1_105 = arith.constant 1 : index
    %c16_106 = arith.constant 16 : index
    %300 = vector.load %arg8[%c0_104, %c1_105, %c16_106] : memref<1x4x290xf32, #tpu.memory_space<vmem>>, vector<1x1x256xf32>
    %c0_107 = arith.constant 0 : index
    %c0_108 = arith.constant 0 : index
    %301 = vector.load %arg2[%c0_107, %c0_108] : memref<3x256xf32, #tpu.memory_space<vmem>>, vector<1x256xf32>
    %302 = vector.shape_cast %301 : vector<1x256xf32> to vector<1x1x256xf32>
    %303 = arith.mulf %300, %302 : vector<1x1x256xf32>
    %c12 = arith.constant 12 : index
    %304 = memref.load %arg5[%c12] : memref<144xf32, #tpu.memory_space<smem>>
    %305 = vector.broadcast %304 : f32 to vector<1x1x256xf32>
    %306 = arith.mulf %305, %303 : vector<1x1x256xf32>
    %307 = arith.addf %287, %306 : vector<1x1x256xf32>
    %c48 = arith.constant 48 : index
    %308 = memref.load %arg5[%c48] : memref<144xf32, #tpu.memory_space<smem>>
    %309 = vector.broadcast %308 : f32 to vector<1x1x256xf32>
    %310 = arith.mulf %309, %303 : vector<1x1x256xf32>
    %311 = arith.addf %291, %310 : vector<1x1x256xf32>
    %c84 = arith.constant 84 : index
    %312 = memref.load %arg5[%c84] : memref<144xf32, #tpu.memory_space<smem>>
    %313 = vector.broadcast %312 : f32 to vector<1x1x256xf32>
    %314 = arith.mulf %313, %303 : vector<1x1x256xf32>
    %315 = arith.addf %295, %314 : vector<1x1x256xf32>
    %c120 = arith.constant 120 : index
    %316 = memref.load %arg5[%c120] : memref<144xf32, #tpu.memory_space<smem>>
    %317 = vector.broadcast %316 : f32 to vector<1x1x256xf32>
    %318 = arith.mulf %317, %303 : vector<1x1x256xf32>
    %319 = arith.addf %299, %318 : vector<1x1x256xf32>
    %c0_109 = arith.constant 0 : index
    %c1_110 = arith.constant 1 : index
    %c17_111 = arith.constant 17 : index
    %320 = vector.load %arg8[%c0_109, %c1_110, %c17_111] : memref<1x4x290xf32, #tpu.memory_space<vmem>>, vector<1x1x256xf32>
    %c1_112 = arith.constant 1 : index
    %c0_113 = arith.constant 0 : index
    %321 = vector.load %arg2[%c1_112, %c0_113] : memref<3x256xf32, #tpu.memory_space<vmem>>, vector<1x256xf32>
    %322 = vector.shape_cast %321 : vector<1x256xf32> to vector<1x1x256xf32>
    %323 = arith.mulf %320, %322 : vector<1x1x256xf32>
    %c13 = arith.constant 13 : index
    %324 = memref.load %arg5[%c13] : memref<144xf32, #tpu.memory_space<smem>>
    %325 = vector.broadcast %324 : f32 to vector<1x1x256xf32>
    %326 = arith.mulf %325, %323 : vector<1x1x256xf32>
    %327 = arith.addf %307, %326 : vector<1x1x256xf32>
    %c49 = arith.constant 49 : index
    %328 = memref.load %arg5[%c49] : memref<144xf32, #tpu.memory_space<smem>>
    %329 = vector.broadcast %328 : f32 to vector<1x1x256xf32>
    %330 = arith.mulf %329, %323 : vector<1x1x256xf32>
    %331 = arith.addf %311, %330 : vector<1x1x256xf32>
    %c85 = arith.constant 85 : index
    %332 = memref.load %arg5[%c85] : memref<144xf32, #tpu.memory_space<smem>>
    %333 = vector.broadcast %332 : f32 to vector<1x1x256xf32>
    %334 = arith.mulf %333, %323 : vector<1x1x256xf32>
    %335 = arith.addf %315, %334 : vector<1x1x256xf32>
    %c121 = arith.constant 121 : index
    %336 = memref.load %arg5[%c121] : memref<144xf32, #tpu.memory_space<smem>>
    %337 = vector.broadcast %336 : f32 to vector<1x1x256xf32>
    %338 = arith.mulf %337, %323 : vector<1x1x256xf32>
    %339 = arith.addf %319, %338 : vector<1x1x256xf32>
    %c0_114 = arith.constant 0 : index
    %c1_115 = arith.constant 1 : index
    %c18_116 = arith.constant 18 : index
    %340 = vector.load %arg8[%c0_114, %c1_115, %c18_116] : memref<1x4x290xf32, #tpu.memory_space<vmem>>, vector<1x1x256xf32>
    %c2_117 = arith.constant 2 : index
    %c0_118 = arith.constant 0 : index
    %341 = vector.load %arg2[%c2_117, %c0_118] : memref<3x256xf32, #tpu.memory_space<vmem>>, vector<1x256xf32>
    %342 = vector.shape_cast %341 : vector<1x256xf32> to vector<1x1x256xf32>
    %343 = arith.mulf %340, %342 : vector<1x1x256xf32>
    %c14 = arith.constant 14 : index
    %344 = memref.load %arg5[%c14] : memref<144xf32, #tpu.memory_space<smem>>
    %345 = vector.broadcast %344 : f32 to vector<1x1x256xf32>
    %346 = arith.mulf %345, %343 : vector<1x1x256xf32>
    %347 = arith.addf %327, %346 : vector<1x1x256xf32>
    %c50 = arith.constant 50 : index
    %348 = memref.load %arg5[%c50] : memref<144xf32, #tpu.memory_space<smem>>
    %349 = vector.broadcast %348 : f32 to vector<1x1x256xf32>
    %350 = arith.mulf %349, %343 : vector<1x1x256xf32>
    %351 = arith.addf %331, %350 : vector<1x1x256xf32>
    %c86 = arith.constant 86 : index
    %352 = memref.load %arg5[%c86] : memref<144xf32, #tpu.memory_space<smem>>
    %353 = vector.broadcast %352 : f32 to vector<1x1x256xf32>
    %354 = arith.mulf %353, %343 : vector<1x1x256xf32>
    %355 = arith.addf %335, %354 : vector<1x1x256xf32>
    %c122 = arith.constant 122 : index
    %356 = memref.load %arg5[%c122] : memref<144xf32, #tpu.memory_space<smem>>
    %357 = vector.broadcast %356 : f32 to vector<1x1x256xf32>
    %358 = arith.mulf %357, %343 : vector<1x1x256xf32>
    %359 = arith.addf %339, %358 : vector<1x1x256xf32>
    %c0_119 = arith.constant 0 : index
    %c1_120 = arith.constant 1 : index
    %c32_121 = arith.constant 32 : index
    %360 = vector.load %arg8[%c0_119, %c1_120, %c32_121] : memref<1x4x290xf32, #tpu.memory_space<vmem>>, vector<1x1x256xf32>
    %c0_122 = arith.constant 0 : index
    %c0_123 = arith.constant 0 : index
    %361 = vector.load %arg2[%c0_122, %c0_123] : memref<3x256xf32, #tpu.memory_space<vmem>>, vector<1x256xf32>
    %362 = vector.shape_cast %361 : vector<1x256xf32> to vector<1x1x256xf32>
    %363 = arith.mulf %360, %362 : vector<1x1x256xf32>
    %c15 = arith.constant 15 : index
    %364 = memref.load %arg5[%c15] : memref<144xf32, #tpu.memory_space<smem>>
    %365 = vector.broadcast %364 : f32 to vector<1x1x256xf32>
    %366 = arith.mulf %365, %363 : vector<1x1x256xf32>
    %367 = arith.addf %347, %366 : vector<1x1x256xf32>
    %c51 = arith.constant 51 : index
    %368 = memref.load %arg5[%c51] : memref<144xf32, #tpu.memory_space<smem>>
    %369 = vector.broadcast %368 : f32 to vector<1x1x256xf32>
    %370 = arith.mulf %369, %363 : vector<1x1x256xf32>
    %371 = arith.addf %351, %370 : vector<1x1x256xf32>
    %c87 = arith.constant 87 : index
    %372 = memref.load %arg5[%c87] : memref<144xf32, #tpu.memory_space<smem>>
    %373 = vector.broadcast %372 : f32 to vector<1x1x256xf32>
    %374 = arith.mulf %373, %363 : vector<1x1x256xf32>
    %375 = arith.addf %355, %374 : vector<1x1x256xf32>
    %c123 = arith.constant 123 : index
    %376 = memref.load %arg5[%c123] : memref<144xf32, #tpu.memory_space<smem>>
    %377 = vector.broadcast %376 : f32 to vector<1x1x256xf32>
    %378 = arith.mulf %377, %363 : vector<1x1x256xf32>
    %379 = arith.addf %359, %378 : vector<1x1x256xf32>
    %c0_124 = arith.constant 0 : index
    %c1_125 = arith.constant 1 : index
    %c33_126 = arith.constant 33 : index
    %380 = vector.load %arg8[%c0_124, %c1_125, %c33_126] : memref<1x4x290xf32, #tpu.memory_space<vmem>>, vector<1x1x256xf32>
    %c1_127 = arith.constant 1 : index
    %c0_128 = arith.constant 0 : index
    %381 = vector.load %arg2[%c1_127, %c0_128] : memref<3x256xf32, #tpu.memory_space<vmem>>, vector<1x256xf32>
    %382 = vector.shape_cast %381 : vector<1x256xf32> to vector<1x1x256xf32>
    %383 = arith.mulf %380, %382 : vector<1x1x256xf32>
    %c16_129 = arith.constant 16 : index
    %384 = memref.load %arg5[%c16_129] : memref<144xf32, #tpu.memory_space<smem>>
    %385 = vector.broadcast %384 : f32 to vector<1x1x256xf32>
    %386 = arith.mulf %385, %383 : vector<1x1x256xf32>
    %387 = arith.addf %367, %386 : vector<1x1x256xf32>
    %c52 = arith.constant 52 : index
    %388 = memref.load %arg5[%c52] : memref<144xf32, #tpu.memory_space<smem>>
    %389 = vector.broadcast %388 : f32 to vector<1x1x256xf32>
    %390 = arith.mulf %389, %383 : vector<1x1x256xf32>
    %391 = arith.addf %371, %390 : vector<1x1x256xf32>
    %c88 = arith.constant 88 : index
    %392 = memref.load %arg5[%c88] : memref<144xf32, #tpu.memory_space<smem>>
    %393 = vector.broadcast %392 : f32 to vector<1x1x256xf32>
    %394 = arith.mulf %393, %383 : vector<1x1x256xf32>
    %395 = arith.addf %375, %394 : vector<1x1x256xf32>
    %c124 = arith.constant 124 : index
    %396 = memref.load %arg5[%c124] : memref<144xf32, #tpu.memory_space<smem>>
    %397 = vector.broadcast %396 : f32 to vector<1x1x256xf32>
    %398 = arith.mulf %397, %383 : vector<1x1x256xf32>
    %399 = arith.addf %379, %398 : vector<1x1x256xf32>
    %c0_130 = arith.constant 0 : index
    %c1_131 = arith.constant 1 : index
    %c34_132 = arith.constant 34 : index
    %400 = vector.load %arg8[%c0_130, %c1_131, %c34_132] : memref<1x4x290xf32, #tpu.memory_space<vmem>>, vector<1x1x256xf32>
    %c2_133 = arith.constant 2 : index
    %c0_134 = arith.constant 0 : index
    %401 = vector.load %arg2[%c2_133, %c0_134] : memref<3x256xf32, #tpu.memory_space<vmem>>, vector<1x256xf32>
    %402 = vector.shape_cast %401 : vector<1x256xf32> to vector<1x1x256xf32>
    %403 = arith.mulf %400, %402 : vector<1x1x256xf32>
    %c17_135 = arith.constant 17 : index
    %404 = memref.load %arg5[%c17_135] : memref<144xf32, #tpu.memory_space<smem>>
    %405 = vector.broadcast %404 : f32 to vector<1x1x256xf32>
    %406 = arith.mulf %405, %403 : vector<1x1x256xf32>
    %407 = arith.addf %387, %406 : vector<1x1x256xf32>
    %c53 = arith.constant 53 : index
    %408 = memref.load %arg5[%c53] : memref<144xf32, #tpu.memory_space<smem>>
    %409 = vector.broadcast %408 : f32 to vector<1x1x256xf32>
    %410 = arith.mulf %409, %403 : vector<1x1x256xf32>
    %411 = arith.addf %391, %410 : vector<1x1x256xf32>
    %c89 = arith.constant 89 : index
    %412 = memref.load %arg5[%c89] : memref<144xf32, #tpu.memory_space<smem>>
    %413 = vector.broadcast %412 : f32 to vector<1x1x256xf32>
    %414 = arith.mulf %413, %403 : vector<1x1x256xf32>
    %415 = arith.addf %395, %414 : vector<1x1x256xf32>
    %c125 = arith.constant 125 : index
    %416 = memref.load %arg5[%c125] : memref<144xf32, #tpu.memory_space<smem>>
    %417 = vector.broadcast %416 : f32 to vector<1x1x256xf32>
    %418 = arith.mulf %417, %403 : vector<1x1x256xf32>
    %419 = arith.addf %399, %418 : vector<1x1x256xf32>
    %c0_136 = arith.constant 0 : index
    %c2_137 = arith.constant 2 : index
    %c0_138 = arith.constant 0 : index
    %420 = vector.load %arg8[%c0_136, %c2_137, %c0_138] : memref<1x4x290xf32, #tpu.memory_space<vmem>>, vector<1x1x256xf32>
    %c0_139 = arith.constant 0 : index
    %c0_140 = arith.constant 0 : index
    %421 = vector.load %arg2[%c0_139, %c0_140] : memref<3x256xf32, #tpu.memory_space<vmem>>, vector<1x256xf32>
    %422 = vector.shape_cast %421 : vector<1x256xf32> to vector<1x1x256xf32>
    %423 = arith.mulf %420, %422 : vector<1x1x256xf32>
    %c18_141 = arith.constant 18 : index
    %424 = memref.load %arg5[%c18_141] : memref<144xf32, #tpu.memory_space<smem>>
    %425 = vector.broadcast %424 : f32 to vector<1x1x256xf32>
    %426 = arith.mulf %425, %423 : vector<1x1x256xf32>
    %427 = arith.addf %407, %426 : vector<1x1x256xf32>
    %c54 = arith.constant 54 : index
    %428 = memref.load %arg5[%c54] : memref<144xf32, #tpu.memory_space<smem>>
    %429 = vector.broadcast %428 : f32 to vector<1x1x256xf32>
    %430 = arith.mulf %429, %423 : vector<1x1x256xf32>
    %431 = arith.addf %411, %430 : vector<1x1x256xf32>
    %c90 = arith.constant 90 : index
    %432 = memref.load %arg5[%c90] : memref<144xf32, #tpu.memory_space<smem>>
    %433 = vector.broadcast %432 : f32 to vector<1x1x256xf32>
    %434 = arith.mulf %433, %423 : vector<1x1x256xf32>
    %435 = arith.addf %415, %434 : vector<1x1x256xf32>
    %c126 = arith.constant 126 : index
    %436 = memref.load %arg5[%c126] : memref<144xf32, #tpu.memory_space<smem>>
    %437 = vector.broadcast %436 : f32 to vector<1x1x256xf32>
    %438 = arith.mulf %437, %423 : vector<1x1x256xf32>
    %439 = arith.addf %419, %438 : vector<1x1x256xf32>
    %c0_142 = arith.constant 0 : index
    %c2_143 = arith.constant 2 : index
    %c1_144 = arith.constant 1 : index
    %440 = vector.load %arg8[%c0_142, %c2_143, %c1_144] : memref<1x4x290xf32, #tpu.memory_space<vmem>>, vector<1x1x256xf32>
    %c1_145 = arith.constant 1 : index
    %c0_146 = arith.constant 0 : index
    %441 = vector.load %arg2[%c1_145, %c0_146] : memref<3x256xf32, #tpu.memory_space<vmem>>, vector<1x256xf32>
    %442 = vector.shape_cast %441 : vector<1x256xf32> to vector<1x1x256xf32>
    %443 = arith.mulf %440, %442 : vector<1x1x256xf32>
    %c19 = arith.constant 19 : index
    %444 = memref.load %arg5[%c19] : memref<144xf32, #tpu.memory_space<smem>>
    %445 = vector.broadcast %444 : f32 to vector<1x1x256xf32>
    %446 = arith.mulf %445, %443 : vector<1x1x256xf32>
    %447 = arith.addf %427, %446 : vector<1x1x256xf32>
    %c55 = arith.constant 55 : index
    %448 = memref.load %arg5[%c55] : memref<144xf32, #tpu.memory_space<smem>>
    %449 = vector.broadcast %448 : f32 to vector<1x1x256xf32>
    %450 = arith.mulf %449, %443 : vector<1x1x256xf32>
    %451 = arith.addf %431, %450 : vector<1x1x256xf32>
    %c91 = arith.constant 91 : index
    %452 = memref.load %arg5[%c91] : memref<144xf32, #tpu.memory_space<smem>>
    %453 = vector.broadcast %452 : f32 to vector<1x1x256xf32>
    %454 = arith.mulf %453, %443 : vector<1x1x256xf32>
    %455 = arith.addf %435, %454 : vector<1x1x256xf32>
    %c127 = arith.constant 127 : index
    %456 = memref.load %arg5[%c127] : memref<144xf32, #tpu.memory_space<smem>>
    %457 = vector.broadcast %456 : f32 to vector<1x1x256xf32>
    %458 = arith.mulf %457, %443 : vector<1x1x256xf32>
    %459 = arith.addf %439, %458 : vector<1x1x256xf32>
    %c0_147 = arith.constant 0 : index
    %c2_148 = arith.constant 2 : index
    %c2_149 = arith.constant 2 : index
    %460 = vector.load %arg8[%c0_147, %c2_148, %c2_149] : memref<1x4x290xf32, #tpu.memory_space<vmem>>, vector<1x1x256xf32>
    %c2_150 = arith.constant 2 : index
    %c0_151 = arith.constant 0 : index
    %461 = vector.load %arg2[%c2_150, %c0_151] : memref<3x256xf32, #tpu.memory_space<vmem>>, vector<1x256xf32>
    %462 = vector.shape_cast %461 : vector<1x256xf32> to vector<1x1x256xf32>
    %463 = arith.mulf %460, %462 : vector<1x1x256xf32>
    %c20 = arith.constant 20 : index
    %464 = memref.load %arg5[%c20] : memref<144xf32, #tpu.memory_space<smem>>
    %465 = vector.broadcast %464 : f32 to vector<1x1x256xf32>
    %466 = arith.mulf %465, %463 : vector<1x1x256xf32>
    %467 = arith.addf %447, %466 : vector<1x1x256xf32>
    %c56 = arith.constant 56 : index
    %468 = memref.load %arg5[%c56] : memref<144xf32, #tpu.memory_space<smem>>
    %469 = vector.broadcast %468 : f32 to vector<1x1x256xf32>
    %470 = arith.mulf %469, %463 : vector<1x1x256xf32>
    %471 = arith.addf %451, %470 : vector<1x1x256xf32>
    %c92 = arith.constant 92 : index
    %472 = memref.load %arg5[%c92] : memref<144xf32, #tpu.memory_space<smem>>
    %473 = vector.broadcast %472 : f32 to vector<1x1x256xf32>
    %474 = arith.mulf %473, %463 : vector<1x1x256xf32>
    %475 = arith.addf %455, %474 : vector<1x1x256xf32>
    %c128 = arith.constant 128 : index
    %476 = memref.load %arg5[%c128] : memref<144xf32, #tpu.memory_space<smem>>
    %477 = vector.broadcast %476 : f32 to vector<1x1x256xf32>
    %478 = arith.mulf %477, %463 : vector<1x1x256xf32>
    %479 = arith.addf %459, %478 : vector<1x1x256xf32>
    %c0_152 = arith.constant 0 : index
    %c2_153 = arith.constant 2 : index
    %c16_154 = arith.constant 16 : index
    %480 = vector.load %arg8[%c0_152, %c2_153, %c16_154] : memref<1x4x290xf32, #tpu.memory_space<vmem>>, vector<1x1x256xf32>
    %c0_155 = arith.constant 0 : index
    %c0_156 = arith.constant 0 : index
    %481 = vector.load %arg2[%c0_155, %c0_156] : memref<3x256xf32, #tpu.memory_space<vmem>>, vector<1x256xf32>
    %482 = vector.shape_cast %481 : vector<1x256xf32> to vector<1x1x256xf32>
    %483 = arith.mulf %480, %482 : vector<1x1x256xf32>
    %c21 = arith.constant 21 : index
    %484 = memref.load %arg5[%c21] : memref<144xf32, #tpu.memory_space<smem>>
    %485 = vector.broadcast %484 : f32 to vector<1x1x256xf32>
    %486 = arith.mulf %485, %483 : vector<1x1x256xf32>
    %487 = arith.addf %467, %486 : vector<1x1x256xf32>
    %c57 = arith.constant 57 : index
    %488 = memref.load %arg5[%c57] : memref<144xf32, #tpu.memory_space<smem>>
    %489 = vector.broadcast %488 : f32 to vector<1x1x256xf32>
    %490 = arith.mulf %489, %483 : vector<1x1x256xf32>
    %491 = arith.addf %471, %490 : vector<1x1x256xf32>
    %c93 = arith.constant 93 : index
    %492 = memref.load %arg5[%c93] : memref<144xf32, #tpu.memory_space<smem>>
    %493 = vector.broadcast %492 : f32 to vector<1x1x256xf32>
    %494 = arith.mulf %493, %483 : vector<1x1x256xf32>
    %495 = arith.addf %475, %494 : vector<1x1x256xf32>
    %c129 = arith.constant 129 : index
    %496 = memref.load %arg5[%c129] : memref<144xf32, #tpu.memory_space<smem>>
    %497 = vector.broadcast %496 : f32 to vector<1x1x256xf32>
    %498 = arith.mulf %497, %483 : vector<1x1x256xf32>
    %499 = arith.addf %479, %498 : vector<1x1x256xf32>
    %c0_157 = arith.constant 0 : index
    %c2_158 = arith.constant 2 : index
    %c17_159 = arith.constant 17 : index
    %500 = vector.load %arg8[%c0_157, %c2_158, %c17_159] : memref<1x4x290xf32, #tpu.memory_space<vmem>>, vector<1x1x256xf32>
    %c1_160 = arith.constant 1 : index
    %c0_161 = arith.constant 0 : index
    %501 = vector.load %arg2[%c1_160, %c0_161] : memref<3x256xf32, #tpu.memory_space<vmem>>, vector<1x256xf32>
    %502 = vector.shape_cast %501 : vector<1x256xf32> to vector<1x1x256xf32>
    %503 = arith.mulf %500, %502 : vector<1x1x256xf32>
    %c22 = arith.constant 22 : index
    %504 = memref.load %arg5[%c22] : memref<144xf32, #tpu.memory_space<smem>>
    %505 = vector.broadcast %504 : f32 to vector<1x1x256xf32>
    %506 = arith.mulf %505, %503 : vector<1x1x256xf32>
    %507 = arith.addf %487, %506 : vector<1x1x256xf32>
    %c58 = arith.constant 58 : index
    %508 = memref.load %arg5[%c58] : memref<144xf32, #tpu.memory_space<smem>>
    %509 = vector.broadcast %508 : f32 to vector<1x1x256xf32>
    %510 = arith.mulf %509, %503 : vector<1x1x256xf32>
    %511 = arith.addf %491, %510 : vector<1x1x256xf32>
    %c94 = arith.constant 94 : index
    %512 = memref.load %arg5[%c94] : memref<144xf32, #tpu.memory_space<smem>>
    %513 = vector.broadcast %512 : f32 to vector<1x1x256xf32>
    %514 = arith.mulf %513, %503 : vector<1x1x256xf32>
    %515 = arith.addf %495, %514 : vector<1x1x256xf32>
    %c130 = arith.constant 130 : index
    %516 = memref.load %arg5[%c130] : memref<144xf32, #tpu.memory_space<smem>>
    %517 = vector.broadcast %516 : f32 to vector<1x1x256xf32>
    %518 = arith.mulf %517, %503 : vector<1x1x256xf32>
    %519 = arith.addf %499, %518 : vector<1x1x256xf32>
    %c0_162 = arith.constant 0 : index
    %c2_163 = arith.constant 2 : index
    %c18_164 = arith.constant 18 : index
    %520 = vector.load %arg8[%c0_162, %c2_163, %c18_164] : memref<1x4x290xf32, #tpu.memory_space<vmem>>, vector<1x1x256xf32>
    %c2_165 = arith.constant 2 : index
    %c0_166 = arith.constant 0 : index
    %521 = vector.load %arg2[%c2_165, %c0_166] : memref<3x256xf32, #tpu.memory_space<vmem>>, vector<1x256xf32>
    %522 = vector.shape_cast %521 : vector<1x256xf32> to vector<1x1x256xf32>
    %523 = arith.mulf %520, %522 : vector<1x1x256xf32>
    %c23 = arith.constant 23 : index
    %524 = memref.load %arg5[%c23] : memref<144xf32, #tpu.memory_space<smem>>
    %525 = vector.broadcast %524 : f32 to vector<1x1x256xf32>
    %526 = arith.mulf %525, %523 : vector<1x1x256xf32>
    %527 = arith.addf %507, %526 : vector<1x1x256xf32>
    %c59 = arith.constant 59 : index
    %528 = memref.load %arg5[%c59] : memref<144xf32, #tpu.memory_space<smem>>
    %529 = vector.broadcast %528 : f32 to vector<1x1x256xf32>
    %530 = arith.mulf %529, %523 : vector<1x1x256xf32>
    %531 = arith.addf %511, %530 : vector<1x1x256xf32>
    %c95 = arith.constant 95 : index
    %532 = memref.load %arg5[%c95] : memref<144xf32, #tpu.memory_space<smem>>
    %533 = vector.broadcast %532 : f32 to vector<1x1x256xf32>
    %534 = arith.mulf %533, %523 : vector<1x1x256xf32>
    %535 = arith.addf %515, %534 : vector<1x1x256xf32>
    %c131 = arith.constant 131 : index
    %536 = memref.load %arg5[%c131] : memref<144xf32, #tpu.memory_space<smem>>
    %537 = vector.broadcast %536 : f32 to vector<1x1x256xf32>
    %538 = arith.mulf %537, %523 : vector<1x1x256xf32>
    %539 = arith.addf %519, %538 : vector<1x1x256xf32>
    %c0_167 = arith.constant 0 : index
    %c2_168 = arith.constant 2 : index
    %c32_169 = arith.constant 32 : index
    %540 = vector.load %arg8[%c0_167, %c2_168, %c32_169] : memref<1x4x290xf32, #tpu.memory_space<vmem>>, vector<1x1x256xf32>
    %c0_170 = arith.constant 0 : index
    %c0_171 = arith.constant 0 : index
    %541 = vector.load %arg2[%c0_170, %c0_171] : memref<3x256xf32, #tpu.memory_space<vmem>>, vector<1x256xf32>
    %542 = vector.shape_cast %541 : vector<1x256xf32> to vector<1x1x256xf32>
    %543 = arith.mulf %540, %542 : vector<1x1x256xf32>
    %c24 = arith.constant 24 : index
    %544 = memref.load %arg5[%c24] : memref<144xf32, #tpu.memory_space<smem>>
    %545 = vector.broadcast %544 : f32 to vector<1x1x256xf32>
    %546 = arith.mulf %545, %543 : vector<1x1x256xf32>
    %547 = arith.addf %527, %546 : vector<1x1x256xf32>
    %c60 = arith.constant 60 : index
    %548 = memref.load %arg5[%c60] : memref<144xf32, #tpu.memory_space<smem>>
    %549 = vector.broadcast %548 : f32 to vector<1x1x256xf32>
    %550 = arith.mulf %549, %543 : vector<1x1x256xf32>
    %551 = arith.addf %531, %550 : vector<1x1x256xf32>
    %c96 = arith.constant 96 : index
    %552 = memref.load %arg5[%c96] : memref<144xf32, #tpu.memory_space<smem>>
    %553 = vector.broadcast %552 : f32 to vector<1x1x256xf32>
    %554 = arith.mulf %553, %543 : vector<1x1x256xf32>
    %555 = arith.addf %535, %554 : vector<1x1x256xf32>
    %c132 = arith.constant 132 : index
    %556 = memref.load %arg5[%c132] : memref<144xf32, #tpu.memory_space<smem>>
    %557 = vector.broadcast %556 : f32 to vector<1x1x256xf32>
    %558 = arith.mulf %557, %543 : vector<1x1x256xf32>
    %559 = arith.addf %539, %558 : vector<1x1x256xf32>
    %c0_172 = arith.constant 0 : index
    %c2_173 = arith.constant 2 : index
    %c33_174 = arith.constant 33 : index
    %560 = vector.load %arg8[%c0_172, %c2_173, %c33_174] : memref<1x4x290xf32, #tpu.memory_space<vmem>>, vector<1x1x256xf32>
    %c1_175 = arith.constant 1 : index
    %c0_176 = arith.constant 0 : index
    %561 = vector.load %arg2[%c1_175, %c0_176] : memref<3x256xf32, #tpu.memory_space<vmem>>, vector<1x256xf32>
    %562 = vector.shape_cast %561 : vector<1x256xf32> to vector<1x1x256xf32>
    %563 = arith.mulf %560, %562 : vector<1x1x256xf32>
    %c25 = arith.constant 25 : index
    %564 = memref.load %arg5[%c25] : memref<144xf32, #tpu.memory_space<smem>>
    %565 = vector.broadcast %564 : f32 to vector<1x1x256xf32>
    %566 = arith.mulf %565, %563 : vector<1x1x256xf32>
    %567 = arith.addf %547, %566 : vector<1x1x256xf32>
    %c61 = arith.constant 61 : index
    %568 = memref.load %arg5[%c61] : memref<144xf32, #tpu.memory_space<smem>>
    %569 = vector.broadcast %568 : f32 to vector<1x1x256xf32>
    %570 = arith.mulf %569, %563 : vector<1x1x256xf32>
    %571 = arith.addf %551, %570 : vector<1x1x256xf32>
    %c97 = arith.constant 97 : index
    %572 = memref.load %arg5[%c97] : memref<144xf32, #tpu.memory_space<smem>>
    %573 = vector.broadcast %572 : f32 to vector<1x1x256xf32>
    %574 = arith.mulf %573, %563 : vector<1x1x256xf32>
    %575 = arith.addf %555, %574 : vector<1x1x256xf32>
    %c133 = arith.constant 133 : index
    %576 = memref.load %arg5[%c133] : memref<144xf32, #tpu.memory_space<smem>>
    %577 = vector.broadcast %576 : f32 to vector<1x1x256xf32>
    %578 = arith.mulf %577, %563 : vector<1x1x256xf32>
    %579 = arith.addf %559, %578 : vector<1x1x256xf32>
    %c0_177 = arith.constant 0 : index
    %c2_178 = arith.constant 2 : index
    %c34_179 = arith.constant 34 : index
    %580 = vector.load %arg8[%c0_177, %c2_178, %c34_179] : memref<1x4x290xf32, #tpu.memory_space<vmem>>, vector<1x1x256xf32>
    %c2_180 = arith.constant 2 : index
    %c0_181 = arith.constant 0 : index
    %581 = vector.load %arg2[%c2_180, %c0_181] : memref<3x256xf32, #tpu.memory_space<vmem>>, vector<1x256xf32>
    %582 = vector.shape_cast %581 : vector<1x256xf32> to vector<1x1x256xf32>
    %583 = arith.mulf %580, %582 : vector<1x1x256xf32>
    %c26 = arith.constant 26 : index
    %584 = memref.load %arg5[%c26] : memref<144xf32, #tpu.memory_space<smem>>
    %585 = vector.broadcast %584 : f32 to vector<1x1x256xf32>
    %586 = arith.mulf %585, %583 : vector<1x1x256xf32>
    %587 = arith.addf %567, %586 : vector<1x1x256xf32>
    %c62 = arith.constant 62 : index
    %588 = memref.load %arg5[%c62] : memref<144xf32, #tpu.memory_space<smem>>
    %589 = vector.broadcast %588 : f32 to vector<1x1x256xf32>
    %590 = arith.mulf %589, %583 : vector<1x1x256xf32>
    %591 = arith.addf %571, %590 : vector<1x1x256xf32>
    %c98 = arith.constant 98 : index
    %592 = memref.load %arg5[%c98] : memref<144xf32, #tpu.memory_space<smem>>
    %593 = vector.broadcast %592 : f32 to vector<1x1x256xf32>
    %594 = arith.mulf %593, %583 : vector<1x1x256xf32>
    %595 = arith.addf %575, %594 : vector<1x1x256xf32>
    %c134 = arith.constant 134 : index
    %596 = memref.load %arg5[%c134] : memref<144xf32, #tpu.memory_space<smem>>
    %597 = vector.broadcast %596 : f32 to vector<1x1x256xf32>
    %598 = arith.mulf %597, %583 : vector<1x1x256xf32>
    %599 = arith.addf %579, %598 : vector<1x1x256xf32>
    %c0_182 = arith.constant 0 : index
    %c3_183 = arith.constant 3 : index
    %c0_184 = arith.constant 0 : index
    %600 = vector.load %arg8[%c0_182, %c3_183, %c0_184] : memref<1x4x290xf32, #tpu.memory_space<vmem>>, vector<1x1x256xf32>
    %c0_185 = arith.constant 0 : index
    %c0_186 = arith.constant 0 : index
    %601 = vector.load %arg2[%c0_185, %c0_186] : memref<3x256xf32, #tpu.memory_space<vmem>>, vector<1x256xf32>
    %602 = vector.shape_cast %601 : vector<1x256xf32> to vector<1x1x256xf32>
    %603 = arith.mulf %600, %602 : vector<1x1x256xf32>
    %c27 = arith.constant 27 : index
    %604 = memref.load %arg5[%c27] : memref<144xf32, #tpu.memory_space<smem>>
    %605 = vector.broadcast %604 : f32 to vector<1x1x256xf32>
    %606 = arith.mulf %605, %603 : vector<1x1x256xf32>
    %607 = arith.addf %587, %606 : vector<1x1x256xf32>
    %c63 = arith.constant 63 : index
    %608 = memref.load %arg5[%c63] : memref<144xf32, #tpu.memory_space<smem>>
    %609 = vector.broadcast %608 : f32 to vector<1x1x256xf32>
    %610 = arith.mulf %609, %603 : vector<1x1x256xf32>
    %611 = arith.addf %591, %610 : vector<1x1x256xf32>
    %c99 = arith.constant 99 : index
    %612 = memref.load %arg5[%c99] : memref<144xf32, #tpu.memory_space<smem>>
    %613 = vector.broadcast %612 : f32 to vector<1x1x256xf32>
    %614 = arith.mulf %613, %603 : vector<1x1x256xf32>
    %615 = arith.addf %595, %614 : vector<1x1x256xf32>
    %c135 = arith.constant 135 : index
    %616 = memref.load %arg5[%c135] : memref<144xf32, #tpu.memory_space<smem>>
    %617 = vector.broadcast %616 : f32 to vector<1x1x256xf32>
    %618 = arith.mulf %617, %603 : vector<1x1x256xf32>
    %619 = arith.addf %599, %618 : vector<1x1x256xf32>
    %c0_187 = arith.constant 0 : index
    %c3_188 = arith.constant 3 : index
    %c1_189 = arith.constant 1 : index
    %620 = vector.load %arg8[%c0_187, %c3_188, %c1_189] : memref<1x4x290xf32, #tpu.memory_space<vmem>>, vector<1x1x256xf32>
    %c1_190 = arith.constant 1 : index
    %c0_191 = arith.constant 0 : index
    %621 = vector.load %arg2[%c1_190, %c0_191] : memref<3x256xf32, #tpu.memory_space<vmem>>, vector<1x256xf32>
    %622 = vector.shape_cast %621 : vector<1x256xf32> to vector<1x1x256xf32>
    %623 = arith.mulf %620, %622 : vector<1x1x256xf32>
    %c28 = arith.constant 28 : index
    %624 = memref.load %arg5[%c28] : memref<144xf32, #tpu.memory_space<smem>>
    %625 = vector.broadcast %624 : f32 to vector<1x1x256xf32>
    %626 = arith.mulf %625, %623 : vector<1x1x256xf32>
    %627 = arith.addf %607, %626 : vector<1x1x256xf32>
    %c64 = arith.constant 64 : index
    %628 = memref.load %arg5[%c64] : memref<144xf32, #tpu.memory_space<smem>>
    %629 = vector.broadcast %628 : f32 to vector<1x1x256xf32>
    %630 = arith.mulf %629, %623 : vector<1x1x256xf32>
    %631 = arith.addf %611, %630 : vector<1x1x256xf32>
    %c100 = arith.constant 100 : index
    %632 = memref.load %arg5[%c100] : memref<144xf32, #tpu.memory_space<smem>>
    %633 = vector.broadcast %632 : f32 to vector<1x1x256xf32>
    %634 = arith.mulf %633, %623 : vector<1x1x256xf32>
    %635 = arith.addf %615, %634 : vector<1x1x256xf32>
    %c136 = arith.constant 136 : index
    %636 = memref.load %arg5[%c136] : memref<144xf32, #tpu.memory_space<smem>>
    %637 = vector.broadcast %636 : f32 to vector<1x1x256xf32>
    %638 = arith.mulf %637, %623 : vector<1x1x256xf32>
    %639 = arith.addf %619, %638 : vector<1x1x256xf32>
    %c0_192 = arith.constant 0 : index
    %c3_193 = arith.constant 3 : index
    %c2_194 = arith.constant 2 : index
    %640 = vector.load %arg8[%c0_192, %c3_193, %c2_194] : memref<1x4x290xf32, #tpu.memory_space<vmem>>, vector<1x1x256xf32>
    %c2_195 = arith.constant 2 : index
    %c0_196 = arith.constant 0 : index
    %641 = vector.load %arg2[%c2_195, %c0_196] : memref<3x256xf32, #tpu.memory_space<vmem>>, vector<1x256xf32>
    %642 = vector.shape_cast %641 : vector<1x256xf32> to vector<1x1x256xf32>
    %643 = arith.mulf %640, %642 : vector<1x1x256xf32>
    %c29 = arith.constant 29 : index
    %644 = memref.load %arg5[%c29] : memref<144xf32, #tpu.memory_space<smem>>
    %645 = vector.broadcast %644 : f32 to vector<1x1x256xf32>
    %646 = arith.mulf %645, %643 : vector<1x1x256xf32>
    %647 = arith.addf %627, %646 : vector<1x1x256xf32>
    %c65 = arith.constant 65 : index
    %648 = memref.load %arg5[%c65] : memref<144xf32, #tpu.memory_space<smem>>
    %649 = vector.broadcast %648 : f32 to vector<1x1x256xf32>
    %650 = arith.mulf %649, %643 : vector<1x1x256xf32>
    %651 = arith.addf %631, %650 : vector<1x1x256xf32>
    %c101 = arith.constant 101 : index
    %652 = memref.load %arg5[%c101] : memref<144xf32, #tpu.memory_space<smem>>
    %653 = vector.broadcast %652 : f32 to vector<1x1x256xf32>
    %654 = arith.mulf %653, %643 : vector<1x1x256xf32>
    %655 = arith.addf %635, %654 : vector<1x1x256xf32>
    %c137 = arith.constant 137 : index
    %656 = memref.load %arg5[%c137] : memref<144xf32, #tpu.memory_space<smem>>
    %657 = vector.broadcast %656 : f32 to vector<1x1x256xf32>
    %658 = arith.mulf %657, %643 : vector<1x1x256xf32>
    %659 = arith.addf %639, %658 : vector<1x1x256xf32>
    %c0_197 = arith.constant 0 : index
    %c3_198 = arith.constant 3 : index
    %c16_199 = arith.constant 16 : index
    %660 = vector.load %arg8[%c0_197, %c3_198, %c16_199] : memref<1x4x290xf32, #tpu.memory_space<vmem>>, vector<1x1x256xf32>
    %c0_200 = arith.constant 0 : index
    %c0_201 = arith.constant 0 : index
    %661 = vector.load %arg2[%c0_200, %c0_201] : memref<3x256xf32, #tpu.memory_space<vmem>>, vector<1x256xf32>
    %662 = vector.shape_cast %661 : vector<1x256xf32> to vector<1x1x256xf32>
    %663 = arith.mulf %660, %662 : vector<1x1x256xf32>
    %c30 = arith.constant 30 : index
    %664 = memref.load %arg5[%c30] : memref<144xf32, #tpu.memory_space<smem>>
    %665 = vector.broadcast %664 : f32 to vector<1x1x256xf32>
    %666 = arith.mulf %665, %663 : vector<1x1x256xf32>
    %667 = arith.addf %647, %666 : vector<1x1x256xf32>
    %c66 = arith.constant 66 : index
    %668 = memref.load %arg5[%c66] : memref<144xf32, #tpu.memory_space<smem>>
    %669 = vector.broadcast %668 : f32 to vector<1x1x256xf32>
    %670 = arith.mulf %669, %663 : vector<1x1x256xf32>
    %671 = arith.addf %651, %670 : vector<1x1x256xf32>
    %c102 = arith.constant 102 : index
    %672 = memref.load %arg5[%c102] : memref<144xf32, #tpu.memory_space<smem>>
    %673 = vector.broadcast %672 : f32 to vector<1x1x256xf32>
    %674 = arith.mulf %673, %663 : vector<1x1x256xf32>
    %675 = arith.addf %655, %674 : vector<1x1x256xf32>
    %c138 = arith.constant 138 : index
    %676 = memref.load %arg5[%c138] : memref<144xf32, #tpu.memory_space<smem>>
    %677 = vector.broadcast %676 : f32 to vector<1x1x256xf32>
    %678 = arith.mulf %677, %663 : vector<1x1x256xf32>
    %679 = arith.addf %659, %678 : vector<1x1x256xf32>
    %c0_202 = arith.constant 0 : index
    %c3_203 = arith.constant 3 : index
    %c17_204 = arith.constant 17 : index
    %680 = vector.load %arg8[%c0_202, %c3_203, %c17_204] : memref<1x4x290xf32, #tpu.memory_space<vmem>>, vector<1x1x256xf32>
    %c1_205 = arith.constant 1 : index
    %c0_206 = arith.constant 0 : index
    %681 = vector.load %arg2[%c1_205, %c0_206] : memref<3x256xf32, #tpu.memory_space<vmem>>, vector<1x256xf32>
    %682 = vector.shape_cast %681 : vector<1x256xf32> to vector<1x1x256xf32>
    %683 = arith.mulf %680, %682 : vector<1x1x256xf32>
    %c31 = arith.constant 31 : index
    %684 = memref.load %arg5[%c31] : memref<144xf32, #tpu.memory_space<smem>>
    %685 = vector.broadcast %684 : f32 to vector<1x1x256xf32>
    %686 = arith.mulf %685, %683 : vector<1x1x256xf32>
    %687 = arith.addf %667, %686 : vector<1x1x256xf32>
    %c67 = arith.constant 67 : index
    %688 = memref.load %arg5[%c67] : memref<144xf32, #tpu.memory_space<smem>>
    %689 = vector.broadcast %688 : f32 to vector<1x1x256xf32>
    %690 = arith.mulf %689, %683 : vector<1x1x256xf32>
    %691 = arith.addf %671, %690 : vector<1x1x256xf32>
    %c103 = arith.constant 103 : index
    %692 = memref.load %arg5[%c103] : memref<144xf32, #tpu.memory_space<smem>>
    %693 = vector.broadcast %692 : f32 to vector<1x1x256xf32>
    %694 = arith.mulf %693, %683 : vector<1x1x256xf32>
    %695 = arith.addf %675, %694 : vector<1x1x256xf32>
    %c139 = arith.constant 139 : index
    %696 = memref.load %arg5[%c139] : memref<144xf32, #tpu.memory_space<smem>>
    %697 = vector.broadcast %696 : f32 to vector<1x1x256xf32>
    %698 = arith.mulf %697, %683 : vector<1x1x256xf32>
    %699 = arith.addf %679, %698 : vector<1x1x256xf32>
    %c0_207 = arith.constant 0 : index
    %c3_208 = arith.constant 3 : index
    %c18_209 = arith.constant 18 : index
    %700 = vector.load %arg8[%c0_207, %c3_208, %c18_209] : memref<1x4x290xf32, #tpu.memory_space<vmem>>, vector<1x1x256xf32>
    %c2_210 = arith.constant 2 : index
    %c0_211 = arith.constant 0 : index
    %701 = vector.load %arg2[%c2_210, %c0_211] : memref<3x256xf32, #tpu.memory_space<vmem>>, vector<1x256xf32>
    %702 = vector.shape_cast %701 : vector<1x256xf32> to vector<1x1x256xf32>
    %703 = arith.mulf %700, %702 : vector<1x1x256xf32>
    %c32_212 = arith.constant 32 : index
    %704 = memref.load %arg5[%c32_212] : memref<144xf32, #tpu.memory_space<smem>>
    %705 = vector.broadcast %704 : f32 to vector<1x1x256xf32>
    %706 = arith.mulf %705, %703 : vector<1x1x256xf32>
    %707 = arith.addf %687, %706 : vector<1x1x256xf32>
    %c68 = arith.constant 68 : index
    %708 = memref.load %arg5[%c68] : memref<144xf32, #tpu.memory_space<smem>>
    %709 = vector.broadcast %708 : f32 to vector<1x1x256xf32>
    %710 = arith.mulf %709, %703 : vector<1x1x256xf32>
    %711 = arith.addf %691, %710 : vector<1x1x256xf32>
    %c104 = arith.constant 104 : index
    %712 = memref.load %arg5[%c104] : memref<144xf32, #tpu.memory_space<smem>>
    %713 = vector.broadcast %712 : f32 to vector<1x1x256xf32>
    %714 = arith.mulf %713, %703 : vector<1x1x256xf32>
    %715 = arith.addf %695, %714 : vector<1x1x256xf32>
    %c140 = arith.constant 140 : index
    %716 = memref.load %arg5[%c140] : memref<144xf32, #tpu.memory_space<smem>>
    %717 = vector.broadcast %716 : f32 to vector<1x1x256xf32>
    %718 = arith.mulf %717, %703 : vector<1x1x256xf32>
    %719 = arith.addf %699, %718 : vector<1x1x256xf32>
    %c0_213 = arith.constant 0 : index
    %c3_214 = arith.constant 3 : index
    %c32_215 = arith.constant 32 : index
    %720 = vector.load %arg8[%c0_213, %c3_214, %c32_215] : memref<1x4x290xf32, #tpu.memory_space<vmem>>, vector<1x1x256xf32>
    %c0_216 = arith.constant 0 : index
    %c0_217 = arith.constant 0 : index
    %721 = vector.load %arg2[%c0_216, %c0_217] : memref<3x256xf32, #tpu.memory_space<vmem>>, vector<1x256xf32>
    %722 = vector.shape_cast %721 : vector<1x256xf32> to vector<1x1x256xf32>
    %723 = arith.mulf %720, %722 : vector<1x1x256xf32>
    %c33_218 = arith.constant 33 : index
    %724 = memref.load %arg5[%c33_218] : memref<144xf32, #tpu.memory_space<smem>>
    %725 = vector.broadcast %724 : f32 to vector<1x1x256xf32>
    %726 = arith.mulf %725, %723 : vector<1x1x256xf32>
    %727 = arith.addf %707, %726 : vector<1x1x256xf32>
    %c69 = arith.constant 69 : index
    %728 = memref.load %arg5[%c69] : memref<144xf32, #tpu.memory_space<smem>>
    %729 = vector.broadcast %728 : f32 to vector<1x1x256xf32>
    %730 = arith.mulf %729, %723 : vector<1x1x256xf32>
    %731 = arith.addf %711, %730 : vector<1x1x256xf32>
    %c105 = arith.constant 105 : index
    %732 = memref.load %arg5[%c105] : memref<144xf32, #tpu.memory_space<smem>>
    %733 = vector.broadcast %732 : f32 to vector<1x1x256xf32>
    %734 = arith.mulf %733, %723 : vector<1x1x256xf32>
    %735 = arith.addf %715, %734 : vector<1x1x256xf32>
    %c141 = arith.constant 141 : index
    %736 = memref.load %arg5[%c141] : memref<144xf32, #tpu.memory_space<smem>>
    %737 = vector.broadcast %736 : f32 to vector<1x1x256xf32>
    %738 = arith.mulf %737, %723 : vector<1x1x256xf32>
    %739 = arith.addf %719, %738 : vector<1x1x256xf32>
    %c0_219 = arith.constant 0 : index
    %c3_220 = arith.constant 3 : index
    %c33_221 = arith.constant 33 : index
    %740 = vector.load %arg8[%c0_219, %c3_220, %c33_221] : memref<1x4x290xf32, #tpu.memory_space<vmem>>, vector<1x1x256xf32>
    %c1_222 = arith.constant 1 : index
    %c0_223 = arith.constant 0 : index
    %741 = vector.load %arg2[%c1_222, %c0_223] : memref<3x256xf32, #tpu.memory_space<vmem>>, vector<1x256xf32>
    %742 = vector.shape_cast %741 : vector<1x256xf32> to vector<1x1x256xf32>
    %743 = arith.mulf %740, %742 : vector<1x1x256xf32>
    %c34_224 = arith.constant 34 : index
    %744 = memref.load %arg5[%c34_224] : memref<144xf32, #tpu.memory_space<smem>>
    %745 = vector.broadcast %744 : f32 to vector<1x1x256xf32>
    %746 = arith.mulf %745, %743 : vector<1x1x256xf32>
    %747 = arith.addf %727, %746 : vector<1x1x256xf32>
    %c70 = arith.constant 70 : index
    %748 = memref.load %arg5[%c70] : memref<144xf32, #tpu.memory_space<smem>>
    %749 = vector.broadcast %748 : f32 to vector<1x1x256xf32>
    %750 = arith.mulf %749, %743 : vector<1x1x256xf32>
    %751 = arith.addf %731, %750 : vector<1x1x256xf32>
    %c106 = arith.constant 106 : index
    %752 = memref.load %arg5[%c106] : memref<144xf32, #tpu.memory_space<smem>>
    %753 = vector.broadcast %752 : f32 to vector<1x1x256xf32>
    %754 = arith.mulf %753, %743 : vector<1x1x256xf32>
    %755 = arith.addf %735, %754 : vector<1x1x256xf32>
    %c142 = arith.constant 142 : index
    %756 = memref.load %arg5[%c142] : memref<144xf32, #tpu.memory_space<smem>>
    %757 = vector.broadcast %756 : f32 to vector<1x1x256xf32>
    %758 = arith.mulf %757, %743 : vector<1x1x256xf32>
    %759 = arith.addf %739, %758 : vector<1x1x256xf32>
    %c0_225 = arith.constant 0 : index
    %c3_226 = arith.constant 3 : index
    %c34_227 = arith.constant 34 : index
    %760 = vector.load %arg8[%c0_225, %c3_226, %c34_227] : memref<1x4x290xf32, #tpu.memory_space<vmem>>, vector<1x1x256xf32>
    %c2_228 = arith.constant 2 : index
    %c0_229 = arith.constant 0 : index
    %761 = vector.load %arg2[%c2_228, %c0_229] : memref<3x256xf32, #tpu.memory_space<vmem>>, vector<1x256xf32>
    %762 = vector.shape_cast %761 : vector<1x256xf32> to vector<1x1x256xf32>
    %763 = arith.mulf %760, %762 : vector<1x1x256xf32>
    %c35 = arith.constant 35 : index
    %764 = memref.load %arg5[%c35] : memref<144xf32, #tpu.memory_space<smem>>
    %765 = vector.broadcast %764 : f32 to vector<1x1x256xf32>
    %766 = arith.mulf %765, %763 : vector<1x1x256xf32>
    %767 = arith.addf %747, %766 : vector<1x1x256xf32>
    %c71 = arith.constant 71 : index
    %768 = memref.load %arg5[%c71] : memref<144xf32, #tpu.memory_space<smem>>
    %769 = vector.broadcast %768 : f32 to vector<1x1x256xf32>
    %770 = arith.mulf %769, %763 : vector<1x1x256xf32>
    %771 = arith.addf %751, %770 : vector<1x1x256xf32>
    %c107 = arith.constant 107 : index
    %772 = memref.load %arg5[%c107] : memref<144xf32, #tpu.memory_space<smem>>
    %773 = vector.broadcast %772 : f32 to vector<1x1x256xf32>
    %774 = arith.mulf %773, %763 : vector<1x1x256xf32>
    %775 = arith.addf %755, %774 : vector<1x1x256xf32>
    %c143 = arith.constant 143 : index
    %776 = memref.load %arg5[%c143] : memref<144xf32, #tpu.memory_space<smem>>
    %777 = vector.broadcast %776 : f32 to vector<1x1x256xf32>
    %778 = arith.mulf %777, %763 : vector<1x1x256xf32>
    %779 = arith.addf %759, %778 : vector<1x1x256xf32>
    %c0_230 = arith.constant 0 : index
    %780 = memref.load %arg6[%c0_230] : memref<4xf32, #tpu.memory_space<smem>>
    %781 = vector.broadcast %780 : f32 to vector<1x1x256xf32>
    %782 = arith.addf %767, %781 : vector<1x1x256xf32>
    %c0_231 = arith.constant 0 : index
    %c0_232 = arith.constant 0 : index
    %c0_233 = arith.constant 0 : index
    %783 = vector.load %arg1[%c0_231, %c0_232, %c0_233] : memref<1x4x256xf32, #tpu.memory_space<vmem>>, vector<1x1x256xf32>
    %784 = arith.addf %782, %783 : vector<1x1x256xf32>
    %c0_234 = arith.constant 0 : index
    %c0_235 = arith.constant 0 : index
    %c0_236 = arith.constant 0 : index
    %785 = vector.load %arg7[%c0_234, %c0_235, %c0_236] : memref<1x4x256xf32, #tpu.memory_space<vmem>>, vector<1x1x256xf32>
    tpu.vector_store %arg7[%c0_234, %c0_235, %c0_236], %784 {strides = array<i32>} : memref<1x4x256xf32, #tpu.memory_space<vmem>>, vector<1x1x256xf32>,
    %c1_237 = arith.constant 1 : index
    %786 = memref.load %arg6[%c1_237] : memref<4xf32, #tpu.memory_space<smem>>
    %787 = vector.broadcast %786 : f32 to vector<1x1x256xf32>
    %788 = arith.addf %771, %787 : vector<1x1x256xf32>
    %c0_238 = arith.constant 0 : index
    %c1_239 = arith.constant 1 : index
    %c0_240 = arith.constant 0 : index
    %789 = vector.load %arg1[%c0_238, %c1_239, %c0_240] : memref<1x4x256xf32, #tpu.memory_space<vmem>>, vector<1x1x256xf32>
    %790 = arith.addf %788, %789 : vector<1x1x256xf32>
    %c0_241 = arith.constant 0 : index
    %c1_242 = arith.constant 1 : index
    %c0_243 = arith.constant 0 : index
    %791 = vector.load %arg7[%c0_241, %c1_242, %c0_243] : memref<1x4x256xf32, #tpu.memory_space<vmem>>, vector<1x1x256xf32>
    tpu.vector_store %arg7[%c0_241, %c1_242, %c0_243], %790 {strides = array<i32>} : memref<1x4x256xf32, #tpu.memory_space<vmem>>, vector<1x1x256xf32>,
    %c2_244 = arith.constant 2 : index
    %792 = memref.load %arg6[%c2_244] : memref<4xf32, #tpu.memory_space<smem>>
    %793 = vector.broadcast %792 : f32 to vector<1x1x256xf32>
    %794 = arith.addf %775, %793 : vector<1x1x256xf32>
    %c0_245 = arith.constant 0 : index
    %c2_246 = arith.constant 2 : index
    %c0_247 = arith.constant 0 : index
    %795 = vector.load %arg1[%c0_245, %c2_246, %c0_247] : memref<1x4x256xf32, #tpu.memory_space<vmem>>, vector<1x1x256xf32>
    %796 = arith.addf %794, %795 : vector<1x1x256xf32>
    %c0_248 = arith.constant 0 : index
    %c2_249 = arith.constant 2 : index
    %c0_250 = arith.constant 0 : index
    %797 = vector.load %arg7[%c0_248, %c2_249, %c0_250] : memref<1x4x256xf32, #tpu.memory_space<vmem>>, vector<1x1x256xf32>
    tpu.vector_store %arg7[%c0_248, %c2_249, %c0_250], %796 {strides = array<i32>} : memref<1x4x256xf32, #tpu.memory_space<vmem>>, vector<1x1x256xf32>,
    %c3_251 = arith.constant 3 : index
    %798 = memref.load %arg6[%c3_251] : memref<4xf32, #tpu.memory_space<smem>>
    %799 = vector.broadcast %798 : f32 to vector<1x1x256xf32>
    %800 = arith.addf %779, %799 : vector<1x1x256xf32>
    %c0_252 = arith.constant 0 : index
    %c3_253 = arith.constant 3 : index
    %c0_254 = arith.constant 0 : index
    %801 = vector.load %arg1[%c0_252, %c3_253, %c0_254] : memref<1x4x256xf32, #tpu.memory_space<vmem>>, vector<1x1x256xf32>
    %802 = arith.addf %800, %801 : vector<1x1x256xf32>
    %c0_255 = arith.constant 0 : index
    %c3_256 = arith.constant 3 : index
    %c0_257 = arith.constant 0 : index
    %803 = vector.load %arg7[%c0_255, %c3_256, %c0_257] : memref<1x4x256xf32, #tpu.memory_space<vmem>>, vector<1x1x256xf32>
    tpu.vector_store %arg7[%c0_255, %c3_256, %c0_257], %802 {strides = array<i32>} : memref<1x4x256xf32, #tpu.memory_space<vmem>>, vector<1x1x256xf32>,
    return
  }
  func.func @transform_0(%arg0: i32) -> (i32, i32, i32) {
    %c0_i32 = arith.constant 0 : i32
    %c0_i32_0 = arith.constant 0 : i32
    %c0_i32_1 = arith.constant 0 : i32
    return %arg0, %c0_i32, %c0_i32_0 : i32, i32, i32
  }
  func.func @transform_1(%arg0: i32) -> (i32, i32) {
    %c0_i32 = arith.constant 0 : i32
    %c0_i32_0 = arith.constant 0 : i32
    %c0_i32_1 = arith.constant 0 : i32
    return %c0_i32, %c0_i32_0 : i32, i32
  }
  func.func @transform_2(%arg0: i32) -> i32 {
    %c0_i32 = arith.constant 0 : i32
    %c0_i32_0 = arith.constant 0 : i32
    return %c0_i32 : i32
  }
  func.func @transform_3(%arg0: i32) -> i32 {
    %c0_i32 = arith.constant 0 : i32
    %c0_i32_0 = arith.constant 0 : i32
    return %c0_i32 : i32
  }
  func.func @transform_4(%arg0: i32) -> i32 {
    %c0_i32 = arith.constant 0 : i32
    %c0_i32_0 = arith.constant 0 : i32
    return %c0_i32 : i32
  }
  func.func @transform_5(%arg0: i32) -> i32 {
    %c0_i32 = arith.constant 0 : i32
    %c0_i32_0 = arith.constant 0 : i32
    return %c0_i32 : i32
  }
  func.func @transform_6(%arg0: i32) -> (i32, i32, i32) {
    %c0_i32 = arith.constant 0 : i32
    %c0_i32_0 = arith.constant 0 : i32
    %c0_i32_1 = arith.constant 0 : i32
    return %arg0, %c0_i32, %c0_i32_0 : i32, i32, i32
  }
}

</mosaic_0001>

<llo_original>
// kernel: residual_conv.2
$region0: #{residual_conv.2}
  #allocation0 [shape = 'u32[]', space=smem, size = 0x4, offset = 0x4, fixed_abs, tag = 'smem constant byte address 0x4 - core index']
  #allocation1 [shape = 'u32[144,128]{1,0:T(1,128)}', space=vmem, size = 0x12000, scoped, tag = 'internal scratch']
  %s0 = inlined_call_operand.vmem [shape: f32[2,4,256], index: 0, kind: input, shape index: {}]
  %s1 = inlined_call_operand.vmem [shape: f32[2,4,1], index: 1, kind: output, shape index: {0}]
  %s2 = inlined_call_operand.vmem [shape: f32[2,4,1], index: 2, kind: output, shape index: {1}]
  %3 = xla_tuple %s1, %s2
  %s4 = sld [smem:[#allocation0]]
  $region45: #{residual_conv.2} parent=0
    _
  %s6 = ssub.s32 1, %s4
  %s7 = scalar_select 0, %s6, %s4
  loop: start=0, step=1, limit=4
  $region2: #{residual_conv.2} parent=0 // loop_pre_header
    _
  $region3: #{residual_conv.2} parent=0 // loop_header
    %s9 = sphi 0, %s13
    %p10 = scmp.ge.s32.totalorder %s9, 4
    %s19 = sphi 0, %s21
    %s22 = sphi 0, %s19
    %s23 = sphi 0, %s22
    %s39 = sphi 0, %s23
    %s45 = sphi 0, %s47
    %s48 = sphi 0, %s45
    %s49 = sphi 0, %s48
    %s65 = sphi 0, %s49
    %s71 = sphi 0, %s73
    %s74 = sphi 0, %s71
    %s75 = sphi 0, %s74
    %s91 = sphi 0, %s75
  $region4: #{residual_conv.2} parent=0 // loop_header_branch
    %12 = sbr.rel (%p10) target = $region8
  $region5: #{residual_conv.2} parent=0 // loop_body
    %s14 = ssub.s32 %s9, 1
    %s15 = ssub.s32 %s9, 2
    %s16 = sadd.s32 %s9, 1
    %s17 = ssub.s32 %s9, %s16
    %p18 = scmp.eq.s32.totalorder %s17, 0
    %s20 = sadd.s32 %s19, 1
    %s21 = scalar_select %p18, %s19, %s20
    %p24 = pneg %p18
    %p25 = scmp.eq.s32.totalorder %s9, 1
    %p26 = por %p24, %p25
    %p27 = scmp.ne.s32.totalorder %s19, %s22
    %p28 = scmp.eq.s32.totalorder %s9, 0
    %p29 = por %p27, %p28
    %p30 = scmp.ne.s32.totalorder %s19, %s22
    %p31 = scmp.eq.s32.totalorder %s14, 1
    %p32 = por %p30, %p31
    %p33 = scmp.ne.s32.totalorder %s22, %s23
    %p34 = scmp.eq.s32.totalorder %s14, 0
    %p35 = por %p33, %p34
    %p36 = scmp.ne.s32.totalorder %s22, %s23
    %p37 = scmp.eq.s32.totalorder %s15, 1
    %p38 = por %p36, %p37
    %p40 = scmp.ne.s32.totalorder %s23, %s39
    %p41 = scmp.eq.s32.totalorder %s15, 0
    %p42 = por %p40, %p41
    %s43 = ssub.s32 %s9, %s16
    %p44 = scmp.eq.s32.totalorder %s43, 0
    %s46 = sadd.s32 %s45, 1
    %s47 = scalar_select %p44, %s45, %s46
    %p50 = pneg %p44
    %p51 = scmp.eq.s32.totalorder %s9, 1
    %p52 = por %p50, %p51
    %p53 = scmp.ne.s32.totalorder %s45, %s48
    %p54 = scmp.eq.s32.totalorder %s9, 0
    %p55 = por %p53, %p54
    %p56 = scmp.ne.s32.totalorder %s45, %s48
    %p57 = scmp.eq.s32.totalorder %s14, 1
    %p58 = por %p56, %p57
    %p59 = scmp.ne.s32.totalorder %s48, %s49
    %p60 = scmp.eq.s32.totalorder %s14, 0
    %p61 = por %p59, %p60
    %p62 = scmp.ne.s32.totalorder %s48, %s49
    %p63 = scmp.eq.s32.totalorder %s15, 1
    %p64 = por %p62, %p63
    %p66 = scmp.ne.s32.totalorder %s49, %s65
    %p67 = scmp.eq.s32.totalorder %s15, 0
    %p68 = por %p66, %p67
    %s69 = ssub.s32 %s9, %s16
    %p70 = scmp.eq.s32.totalorder %s69, 0
    %s72 = sadd.s32 %s71, 1
    %s73 = scalar_select %p70, %s71, %s72
    %p76 = pneg %p70
    %p77 = scmp.eq.s32.totalorder %s9, 1
    %p78 = por %p76, %p77
    %p79 = scmp.ne.s32.totalorder %s71, %s74
    %p80 = scmp.eq.s32.totalorder %s9, 0
    %p81 = por %p79, %p80
    %p82 = scmp.ne.s32.totalorder %s71, %s74
    %p83 = scmp.eq.s32.totalorder %s14, 1
    %p84 = por %p82, %p83
    %p85 = scmp.ne.s32.totalorder %s74, %s75
    %p86 = scmp.eq.s32.totalorder %s14, 0
    %p87 = por %p85, %p86
    %p88 = scmp.ne.s32.totalorder %s74, %s75
    %p89 = scmp.eq.s32.totalorder %s15, 1
    %p90 = por %p88, %p89
    %p92 = scmp.ne.s32.totalorder %s75, %s91
    %p93 = scmp.eq.s32.totalorder %s15, 0
    %p94 = por %p92, %p93
    %p95 = scmp.le.s32.totalorder 1, %s9
    %p96 = scmp.lt.s32.totalorder %s9, 3
    %p97 = pnand %p95, %p96
    %p98 = pneg %p97
    // Predicated region
    $region9: #{residual_conv.2} parent=5 // pred_check
      _
    $region10: #{residual_conv.2} parent=5 // pred_check_branch
      %100 = sbr.rel (%p97) target = $region12
    $region11: #{residual_conv.2} parent=5 // pred_region
      %s101 = ssub.s32 %s9, 1
    $region12: #{residual_conv.2} parent=5 // pred_fallthru
      _
    %p102 = scmp.lt.s32.totalorder %s9, 2
    // Predicated region
    $region13: #{residual_conv.2} parent=5 // pred_check
      %p103 = pneg %p102
    $region14: #{residual_conv.2} parent=5 // pred_check_branch
      %105 = sbr.rel (%p103) target = $region16
    $region15: #{residual_conv.2} parent=5 // pred_region
      // Predicated region
      $region17: #{residual_conv.2} parent=15 // pred_check
        %p106 = pneg %p29
      $region18: #{residual_conv.2} parent=15 // pred_check_branch
        %108 = sbr.rel (%p106) target = $region20
      $region19: #{residual_conv.2} parent=15 // pred_region
        %p109 = scmp.lt.s32.totalorder %s9, 1
        %s110 = scalar_select %p109, %s9, 1
        %s111 = smul.addr %s110, 2
        %s112 = smul.addr %s111, 4
        %s113 = scalar_lea.vmem %s0, %s112
      $region20: #{residual_conv.2} parent=15 // pred_fallthru
        _
    $region16: #{residual_conv.2} parent=5 // pred_fallthru
      _
    %p114 = scmp.le.s32.totalorder 1, %s9
    %p115 = scmp.lt.s32.totalorder %s9, 3
    %p116 = pnand %p114, %p115
    %p117 = pneg %p116
    // Predicated region
    $region21: #{residual_conv.2} parent=5 // pred_check
      _
    $region22: #{residual_conv.2} parent=5 // pred_check_branch
      %119 = sbr.rel (%p116) target = $region24
    $region23: #{residual_conv.2} parent=5 // pred_region
      %s120 = ssub.s32 %s9, 1
      %p121 = scmp.lt.s32.totalorder %s14, 1
      %s122 = scalar_select %p121, %s14, 1
      %s123 = smul.addr %s122, 2
      %s124 = smul.addr %s123, 4
      %s125 = scalar_lea.vmem %s0, %s124
      %p126 = pneg %p35
      %p127 = pneg %p32
      %p128 = pneg %p61
      %p129 = pneg %p58
      %p130 = scmp.lt.s32.totalorder %s14, 1
      %s131 = scalar_select %p130, %s14, 1
      %s132 = smul.addr %s131, 4
      %s133 = scalar_lea.vmem %s1, %s132
      %p134 = pneg %p87
      %p135 = pneg %p84
      %p136 = scmp.lt.s32.totalorder %s14, 1
      %s137 = scalar_select %p136, %s14, 1
      %s138 = smul.addr %s137, 4
      %s139 = scalar_lea.vmem %s2, %s138
      %p140 = scmp.lt.s32.totalorder %s14, 1
      %s141 = scalar_select %p140, %s14, 1
      %s142 = smul.addr %s141, 2
      %s143 = smul.addr %s142, 4
      %s144 = scalar_lea.vmem %s0, %s143
      %p145 = scmp.lt.s32.totalorder %s14, 1
      %s146 = scalar_select %p145, %s14, 1
      %s147 = smul.addr %s146, 4
      %s148 = scalar_lea.vmem %s1, %s147
      %p149 = scmp.lt.s32.totalorder %s14, 1
      %s150 = scalar_select %p149, %s14, 1
      %s151 = smul.addr %s150, 4
      %s152 = scalar_lea.vmem %s2, %s151
      %v153 = vld [vmem:[%s144] sm:$0xff]
      %v155 = vcombine.high %v153, %v153
      %vm157 = vcmask 1043456
      %v158 = vsel %vm157, %v153, 0.0
      %v159 = vsel %vm157, %v155, 0.0
      %v160 = vadd.f32 %v158, %v159
      %161 = vadd.xlane.f32.xlu0 %v160
      %v162 = vpop.xlane.xlu0 %161
      %v163 = vadd.f32 %v162, 0.0
      %vm164 = vcmask 3072
      %165 = vst.msk [vmem:[%s148] sm:$0xf] %vm164, %v163
      %v166 = vmul.f32 %v153, %v153
      %v168 = vcombine.high %v166, %v166
      %v170 = vsel %vm157, %v166, 0.0
      %v171 = vsel %vm157, %v168, 0.0
      %v172 = vadd.f32 %v170, %v171
      %173 = vadd.xlane.f32.xlu0 %v172
      %v174 = vpop.xlane.xlu0 %173
      %v175 = vadd.f32 %v174, 0.0
      %176 = vst.msk [vmem:[%s152] sm:$0xf] %vm164, %v175
      %p177 = scmp.lt.s32.totalorder %s14, 1
      %s178 = scalar_select %p177, %s14, 1
      %s179 = smul.addr %s178, 4
      %s180 = scalar_lea.vmem %s1, %s179
      %p181 = scmp.lt.s32.totalorder %s14, 1
      %s182 = scalar_select %p181, %s14, 1
      %s183 = smul.addr %s182, 4
      %s184 = scalar_lea.vmem %s2, %s183
      // Predicated region
      $region25: #{residual_conv.2} parent=23 // pred_check
        %p185 = pneg %p58
      $region26: #{residual_conv.2} parent=23 // pred_check_branch
        %187 = sbr.rel (%p185) target = $region28
      $region27: #{residual_conv.2} parent=23 // pred_region
        _
      $region28: #{residual_conv.2} parent=23 // pred_fallthru
        _
      // Predicated region
      $region29: #{residual_conv.2} parent=23 // pred_check
        %p188 = pneg %p84
      $region30: #{residual_conv.2} parent=23 // pred_check_branch
        %190 = sbr.rel (%p188) target = $region32
      $region31: #{residual_conv.2} parent=23 // pred_region
        _
      $region32: #{residual_conv.2} parent=23 // pred_fallthru
        _
    $region24: #{residual_conv.2} parent=5 // pred_fallthru
      _
    %p191 = scmp.le.s32.totalorder 2, %s9
    // Predicated region
    $region33: #{residual_conv.2} parent=5 // pred_check
      %p192 = pneg %p191
    $region34: #{residual_conv.2} parent=5 // pred_check_branch
      %194 = sbr.rel (%p192) target = $region36
    $region35: #{residual_conv.2} parent=5 // pred_region
      %s195 = ssub.s32 %s9, 2
      // Predicated region
      $region37: #{residual_conv.2} parent=35 // pred_check
        %p196 = pneg %p64
      $region38: #{residual_conv.2} parent=35 // pred_check_branch
        %198 = sbr.rel (%p196) target = $region40
      $region39: #{residual_conv.2} parent=35 // pred_region
        %p199 = scmp.lt.s32.totalorder %s15, 1
        %s200 = scalar_select %p199, %s15, 1
        %s201 = smul.addr %s200, 4
        %s202 = scalar_lea.vmem %s1, %s201
      $region40: #{residual_conv.2} parent=35 // pred_fallthru
        _
      // Predicated region
      $region41: #{residual_conv.2} parent=35 // pred_check
        %p203 = pneg %p90
      $region42: #{residual_conv.2} parent=35 // pred_check_branch
        %205 = sbr.rel (%p203) target = $region44
      $region43: #{residual_conv.2} parent=35 // pred_region
        %p206 = scmp.lt.s32.totalorder %s15, 1
        %s207 = scalar_select %p206, %s15, 1
        %s208 = smul.addr %s207, 4
        %s209 = scalar_lea.vmem %s2, %s208
      $region44: #{residual_conv.2} parent=35 // pred_fallthru
        _
    $region36: #{residual_conv.2} parent=5 // pred_fallthru
      _
  $region6: #{residual_conv.2} parent=0 // loop_footer
    %s13 = sadd.s32 1, %s9
  $region7: #{residual_conv.2} parent=0 // loop_footer_branch
    %8 = sbr.rel target = $region3
  $region8: #{residual_conv.2} parent=0 // loop_exit
    _

// kernel: residual_conv.3
$region0: #{residual_conv.3}
  #allocation0 [shape = 'u32[]', space=smem, size = 0x4, offset = 0x4, fixed_abs, tag = 'smem constant byte address 0x4 - core index']
  #allocation1 [shape = 'u32[144,128]{1,0:T(1,128)}', space=vmem, size = 0x12000, scoped, tag = 'internal scratch']
  #allocation2 [shape = 'f32[1,4,290]{2,1,0:T(4,128)}', space=vmem, size = 0x1800, scoped, tag = 'scratch operand']
  %s0 = inlined_call_operand.vmem [shape: f32[2,4,256], index: 0, kind: input, shape index: {}]
  %s1 = inlined_call_operand.vmem [shape: f32[3,256], index: 1, kind: input, shape index: {}]
  %s2 = inlined_call_operand.vmem [shape: f32[4], index: 2, kind: input, shape index: {}]
  %s3 = inlined_call_operand.vmem [shape: f32[4], index: 3, kind: input, shape index: {}]
  %s4 = inlined_call_operand.vmem [shape: f32[144], index: 4, kind: input, shape index: {}]
  %s5 = inlined_call_operand.vmem [shape: f32[4], index: 5, kind: input, shape index: {}]
  %s6 = inlined_call_operand.vmem [shape: f32[2,4,256], index: 6, kind: output, shape index: {}]
  %s7 = sld [smem:[#allocation0]]
  $region73: #{residual_conv.3} parent=0
    _
  %s9 = ssub.s32 1, %s7
  %s10 = scalar_select 0, %s9, %s7
  $region1: #{residual_conv.3} parent=0
    #allocation3 [shape = 'u8[512]{0}', space=smem, size = 0x200, scoped, tag = 'input window, operand 2, single buffered']
    #allocation4 [shape = 's32[2]{0}', space=sflag, size = 0x8, scoped, tag = 'scoped memory for residual_conv.3']
    #allocation5 [shape = 'u8[512]{0}', space=smem, size = 0x200, scoped, tag = 'input window, operand 3, single buffered']
    #allocation6 [shape = 's32[1]{0}', space=sflag, size = 0x4, scoped, tag = 'scoped memory for residual_conv.3']
    #allocation7 [shape = 'u8[1024]{0}', space=smem, size = 0x400, scoped, tag = 'input window, operand 4, single buffered']
    #allocation8 [shape = 'u8[512]{0}', space=smem, size = 0x200, scoped, tag = 'input window, operand 5, single buffered']
    #allocation9 [shape = 's32[1]{0}', space=sflag, size = 0x4, scoped, tag = 'scoped memory for residual_conv.3']
    %11 = vsyncpa [#allocation4], 0
    %12 = vsyncpa [#allocation6], 0
    %13 = vsyncpa [#allocation9], 0
    loop: start=0, step=1, limit=4
    $region2: #{residual_conv.3} parent=1 // loop_pre_header
      _
    $region3: #{residual_conv.3} parent=1 // loop_header
      %s15 = sphi 0, %s19
      %p16 = scmp.ge.s32.totalorder %s15, 4
      %s25 = sphi 0, %s27
      %s28 = sphi 0, %s25
      %s29 = sphi 0, %s28
      %s45 = sphi 0, %s29
      %s49 = sphi 0, %s49
      %s51 = sphi 0, %s49
      %s52 = sphi 0, %s51
      %s66 = sphi 0, %s52
      %s70 = sphi 0, %s70
      %s72 = sphi 0, %s70
      %s73 = sphi 0, %s72
      %s87 = sphi 0, %s73
      %s91 = sphi 0, %s91
      %s93 = sphi 0, %s91
      %s94 = sphi 0, %s93
      %s108 = sphi 0, %s94
      %s112 = sphi 0, %s112
      %s114 = sphi 0, %s112
      %s115 = sphi 0, %s114
      %s129 = sphi 0, %s115
      %s133 = sphi 0, %s133
      %s135 = sphi 0, %s133
      %s136 = sphi 0, %s135
      %s150 = sphi 0, %s136
      %s156 = sphi 0, %s158
      %s159 = sphi 0, %s156
      %s160 = sphi 0, %s159
      %s176 = sphi 0, %s160
    $region4: #{residual_conv.3} parent=1 // loop_header_branch
      %18 = sbr.rel (%p16) target = $region8
    $region5: #{residual_conv.3} parent=1 // loop_body
      %s20 = ssub.s32 %s15, 1
      %s21 = ssub.s32 %s15, 2
      %s22 = sadd.s32 %s15, 1
      %s23 = ssub.s32 %s15, %s22
      %p24 = scmp.eq.s32.totalorder %s23, 0
      %s26 = sadd.s32 %s25, 1
      %s27 = scalar_select %p24, %s25, %s26
      %p30 = pneg %p24
      %p31 = scmp.eq.s32.totalorder %s15, 1
      %p32 = por %p30, %p31
      %p33 = scmp.ne.s32.totalorder %s25, %s28
      %p34 = scmp.eq.s32.totalorder %s15, 0
      %p35 = por %p33, %p34
      %p36 = scmp.ne.s32.totalorder %s25, %s28
      %p37 = scmp.eq.s32.totalorder %s20, 1
      %p38 = por %p36, %p37
      %p39 = scmp.ne.s32.totalorder %s28, %s29
      %p40 = scmp.eq.s32.totalorder %s20, 0
      %p41 = por %p39, %p40
      %p42 = scmp.ne.s32.totalorder %s28, %s29
      %p43 = scmp.eq.s32.totalorder %s21, 1
      %p44 = por %p42, %p43
      %p46 = scmp.ne.s32.totalorder %s29, %s45
      %p47 = scmp.eq.s32.totalorder %s21, 0
      %p48 = por %p46, %p47
      %s50 = sadd.s32 %s49, 1
      %p53 = scmp.eq.s32.totalorder %s15, 1
      %p54 = scmp.ne.s32.totalorder %s49, %s51
      %p55 = scmp.eq.s32.totalorder %s15, 0
      %p56 = por %p54, %p55
      %p57 = scmp.ne.s32.totalorder %s49, %s51
      %p58 = scmp.eq.s32.totalorder %s20, 1
      %p59 = por %p57, %p58
      %p60 = scmp.ne.s32.totalorder %s51, %s52
      %p61 = scmp.eq.s32.totalorder %s20, 0
      %p62 = por %p60, %p61
      %p63 = scmp.ne.s32.totalorder %s51, %s52
      %p64 = scmp.eq.s32.totalorder %s21, 1
      %p65 = por %p63, %p64
      %p67 = scmp.ne.s32.totalorder %s52, %s66
      %p68 = scmp.eq.s32.totalorder %s21, 0
      %p69 = por %p67, %p68
      %s71 = sadd.s32 %s70, 1
      %p74 = scmp.eq.s32.totalorder %s15, 1
      %p75 = scmp.ne.s32.totalorder %s70, %s72
      %p76 = scmp.eq.s32.totalorder %s15, 0
      %p77 = por %p75, %p76
      %p78 = scmp.ne.s32.totalorder %s70, %s72
      %p79 = scmp.eq.s32.totalorder %s20, 1
      %p80 = por %p78, %p79
      %p81 = scmp.ne.s32.totalorder %s72, %s73
      %p82 = scmp.eq.s32.totalorder %s20, 0
      %p83 = por %p81, %p82
      %p84 = scmp.ne.s32.totalorder %s72, %s73
      %p85 = scmp.eq.s32.totalorder %s21, 1
      %p86 = por %p84, %p85
      %p88 = scmp.ne.s32.totalorder %s73, %s87
      %p89 = scmp.eq.s32.totalorder %s21, 0
      %p90 = por %p88, %p89
      %s92 = sadd.s32 %s91, 1
      %p95 = scmp.eq.s32.totalorder %s15, 1
      %p96 = scmp.ne.s32.totalorder %s91, %s93
      %p97 = scmp.eq.s32.totalorder %s15, 0
      %p98 = por %p96, %p97
      %p99 = scmp.ne.s32.totalorder %s91, %s93
      %p100 = scmp.eq.s32.totalorder %s20, 1
      %p101 = por %p99, %p100
      %p102 = scmp.ne.s32.totalorder %s93, %s94
      %p103 = scmp.eq.s32.totalorder %s20, 0
      %p104 = por %p102, %p103
      %p105 = scmp.ne.s32.totalorder %s93, %s94
      %p106 = scmp.eq.s32.totalorder %s21, 1
      %p107 = por %p105, %p106
      %p109 = scmp.ne.s32.totalorder %s94, %s108
      %p110 = scmp.eq.s32.totalorder %s21, 0
      %p111 = por %p109, %p110
      %s113 = sadd.s32 %s112, 1
      %p116 = scmp.eq.s32.totalorder %s15, 1
      %p117 = scmp.ne.s32.totalorder %s112, %s114
      %p118 = scmp.eq.s32.totalorder %s15, 0
      %p119 = por %p117, %p118
      %p120 = scmp.ne.s32.totalorder %s112, %s114
      %p121 = scmp.eq.s32.totalorder %s20, 1
      %p122 = por %p120, %p121
      %p123 = scmp.ne.s32.totalorder %s114, %s115
      %p124 = scmp.eq.s32.totalorder %s20, 0
      %p125 = por %p123, %p124
      %p126 = scmp.ne.s32.totalorder %s114, %s115
      %p127 = scmp.eq.s32.totalorder %s21, 1
      %p128 = por %p126, %p127
      %p130 = scmp.ne.s32.totalorder %s115, %s129
      %p131 = scmp.eq.s32.totalorder %s21, 0
      %p132 = por %p130, %p131
      %s134 = sadd.s32 %s133, 1
      %p137 = scmp.eq.s32.totalorder %s15, 1
      %p138 = scmp.ne.s32.totalorder %s133, %s135
      %p139 = scmp.eq.s32.totalorder %s15, 0
      %p140 = por %p138, %p139
      %p141 = scmp.ne.s32.totalorder %s133, %s135
      %p142 = scmp.eq.s32.totalorder %s20, 1
      %p143 = por %p141, %p142
      %p144 = scmp.ne.s32.totalorder %s135, %s136
      %p145 = scmp.eq.s32.totalorder %s20, 0
      %p146 = por %p144, %p145
      %p147 = scmp.ne.s32.totalorder %s135, %s136
      %p148 = scmp.eq.s32.totalorder %s21, 1
      %p149 = por %p147, %p148
      %p151 = scmp.ne.s32.totalorder %s136, %s150
      %p152 = scmp.eq.s32.totalorder %s21, 0
      %p153 = por %p151, %p152
      %s154 = ssub.s32 %s15, %s22
      %p155 = scmp.eq.s32.totalorder %s154, 0
      %s157 = sadd.s32 %s156, 1
      %s158 = scalar_select %p155, %s156, %s157
      %p161 = pneg %p155
      %p162 = scmp.eq.s32.totalorder %s15, 1
      %p163 = por %p161, %p162
      %p164 = scmp.ne.s32.totalorder %s156, %s159
      %p165 = scmp.eq.s32.totalorder %s15, 0
      %p166 = por %p164, %p165
      %p167 = scmp.ne.s32.totalorder %s156, %s159
      %p168 = scmp.eq.s32.totalorder %s20, 1
      %p169 = por %p167, %p168
      %p170 = scmp.ne.s32.totalorder %s159, %s160
      %p171 = scmp.eq.s32.totalorder %s20, 0
      %p172 = por %p170, %p171
      %p173 = scmp.ne.s32.totalorder %s159, %s160
      %p174 = scmp.eq.s32.totalorder %s21, 1
      %p175 = por %p173, %p174
      %p177 = scmp.ne.s32.totalorder %s160, %s176
      %p178 = scmp.eq.s32.totalorder %s21, 0
      %p179 = por %p177, %p178
      %p180 = scmp.le.s32.totalorder 1, %s15
      %p181 = scmp.lt.s32.totalorder %s15, 3
      %p182 = pnand %p180, %p181
      %p183 = pneg %p182
      // Predicated region
      $region9: #{residual_conv.3} parent=5 // pred_check
        _
      $region10: #{residual_conv.3} parent=5 // pred_check_branch
        %185 = sbr.rel (%p182) target = $region12
      $region11: #{residual_conv.3} parent=5 // pred_region
        %s186 = ssub.s32 %s15, 1
        // Predicated region
        $region13: #{residual_conv.3} parent=11 // pred_check
          %p187 = pneg %p62
        $region14: #{residual_conv.3} parent=11 // pred_check_branch
          %189 = sbr.rel (%p187) target = $region16
        $region15: #{residual_conv.3} parent=11 // pred_region
          _
        $region16: #{residual_conv.3} parent=11 // pred_fallthru
          _
        // Predicated region
        $region17: #{residual_conv.3} parent=11 // pred_check
          %p190 = pneg %p83
        $region18: #{residual_conv.3} parent=11 // pred_check_branch
          %192 = sbr.rel (%p190) target = $region20
        $region19: #{residual_conv.3} parent=11 // pred_region
          %s194 = ssub.s32 16, 16
          %195 = vsyncadd [#allocation4], %s194
          %s197 = sshll.u32 %s2, 4
          %s198 = int_to_ptr.vmem [resolvable:$true] %s197
          %200 = dma.vmem_to_smem %s198, 16, [#allocation3], [#allocation4]
        $region20: #{residual_conv.3} parent=11 // pred_fallthru
          _
        // Predicated region
        $region21: #{residual_conv.3} parent=11 // pred_check
          %p201 = pneg %p104
        $region22: #{residual_conv.3} parent=11 // pred_check_branch
          %203 = sbr.rel (%p201) target = $region24
        $region23: #{residual_conv.3} parent=11 // pred_region
          %s205 = ssub.s32 16, 16
          %206 = vsyncadd [#allocation6], %s205
          %s208 = sshll.u32 %s3, 4
          %s209 = int_to_ptr.vmem [resolvable:$true] %s208
          %211 = dma.vmem_to_smem %s209, 16, [#allocation5], [#allocation6]
        $region24: #{residual_conv.3} parent=11 // pred_fallthru
          _
        // Predicated region
        $region25: #{residual_conv.3} parent=11 // pred_check
          %p212 = pneg %p125
        $region26: #{residual_conv.3} parent=11 // pred_check_branch
          %214 = sbr.rel (%p212) target = $region28
        $region27: #{residual_conv.3} parent=11 // pred_region
          %s216 = ssub.s32 32, 32
          %217 = vsyncadd [#allocation6], %s216
          %s219 = sshll.u32 %s4, 4
          %s220 = int_to_ptr.vmem [resolvable:$true] %s219
          %222 = dma.vmem_to_smem %s220, 32, [#allocation7], [#allocation6]
        $region28: #{residual_conv.3} parent=11 // pred_fallthru
          _
        // Predicated region
        $region29: #{residual_conv.3} parent=11 // pred_check
          %p223 = pneg %p146
        $region30: #{residual_conv.3} parent=11 // pred_check_branch
          %225 = sbr.rel (%p223) target = $region32
        $region31: #{residual_conv.3} parent=11 // pred_region
          %s227 = ssub.s32 16, 16
          %228 = vsyncadd [#allocation9], %s227
          %s230 = sshll.u32 %s5, 4
          %s231 = int_to_ptr.vmem [resolvable:$true] %s230
          %233 = dma.vmem_to_smem %s231, 16, [#allocation8], [#allocation9]
        $region32: #{residual_conv.3} parent=11 // pred_fallthru
          _
      $region12: #{residual_conv.3} parent=5 // pred_fallthru
        _
      %p234 = scmp.lt.s32.totalorder %s15, 2
      // Predicated region
      $region33: #{residual_conv.3} parent=5 // pred_check
        %p235 = pneg %p234
      $region34: #{residual_conv.3} parent=5 // pred_check_branch
        %237 = sbr.rel (%p235) target = $region36
      $region35: #{residual_conv.3} parent=5 // pred_region
        // Predicated region
        $region37: #{residual_conv.3} parent=35 // pred_check
          %p238 = pneg %p35
        $region38: #{residual_conv.3} parent=35 // pred_check_branch
          %240 = sbr.rel (%p238) target = $region40
        $region39: #{residual_conv.3} parent=35 // pred_region
          %p241 = scmp.lt.s32.totalorder %s15, 1
          %s242 = scalar_select %p241, %s15, 1
          %s243 = smul.addr %s242, 2
          %s244 = smul.addr %s243, 4
          %s245 = scalar_lea.vmem %s0, %s244
        $region40: #{residual_conv.3} parent=35 // pred_fallthru
          _
      $region36: #{residual_conv.3} parent=5 // pred_fallthru
        _
      %p246 = scmp.le.s32.totalorder 1, %s15
      %p247 = scmp.lt.s32.totalorder %s15, 3
      %p248 = pnand %p246, %p247
      %p249 = pneg %p248
      // Predicated region
      $region41: #{residual_conv.3} parent=5 // pred_check
        _
      $region42: #{residual_conv.3} parent=5 // pred_check_branch
        %251 = sbr.rel (%p248) target = $region44
      $region43: #{residual_conv.3} parent=5 // pred_region
        %s252 = ssub.s32 %s15, 1
        // Predicated region
        $region45: #{residual_conv.3} parent=43 // pred_check
          %p253 = pneg %p83
        $region46: #{residual_conv.3} parent=43 // pred_check_branch
          %255 = sbr.rel (%p253) target = $region48
        $region47: #{residual_conv.3} parent=43 // pred_region
          %256 = dma.done [#allocation4], 16
        $region48: #{residual_conv.3} parent=43 // pred_fallthru
          _
        // Predicated region
        $region49: #{residual_conv.3} parent=43 // pred_check
          %p257 = pneg %p104
        $region50: #{residual_conv.3} parent=43 // pred_check_branch
          %259 = sbr.rel (%p257) target = $region52
        $region51: #{residual_conv.3} parent=43 // pred_region
          %260 = dma.done [#allocation6], 16
        $region52: #{residual_conv.3} parent=43 // pred_fallthru
          _
        // Predicated region
        $region53: #{residual_conv.3} parent=43 // pred_check
          %p261 = pneg %p125
        $region54: #{residual_conv.3} parent=43 // pred_check_branch
          %263 = sbr.rel (%p261) target = $region56
        $region55: #{residual_conv.3} parent=43 // pred_region
          %264 = dma.done [#allocation6], 32
        $region56: #{residual_conv.3} parent=43 // pred_fallthru
          _
        // Predicated region
        $region57: #{residual_conv.3} parent=43 // pred_check
          %p265 = pneg %p146
        $region58: #{residual_conv.3} parent=43 // pred_check_branch
          %267 = sbr.rel (%p265) target = $region60
        $region59: #{residual_conv.3} parent=43 // pred_region
          %268 = dma.done [#allocation9], 16
        $region60: #{residual_conv.3} parent=43 // pred_fallthru
          _
        %269 = sfence
        %p270 = scmp.lt.s32.totalorder %s20, 1
        %s271 = scalar_select %p270, %s20, 1
        %s272 = smul.addr %s271, 2
        %s273 = smul.addr %s272, 4
        %s274 = scalar_lea.vmem %s0, %s273
        %p275 = pneg %p41
        %p276 = pneg %p38
        %p277 = pneg %p62
        %p278 = pneg %p59
        %p279 = pneg %p83
        %p280 = pneg %p80
        %p281 = pneg %p104
        %p282 = pneg %p101
        %p283 = pneg %p125
        %p284 = pneg %p122
        %p285 = pneg %p146
        %p286 = pneg %p143
        %p287 = pneg %p172
        %p288 = pneg %p169
        %p289 = scmp.lt.s32.totalorder %s20, 1
        %s290 = scalar_select %p289, %s20, 1
        %s291 = smul.addr %s290, 2
        %s292 = smul.addr %s291, 4
        %s293 = scalar_lea.vmem %s6, %s292
        %p294 = scmp.lt.s32.totalorder %s20, 1
        %s295 = scalar_select %p294, %s20, 1
        %s296 = smul.addr %s295, 2
        %s297 = smul.addr %s296, 4
        %s298 = scalar_lea.vmem %s0, %s297
        %p299 = scmp.lt.s32.totalorder %s20, 1
        %s300 = scalar_select %p299, %s20, 1
        %s301 = smul.addr %s300, 2
        %s302 = smul.addr %s301, 4
        %s303 = scalar_lea.vmem %s6, %s302
        %vm304 = vcmask 134144
        %305 = vst.msk [vmem:[#allocation2] sm:$0xf] %vm304, 0.0
        %vm306 = vcmask 273544
        %307 = vst.msk [vmem:[#allocation2 + $0x8] sm:$0xf] %vm306, 0.0
        %v308 = vld [vmem:[%s298] ss:$4 sm:$0x3]
        %s309 = sld [smem:[#allocation3]]
        %v310 = vstv %s309
        %v311 = vmul.f32 %v308, %v310
        %s312 = sld [smem:[#allocation5]]
        %v313 = vstv %s312
        %v314 = vadd.f32 %v311, %v313
        %vm315 = vcmp.gt.f32.partialorder %v314, 0.0
        %v316 = vmul.f32 %v314, 0.01
        %v317 = vsel %vm315, %v314, %v316
        %319 = vrot.lane.b32.xlu0 %v317, 17
        %v320 = vpop.permute.xlu0 %319
        %v321 = vrot.slane %v320, 7
        %vm322 = vcmask 138240
        %v323 = vsel %vm322, %v321, %v320
        %v325 = vlaneseq
        %vm326 = vcmp.ge.s32.totalorder %v325, 17
        %vm327 = vcmp.lt.s32.totalorder %v325, 273
        %vm328 = vmand %vm326, %vm327
        %329 = vst.msk [vmem:[#allocation2] ss:$4 sm:$0x7] %vm328, %v323
        %s330 = scalar_lea.vmem %s298, 1
        %v331 = vld [vmem:[%s330] ss:$4 sm:$0x3]
        %s332 = sld [smem:[#allocation3 + $0x1]]
        %v333 = vstv %s332
        %v334 = vmul.f32 %v331, %v333
        %s335 = sld [smem:[#allocation5 + $0x1]]
        %v336 = vstv %s335
        %v337 = vadd.f32 %v334, %v336
        %vm338 = vcmp.gt.f32.partialorder %v337, 0.0
        %v339 = vmul.f32 %v337, 0.01
        %v340 = vsel %vm338, %v337, %v339
        %342 = vrot.lane.b32.xlu0 %v340, 17
        %v343 = vpop.permute.xlu0 %342
        %v344 = vrot.slane %v343, 7
        %v345 = vsel %vm322, %v344, %v343
        %s347 = scalar_lea.vmem [#allocation2], 1
        %348 = vst.msk [vmem:[%s347] ss:$4 sm:$0x7] %vm328, %v345
        %s349 = scalar_lea.vmem %s298, 2
        %v350 = vld [vmem:[%s349] ss:$4 sm:$0x3]
        %s351 = sld [smem:[#allocation3 + $0x2]]
        %v352 = vstv %s351
        %v353 = vmul.f32 %v350, %v352
        %s354 = sld [smem:[#allocation5 + $0x2]]
        %v355 = vstv %s354
        %v356 = vadd.f32 %v353, %v355
        %vm357 = vcmp.gt.f32.partialorder %v356, 0.0
        %v358 = vmul.f32 %v356, 0.01
        %v359 = vsel %vm357, %v356, %v358
        %361 = vrot.lane.b32.xlu0 %v359, 17
        %v362 = vpop.permute.xlu0 %361
        %v363 = vrot.slane %v362, 7
        %v364 = vsel %vm322, %v363, %v362
        %s366 = scalar_lea.vmem [#allocation2], 2
        %367 = vst.msk [vmem:[%s366] ss:$4 sm:$0x7] %vm328, %v364
        %s368 = scalar_lea.vmem %s298, 3
        %v369 = vld [vmem:[%s368] ss:$4 sm:$0x3]
        %s370 = sld [smem:[#allocation3 + $0x3]]
        %v371 = vstv %s370
        %v372 = vmul.f32 %v369, %v371
        %s373 = sld [smem:[#allocation5 + $0x3]]
        %v374 = vstv %s373
        %v375 = vadd.f32 %v372, %v374
        %vm376 = vcmp.gt.f32.partialorder %v375, 0.0
        %v377 = vmul.f32 %v375, 0.01
        %v378 = vsel %vm376, %v375, %v377
        %380 = vrot.lane.b32.xlu0 %v378, 17
        %v381 = vpop.permute.xlu0 %380
        %v382 = vrot.slane %v381, 7
        %v383 = vsel %vm322, %v382, %v381
        %s385 = scalar_lea.vmem [#allocation2], 3
        %386 = vst.msk [vmem:[%s385] ss:$4 sm:$0x7] %vm328, %v383
        %v387 = vld [vmem:[#allocation2] ss:$4 sm:$0x3]
        %v388 = vld [vmem:[%s1] ss:$4 sm:$0x3]
        %v389 = vmul.f32 %v387, %v388
        %s390 = sld [smem:[#allocation7]]
        %v391 = vstv %s390
        %v392 = vmul.f32 %v391, %v389
        %v393 = vadd.f32 %v392, 0.0
        %s394 = sld [smem:[#allocation7 + $0x24]]
        %v395 = vstv %s394
        %v396 = vmul.f32 %v395, %v389
        %v397 = vadd.f32 %v396, 0.0
        %s398 = sld [smem:[#allocation7 + $0x48]]
        %v399 = vstv %s398
        %v400 = vmul.f32 %v399, %v389
        %v401 = vadd.f32 %v400, 0.0
        %s402 = sld [smem:[#allocation7 + $0x6c]]
        %v403 = vstv %s402
        %v404 = vmul.f32 %v403, %v389
        %v405 = vadd.f32 %v404, 0.0
        %v406 = vld [vmem:[#allocation2] ss:$4 sm:$0x7]
        %s407 = scalar_lea.vmem %s1, 1
        %v408 = vld [vmem:[%s407] ss:$4 sm:$0x3]
        %410 = vrot.lane.b32.xlu0 %v408, 1
        %v411 = vpop.permute.xlu0 %410
        %v412 = vrot.slane %v411, 7
        %vm413 = vcmask 7168
        %v414 = vsel %vm413, %v412, %v411
        %v416 = vmul.f32 %v406, %v414
        %s417 = sld [smem:[#allocation7 + $0x1]]
        %v418 = vstv %s417
        %v419 = vmul.f32 %v418, %v416
        %421 = vrot.lane.b32.xlu0 %v419, 127
        %v422 = vpop.permute.xlu0 %421
        %v423 = vrot.slane %v422, 1
        %vm424 = vcmask 1039360
        %v425 = vsel %vm424, %v422, %v423
        %v427 = vadd.f32 %v393, %v425
        %s428 = sld [smem:[#allocation7 + $0x25]]
        %v429 = vstv %s428
        %v430 = vmul.f32 %v429, %v416
        %432 = vrot.lane.b32.xlu0 %v430, 127
        %v433 = vpop.permute.xlu0 %432
        %v434 = vrot.slane %v433, 1
        %v435 = vsel %vm424, %v433, %v434
        %v437 = vadd.f32 %v397, %v435
        %s438 = sld [smem:[#allocation7 + $0x49]]
        %v439 = vstv %s438
        %v440 = vmul.f32 %v439, %v416
        %442 = vrot.lane.b32.xlu0 %v440, 127
        %v443 = vpop.permute.xlu0 %442
        %v444 = vrot.slane %v443, 1
        %v445 = vsel %vm424, %v443, %v444
        %v447 = vadd.f32 %v401, %v445
        %s448 = sld [smem:[#allocation7 + $0x6d]]
        %v449 = vstv %s448
        %v450 = vmul.f32 %v449, %v416
        %452 = vrot.lane.b32.xlu0 %v450, 127
        %v453 = vpop.permute.xlu0 %452
        %v454 = vrot.slane %v453, 1
        %v455 = vsel %vm424, %v453, %v454
        %v457 = vadd.f32 %v405, %v455
        %s458 = scalar_lea.vmem %s1, 2
        %v459 = vld [vmem:[%s458] ss:$4 sm:$0x3]
        %461 = vrot.lane.b32.xlu0 %v459, 2
        %v462 = vpop.permute.xlu0 %461
        %v463 = vrot.slane %v462, 7
        %vm464 = vcmask 15360
        %v465 = vsel %vm464, %v463, %v462
        %v467 = vmul.f32 %v406, %v465
        %s468 = sld [smem:[#allocation7 + $0x2]]
        %v469 = vstv %s468
        %v470 = vmul.f32 %v469, %v467
        %472 = vrot.lane.b32.xlu0 %v470, 126
        %v473 = vpop.permute.xlu0 %472
        %v474 = vrot.slane %v473, 1
        %vm475 = vcmask 1031168
        %v476 = vsel %vm475, %v473, %v474
        %v478 = vadd.f32 %v427, %v476
        %s479 = sld [smem:[#allocation7 + $0x26]]
        %v480 = vstv %s479
        %v481 = vmul.f32 %v480, %v467
        %483 = vrot.lane.b32.xlu0 %v481, 126
        %v484 = vpop.permute.xlu0 %483
        %v485 = vrot.slane %v484, 1
        %v486 = vsel %vm475, %v484, %v485
        %v488 = vadd.f32 %v437, %v486
        %s489 = sld [smem:[#allocation7 + $0x4a]]
        %v490 = vstv %s489
        %v491 = vmul.f32 %v490, %v467
        %493 = vrot.lane.b32.xlu0 %v491, 126
        %v494 = vpop.permute.xlu0 %493
        %v495 = vrot.slane %v494, 1
        %v496 = vsel %vm475, %v494, %v495
        %v498 = vadd.f32 %v447, %v496
        %s499 = sld [smem:[#allocation7 + $0x6e]]
        %v500 = vstv %s499
        %v501 = vmul.f32 %v500, %v467
        %503 = vrot.lane.b32.xlu0 %v501, 126
        %v504 = vpop.permute.xlu0 %503
        %v505 = vrot.slane %v504, 1
        %v506 = vsel %vm475, %v504, %v505
        %v508 = vadd.f32 %v457, %v506
        %510 = vrot.lane.b32.xlu0 %v388, 16
        %v511 = vpop.permute.xlu0 %510
        %v512 = vrot.slane %v511, 7
        %vm513 = vcmask 130048
        %v514 = vsel %vm513, %v512, %v511
        %v516 = vmul.f32 %v406, %v514
        %s517 = sld [smem:[#allocation7 + $0x3]]
        %v518 = vstv %s517
        %v519 = vmul.f32 %v518, %v516
        %521 = vrot.lane.b32.xlu0 %v519, 112
        %v522 = vpop.permute.xlu0 %521
        %v523 = vrot.slane %v522, 1
        %vm524 = vcmask 916480
        %v525 = vsel %vm524, %v522, %v523
        %v527 = vadd.f32 %v478, %v525
        %s528 = sld [smem:[#allocation7 + $0x27]]
        %v529 = vstv %s528
        %v530 = vmul.f32 %v529, %v516
        %532 = vrot.lane.b32.xlu0 %v530, 112
        %v533 = vpop.permute.xlu0 %532
        %v534 = vrot.slane %v533, 1
        %v535 = vsel %vm524, %v533, %v534
        %v537 = vadd.f32 %v488, %v535
        %s538 = sld [smem:[#allocation7 + $0x4b]]
        %v539 = vstv %s538
        %v540 = vmul.f32 %v539, %v516
        %542 = vrot.lane.b32.xlu0 %v540, 112
        %v543 = vpop.permute.xlu0 %542
        %v544 = vrot.slane %v543, 1
        %v545 = vsel %vm524, %v543, %v544
        %v547 = vadd.f32 %v498, %v545
        %s548 = sld [smem:[#allocation7 + $0x6f]]
        %v549 = vstv %s548
        %v550 = vmul.f32 %v549, %v516
        %552 = vrot.lane.b32.xlu0 %v550, 112
        %v553 = vpop.permute.xlu0 %552
        %v554 = vrot.slane %v553, 1
        %v555 = vsel %vm524, %v553, %v554
        %v557 = vadd.f32 %v508, %v555
        %558 = vrot.lane.b32.xlu0 %v408, 17
        %v559 = vpop.permute.xlu0 %558
        %v560 = vrot.slane %v559, 7
        %v561 = vsel %vm322, %v560, %v559
        %v563 = vmul.f32 %v406, %v561
        %s564 = sld [smem:[#allocation7 + $0x4]]
        %v565 = vstv %s564
        %v566 = vmul.f32 %v565, %v563
        %568 = vrot.lane.b32.xlu0 %v566, 111
        %v569 = vpop.permute.xlu0 %568
        %v570 = vrot.slane %v569, 1
        %vm571 = vcmask 908288
        %v572 = vsel %vm571, %v569, %v570
        %v574 = vadd.f32 %v527, %v572
        %s575 = sld [smem:[#allocation7 + $0x28]]
        %v576 = vstv %s575
        %v577 = vmul.f32 %v576, %v563
        %579 = vrot.lane.b32.xlu0 %v577, 111
        %v580 = vpop.permute.xlu0 %579
        %v581 = vrot.slane %v580, 1
        %v582 = vsel %vm571, %v580, %v581
        %v584 = vadd.f32 %v537, %v582
        %s585 = sld [smem:[#allocation7 + $0x4c]]
        %v586 = vstv %s585
        %v587 = vmul.f32 %v586, %v563
        %589 = vrot.lane.b32.xlu0 %v587, 111
        %v590 = vpop.permute.xlu0 %589
        %v591 = vrot.slane %v590, 1
        %v592 = vsel %vm571, %v590, %v591
        %v594 = vadd.f32 %v547, %v592
        %s595 = sld [smem:[#allocation7 + $0x70]]
        %v596 = vstv %s595
        %v597 = vmul.f32 %v596, %v563
        %599 = vrot.lane.b32.xlu0 %v597, 111
        %v600 = vpop.permute.xlu0 %599
        %v601 = vrot.slane %v600, 1
        %v602 = vsel %vm571, %v600, %v601
        %v604 = vadd.f32 %v557, %v602
        %605 = vrot.lane.b32.xlu0 %v459, 18
        %v606 = vpop.permute.xlu0 %605
        %v607 = vrot.slane %v606, 7
        %vm608 = vcmask 146432
        %v609 = vsel %vm608, %v607, %v606
        %v611 = vmul.f32 %v406, %v609
        %s612 = sld [smem:[#allocation7 + $0x5]]
        %v613 = vstv %s612
        %v614 = vmul.f32 %v613, %v611
        %616 = vrot.lane.b32.xlu0 %v614, 110
        %v617 = vpop.permute.xlu0 %616
        %v618 = vrot.slane %v617, 1
        %vm619 = vcmask 900096
        %v620 = vsel %vm619, %v617, %v618
        %v622 = vadd.f32 %v574, %v620
        %s623 = sld [smem:[#allocation7 + $0x29]]
        %v624 = vstv %s623
        %v625 = vmul.f32 %v624, %v611
        %627 = vrot.lane.b32.xlu0 %v625, 110
        %v628 = vpop.permute.xlu0 %627
        %v629 = vrot.slane %v628, 1
        %v630 = vsel %vm619, %v628, %v629
        %v632 = vadd.f32 %v584, %v630
        %s633 = sld [smem:[#allocation7 + $0x4d]]
        %v634 = vstv %s633
        %v635 = vmul.f32 %v634, %v611
        %637 = vrot.lane.b32.xlu0 %v635, 110
        %v638 = vpop.permute.xlu0 %637
        %v639 = vrot.slane %v638, 1
        %v640 = vsel %vm619, %v638, %v639
        %v642 = vadd.f32 %v594, %v640
        %s643 = sld [smem:[#allocation7 + $0x71]]
        %v644 = vstv %s643
        %v645 = vmul.f32 %v644, %v611
        %647 = vrot.lane.b32.xlu0 %v645, 110
        %v648 = vpop.permute.xlu0 %647
        %v649 = vrot.slane %v648, 1
        %v650 = vsel %vm619, %v648, %v649
        %v652 = vadd.f32 %v604, %v650
        %653 = vrot.lane.b32.xlu0 %v388, 32
        %v654 = vpop.permute.xlu0 %653
        %v655 = vrot.slane %v654, 7
        %vm656 = vcmask 261120
        %v657 = vsel %vm656, %v655, %v654
        %v659 = vmul.f32 %v406, %v657
        %s660 = sld [smem:[#allocation7 + $0x6]]
        %v661 = vstv %s660
        %v662 = vmul.f32 %v661, %v659
        %664 = vrot.lane.b32.xlu0 %v662, 96
        %v665 = vpop.permute.xlu0 %664
        %v666 = vrot.slane %v665, 1
        %vm667 = vcmask 785408
        %v668 = vsel %vm667, %v665, %v666
        %v670 = vadd.f32 %v622, %v668
        %s671 = sld [smem:[#allocation7 + $0x2a]]
        %v672 = vstv %s671
        %v673 = vmul.f32 %v672, %v659
        %675 = vrot.lane.b32.xlu0 %v673, 96
        %v676 = vpop.permute.xlu0 %675
        %v677 = vrot.slane %v676, 1
        %v678 = vsel %vm667, %v676, %v677
        %v680 = vadd.f32 %v632, %v678
        %s681 = sld [smem:[#allocation7 + $0x4e]]
        %v682 = vstv %s681
        %v683 = vmul.f32 %v682, %v659
        %685 = vrot.lane.b32.xlu0 %v683, 96
        %v686 = vpop.permute.xlu0 %685
        %v687 = vrot.slane %v686, 1
        %v688 = vsel %vm667, %v686, %v687
        %v690 = vadd.f32 %v642, %v688
        %s691 = sld [smem:[#allocation7 + $0x72]]
        %v692 = vstv %s691
        %v693 = vmul.f32 %v692, %v659
        %695 = vrot.lane.b32.xlu0 %v693, 96
        %v696 = vpop.permute.xlu0 %695
        %v697 = vrot.slane %v696, 1
        %v698 = vsel %vm667, %v696, %v697
        %v700 = vadd.f32 %v652, %v698
        %701 = vrot.lane.b32.xlu0 %v408, 33
        %v702 = vpop.permute.xlu0 %701
        %v703 = vrot.slane %v702, 7
        %vm704 = vcmask 269312
        %v705 = vsel %vm704, %v703, %v702
        %v707 = vmul.f32 %v406, %v705
        %s708 = sld [smem:[#allocation7 + $0x7]]
        %v709 = vstv %s708
        %v710 = vmul.f32 %v709, %v707
        %712 = vrot.lane.b32.xlu0 %v710, 95
        %v713 = vpop.permute.xlu0 %712
        %v714 = vrot.slane %v713, 1
        %vm715 = vcmask 777216
        %v716 = vsel %vm715, %v713, %v714
        %v718 = vadd.f32 %v670, %v716
        %s719 = sld [smem:[#allocation7 + $0x2b]]
        %v720 = vstv %s719
        %v721 = vmul.f32 %v720, %v707
        %723 = vrot.lane.b32.xlu0 %v721, 95
        %v724 = vpop.permute.xlu0 %723
        %v725 = vrot.slane %v724, 1
        %v726 = vsel %vm715, %v724, %v725
        %v728 = vadd.f32 %v680, %v726
        %s729 = sld [smem:[#allocation7 + $0x4f]]
        %v730 = vstv %s729
        %v731 = vmul.f32 %v730, %v707
        %733 = vrot.lane.b32.xlu0 %v731, 95
        %v734 = vpop.permute.xlu0 %733
        %v735 = vrot.slane %v734, 1
        %v736 = vsel %vm715, %v734, %v735
        %v738 = vadd.f32 %v690, %v736
        %s739 = sld [smem:[#allocation7 + $0x73]]
        %v740 = vstv %s739
        %v741 = vmul.f32 %v740, %v707
        %743 = vrot.lane.b32.xlu0 %v741, 95
        %v744 = vpop.permute.xlu0 %743
        %v745 = vrot.slane %v744, 1
        %v746 = vsel %vm715, %v744, %v745
        %v748 = vadd.f32 %v700, %v746
        %749 = vrot.lane.b32.xlu0 %v459, 34
        %v750 = vpop.permute.xlu0 %749
        %v751 = vrot.slane %v750, 7
        %vm752 = vcmask 277504
        %v753 = vsel %vm752, %v751, %v750
        %v755 = vmul.f32 %v406, %v753
        %s756 = sld [smem:[#allocation7 + $0x8]]
        %v757 = vstv %s756
        %v758 = vmul.f32 %v757, %v755
        %760 = vrot.lane.b32.xlu0 %v758, 94
        %v761 = vpop.permute.xlu0 %760
        %v762 = vrot.slane %v761, 1
        %vm763 = vcmask 769024
        %v764 = vsel %vm763, %v761, %v762
        %v766 = vadd.f32 %v718, %v764
        %s767 = sld [smem:[#allocation7 + $0x2c]]
        %v768 = vstv %s767
        %v769 = vmul.f32 %v768, %v755
        %771 = vrot.lane.b32.xlu0 %v769, 94
        %v772 = vpop.permute.xlu0 %771
        %v773 = vrot.slane %v772, 1
        %v774 = vsel %vm763, %v772, %v773
        %v776 = vadd.f32 %v728, %v774
        %s777 = sld [smem:[#allocation7 + $0x50]]
        %v778 = vstv %s777
        %v779 = vmul.f32 %v778, %v755
        %781 = vrot.lane.b32.xlu0 %v779, 94
        %v782 = vpop.permute.xlu0 %781
        %v783 = vrot.slane %v782, 1
        %v784 = vsel %vm763, %v782, %v783
        %v786 = vadd.f32 %v738, %v784
        %s787 = sld [smem:[#allocation7 + $0x74]]
        %v788 = vstv %s787
        %v789 = vmul.f32 %v788, %v755
        %791 = vrot.lane.b32.xlu0 %v789, 94
        %v792 = vpop.permute.xlu0 %791
        %v793 = vrot.slane %v792, 1
        %v794 = vsel %vm763, %v792, %v793
        %v796 = vadd.f32 %v748, %v794
        %v797 = vld [vmem:[%s347] ss:$4 sm:$0x3]
        %v798 = vmul.f32 %v797, %v388
        %s799 = sld [smem:[#allocation7 + $0x9]]
        %v800 = vstv %s799
        %v801 = vmul.f32 %v800, %v798
        %v802 = vadd.f32 %v766, %v801
        %s803 = sld [smem:[#allocation7 + $0x2d]]
        %v804 = vstv %s803
        %v805 = vmul.f32 %v804, %v798
        %v806 = vadd.f32 %v776, %v805
        %s807 = sld [smem:[#allocation7 + $0x51]]
        %v808 = vstv %s807
        %v809 = vmul.f32 %v808, %v798
        %v810 = vadd.f32 %v786, %v809
        %s811 = sld [smem:[#allocation7 + $0x75]]
        %v812 = vstv %s811
        %v813 = vmul.f32 %v812, %v798
        %v814 = vadd.f32 %v796, %v813
        %v815 = vld [vmem:[%s347] ss:$4 sm:$0x7]
        %v816 = vmul.f32 %v815, %v414
        %s817 = sld [smem:[#allocation7 + $0xa]]
        %v818 = vstv %s817
        %v819 = vmul.f32 %v818, %v816
        %821 = vrot.lane.b32.xlu0 %v819, 127
        %v822 = vpop.permute.xlu0 %821
        %v823 = vrot.slane %v822, 1
        %v824 = vsel %vm424, %v822, %v823
        %v826 = vadd.f32 %v802, %v824
        %s827 = sld [smem:[#allocation7 + $0x2e]]
        %v828 = vstv %s827
        %v829 = vmul.f32 %v828, %v816
        %831 = vrot.lane.b32.xlu0 %v829, 127
        %v832 = vpop.permute.xlu0 %831
        %v833 = vrot.slane %v832, 1
        %v834 = vsel %vm424, %v832, %v833
        %v836 = vadd.f32 %v806, %v834
        %s837 = sld [smem:[#allocation7 + $0x52]]
        %v838 = vstv %s837
        %v839 = vmul.f32 %v838, %v816
        %841 = vrot.lane.b32.xlu0 %v839, 127
        %v842 = vpop.permute.xlu0 %841
        %v843 = vrot.slane %v842, 1
        %v844 = vsel %vm424, %v842, %v843
        %v846 = vadd.f32 %v810, %v844
        %s847 = sld [smem:[#allocation7 + $0x76]]
        %v848 = vstv %s847
        %v849 = vmul.f32 %v848, %v816
        %851 = vrot.lane.b32.xlu0 %v849, 127
        %v852 = vpop.permute.xlu0 %851
        %v853 = vrot.slane %v852, 1
        %v854 = vsel %vm424, %v852, %v853
        %v856 = vadd.f32 %v814, %v854
        %v857 = vmul.f32 %v815, %v465
        %s858 = sld [smem:[#allocation7 + $0xb]]
        %v859 = vstv %s858
        %v860 = vmul.f32 %v859, %v857
        %862 = vrot.lane.b32.xlu0 %v860, 126
        %v863 = vpop.permute.xlu0 %862
        %v864 = vrot.slane %v863, 1
        %v865 = vsel %vm475, %v863, %v864
        %v867 = vadd.f32 %v826, %v865
        %s868 = sld [smem:[#allocation7 + $0x2f]]
        %v869 = vstv %s868
        %v870 = vmul.f32 %v869, %v857
        %872 = vrot.lane.b32.xlu0 %v870, 126
        %v873 = vpop.permute.xlu0 %872
        %v874 = vrot.slane %v873, 1
        %v875 = vsel %vm475, %v873, %v874
        %v877 = vadd.f32 %v836, %v875
        %s878 = sld [smem:[#allocation7 + $0x53]]
        %v879 = vstv %s878
        %v880 = vmul.f32 %v879, %v857
        %882 = vrot.lane.b32.xlu0 %v880, 126
        %v883 = vpop.permute.xlu0 %882
        %v884 = vrot.slane %v883, 1
        %v885 = vsel %vm475, %v883, %v884
        %v887 = vadd.f32 %v846, %v885
        %s888 = sld [smem:[#allocation7 + $0x77]]
        %v889 = vstv %s888
        %v890 = vmul.f32 %v889, %v857
        %892 = vrot.lane.b32.xlu0 %v890, 126
        %v893 = vpop.permute.xlu0 %892
        %v894 = vrot.slane %v893, 1
        %v895 = vsel %vm475, %v893, %v894
        %v897 = vadd.f32 %v856, %v895
        %v898 = vmul.f32 %v815, %v514
        %s899 = sld [smem:[#allocation7 + $0xc]]
        %v900 = vstv %s899
        %v901 = vmul.f32 %v900, %v898
        %903 = vrot.lane.b32.xlu0 %v901, 112
        %v904 = vpop.permute.xlu0 %903
        %v905 = vrot.slane %v904, 1
        %v906 = vsel %vm524, %v904, %v905
        %v908 = vadd.f32 %v867, %v906
        %s909 = sld [smem:[#allocation7 + $0x30]]
        %v910 = vstv %s909
        %v911 = vmul.f32 %v910, %v898
        %913 = vrot.lane.b32.xlu0 %v911, 112
        %v914 = vpop.permute.xlu0 %913
        %v915 = vrot.slane %v914, 1
        %v916 = vsel %vm524, %v914, %v915
        %v918 = vadd.f32 %v877, %v916
        %s919 = sld [smem:[#allocation7 + $0x54]]
        %v920 = vstv %s919
        %v921 = vmul.f32 %v920, %v898
        %923 = vrot.lane.b32.xlu0 %v921, 112
        %v924 = vpop.permute.xlu0 %923
        %v925 = vrot.slane %v924, 1
        %v926 = vsel %vm524, %v924, %v925
        %v928 = vadd.f32 %v887, %v926
        %s929 = sld [smem:[#allocation7 + $0x78]]
        %v930 = vstv %s929
        %v931 = vmul.f32 %v930, %v898
        %933 = vrot.lane.b32.xlu0 %v931, 112
        %v934 = vpop.permute.xlu0 %933
        %v935 = vrot.slane %v934, 1
        %v936 = vsel %vm524, %v934, %v935
        %v938 = vadd.f32 %v897, %v936
        %v939 = vmul.f32 %v815, %v561
        %s940 = sld [smem:[#allocation7 + $0xd]]
        %v941 = vstv %s940
        %v942 = vmul.f32 %v941, %v939
        %944 = vrot.lane.b32.xlu0 %v942, 111
        %v945 = vpop.permute.xlu0 %944
        %v946 = vrot.slane %v945, 1
        %v947 = vsel %vm571, %v945, %v946
        %v949 = vadd.f32 %v908, %v947
        %s950 = sld [smem:[#allocation7 + $0x31]]
        %v951 = vstv %s950
        %v952 = vmul.f32 %v951, %v939
        %954 = vrot.lane.b32.xlu0 %v952, 111
        %v955 = vpop.permute.xlu0 %954
        %v956 = vrot.slane %v955, 1
        %v957 = vsel %vm571, %v955, %v956
        %v959 = vadd.f32 %v918, %v957
        %s960 = sld [smem:[#allocation7 + $0x55]]
        %v961 = vstv %s960
        %v962 = vmul.f32 %v961, %v939
        %964 = vrot.lane.b32.xlu0 %v962, 111
        %v965 = vpop.permute.xlu0 %964
        %v966 = vrot.slane %v965, 1
        %v967 = vsel %vm571, %v965, %v966
        %v969 = vadd.f32 %v928, %v967
        %s970 = sld [smem:[#allocation7 + $0x79]]
        %v971 = vstv %s970
        %v972 = vmul.f32 %v971, %v939
        %974 = vrot.lane.b32.xlu0 %v972, 111
        %v975 = vpop.permute.xlu0 %974
        %v976 = vrot.slane %v975, 1
        %v977 = vsel %vm571, %v975, %v976
        %v979 = vadd.f32 %v938, %v977
        %v980 = vmul.f32 %v815, %v609
        %s981 = sld [smem:[#allocation7 + $0xe]]
        %v982 = vstv %s981
        %v983 = vmul.f32 %v982, %v980
        %985 = vrot.lane.b32.xlu0 %v983, 110
        %v986 = vpop.permute.xlu0 %985
        %v987 = vrot.slane %v986, 1
        %v988 = vsel %vm619, %v986, %v987
        %v990 = vadd.f32 %v949, %v988
        %s991 = sld [smem:[#allocation7 + $0x32]]
        %v992 = vstv %s991
        %v993 = vmul.f32 %v992, %v980
        %995 = vrot.lane.b32.xlu0 %v993, 110
        %v996 = vpop.permute.xlu0 %995
        %v997 = vrot.slane %v996, 1
        %v998 = vsel %vm619, %v996, %v997
        %v1000 = vadd.f32 %v959, %v998
        %s1001 = sld [smem:[#allocation7 + $0x56]]
        %v1002 = vstv %s1001
        %v1003 = vmul.f32 %v1002, %v980
        %1005 = vrot.lane.b32.xlu0 %v1003, 110
        %v1006 = vpop.permute.xlu0 %1005
        %v1007 = vrot.slane %v1006, 1
        %v1008 = vsel %vm619, %v1006, %v1007
        %v1010 = vadd.f32 %v969, %v1008
        %s1011 = sld [smem:[#allocation7 + $0x7a]]
        %v1012 = vstv %s1011
        %v1013 = vmul.f32 %v1012, %v980
        %1015 = vrot.lane.b32.xlu0 %v1013, 110
        %v1016 = vpop.permute.xlu0 %1015
        %v1017 = vrot.slane %v1016, 1
        %v1018 = vsel %vm619, %v1016, %v1017
        %v1020 = vadd.f32 %v979, %v1018
        %v1021 = vmul.f32 %v815, %v657
        %s1022 = sld [smem:[#allocation7 + $0xf]]
        %v1023 = vstv %s1022
        %v1024 = vmul.f32 %v1023, %v1021
        %1026 = vrot.lane.b32.xlu0 %v1024, 96
        %v1027 = vpop.permute.xlu0 %1026
        %v1028 = vrot.slane %v1027, 1
        %v1029 = vsel %vm667, %v1027, %v1028
        %v1031 = vadd.f32 %v990, %v1029
        %s1032 = sld [smem:[#allocation7 + $0x33]]
        %v1033 = vstv %s1032
        %v1034 = vmul.f32 %v1033, %v1021
        %1036 = vrot.lane.b32.xlu0 %v1034, 96
        %v1037 = vpop.permute.xlu0 %1036
        %v1038 = vrot.slane %v1037, 1
        %v1039 = vsel %vm667, %v1037, %v1038
        %v1041 = vadd.f32 %v1000, %v1039
        %s1042 = sld [smem:[#allocation7 + $0x57]]
        %v1043 = vstv %s1042
        %v1044 = vmul.f32 %v1043, %v1021
        %1046 = vrot.lane.b32.xlu0 %v1044, 96
        %v1047 = vpop.permute.xlu0 %1046
        %v1048 = vrot.slane %v1047, 1
        %v1049 = vsel %vm667, %v1047, %v1048
        %v1051 = vadd.f32 %v1010, %v1049
        %s1052 = sld [smem:[#allocation7 + $0x7b]]
        %v1053 = vstv %s1052
        %v1054 = vmul.f32 %v1053, %v1021
        %1056 = vrot.lane.b32.xlu0 %v1054, 96
        %v1057 = vpop.permute.xlu0 %1056
        %v1058 = vrot.slane %v1057, 1
        %v1059 = vsel %vm667, %v1057, %v1058
        %v1061 = vadd.f32 %v1020, %v1059
        %v1062 = vmul.f32 %v815, %v705
        %s1063 = sld [smem:[#allocation7 + $0x10]]
        %v1064 = vstv %s1063
        %v1065 = vmul.f32 %v1064, %v1062
        %1067 = vrot.lane.b32.xlu0 %v1065, 95
        %v1068 = vpop.permute.xlu0 %1067
        %v1069 = vrot.slane %v1068, 1
        %v1070 = vsel %vm715, %v1068, %v1069
        %v1072 = vadd.f32 %v1031, %v1070
        %s1073 = sld [smem:[#allocation7 + $0x34]]
        %v1074 = vstv %s1073
        %v1075 = vmul.f32 %v1074, %v1062
        %1077 = vrot.lane.b32.xlu0 %v1075, 95
        %v1078 = vpop.permute.xlu0 %1077
        %v1079 = vrot.slane %v1078, 1
        %v1080 = vsel %vm715, %v1078, %v1079
        %v1082 = vadd.f32 %v1041, %v1080
        %s1083 = sld [smem:[#allocation7 + $0x58]]
        %v1084 = vstv %s1083
        %v1085 = vmul.f32 %v1084, %v1062
        %1087 = vrot.lane.b32.xlu0 %v1085, 95
        %v1088 = vpop.permute.xlu0 %1087
        %v1089 = vrot.slane %v1088, 1
        %v1090 = vsel %vm715, %v1088, %v1089
        %v1092 = vadd.f32 %v1051, %v1090
        %s1093 = sld [smem:[#allocation7 + $0x7c]]
        %v1094 = vstv %s1093
        %v1095 = vmul.f32 %v1094, %v1062
        %1097 = vrot.lane.b32.xlu0 %v1095, 95
        %v1098 = vpop.permute.xlu0 %1097
        %v1099 = vrot.slane %v1098, 1
        %v1100 = vsel %vm715, %v1098, %v1099
        %v1102 = vadd.f32 %v1061, %v1100
        %v1103 = vmul.f32 %v815, %v753
        %s1104 = sld [smem:[#allocation7 + $0x11]]
        %v1105 = vstv %s1104
        %v1106 = vmul.f32 %v1105, %v1103
        %1108 = vrot.lane.b32.xlu0 %v1106, 94
        %v1109 = vpop.permute.xlu0 %1108
        %v1110 = vrot.slane %v1109, 1
        %v1111 = vsel %vm763, %v1109, %v1110
        %v1113 = vadd.f32 %v1072, %v1111
        %s1114 = sld [smem:[#allocation7 + $0x35]]
        %v1115 = vstv %s1114
        %v1116 = vmul.f32 %v1115, %v1103
        %1118 = vrot.lane.b32.xlu0 %v1116, 94
        %v1119 = vpop.permute.xlu0 %1118
        %v1120 = vrot.slane %v1119, 1
        %v1121 = vsel %vm763, %v1119, %v1120
        %v1123 = vadd.f32 %v1082, %v1121
        %s1124 = sld [smem:[#allocation7 + $0x59]]
        %v1125 = vstv %s1124
        %v1126 = vmul.f32 %v1125, %v1103
        %1128 = vrot.lane.b32.xlu0 %v1126, 94
        %v1129 = vpop.permute.xlu0 %1128
        %v1130 = vrot.slane %v1129, 1
        %v1131 = vsel %vm763, %v1129, %v1130
        %v1133 = vadd.f32 %v1092, %v1131
        %s1134 = sld [smem:[#allocation7 + $0x7d]]
        %v1135 = vstv %s1134
        %v1136 = vmul.f32 %v1135, %v1103
        %1138 = vrot.lane.b32.xlu0 %v1136, 94
        %v1139 = vpop.permute.xlu0 %1138
        %v1140 = vrot.slane %v1139, 1
        %v1141 = vsel %vm763, %v1139, %v1140
        %v1143 = vadd.f32 %v1102, %v1141
        %v1144 = vld [vmem:[%s366] ss:$4 sm:$0x3]
        %v1145 = vmul.f32 %v1144, %v388
        %s1146 = sld [smem:[#allocation7 + $0x12]]
        %v1147 = vstv %s1146
        %v1148 = vmul.f32 %v1147, %v1145
        %v1149 = vadd.f32 %v1113, %v1148
        %s1150 = sld [smem:[#allocation7 + $0x36]]
        %v1151 = vstv %s1150
        %v1152 = vmul.f32 %v1151, %v1145
        %v1153 = vadd.f32 %v1123, %v1152
        %s1154 = sld [smem:[#allocation7 + $0x5a]]
        %v1155 = vstv %s1154
        %v1156 = vmul.f32 %v1155, %v1145
        %v1157 = vadd.f32 %v1133, %v1156
        %s1158 = sld [smem:[#allocation7 + $0x7e]]
        %v1159 = vstv %s1158
        %v1160 = vmul.f32 %v1159, %v1145
        %v1161 = vadd.f32 %v1143, %v1160
        %v1162 = vld [vmem:[%s366] ss:$4 sm:$0x7]
        %v1163 = vmul.f32 %v1162, %v414
        %s1164 = sld [smem:[#allocation7 + $0x13]]
        %v1165 = vstv %s1164
        %v1166 = vmul.f32 %v1165, %v1163
        %1168 = vrot.lane.b32.xlu0 %v1166, 127
        %v1169 = vpop.permute.xlu0 %1168
        %v1170 = vrot.slane %v1169, 1
        %v1171 = vsel %vm424, %v1169, %v1170
        %v1173 = vadd.f32 %v1149, %v1171
        %s1174 = sld [smem:[#allocation7 + $0x37]]
        %v1175 = vstv %s1174
        %v1176 = vmul.f32 %v1175, %v1163
        %1178 = vrot.lane.b32.xlu0 %v1176, 127
        %v1179 = vpop.permute.xlu0 %1178
        %v1180 = vrot.slane %v1179, 1
        %v1181 = vsel %vm424, %v1179, %v1180
        %v1183 = vadd.f32 %v1153, %v1181
        %s1184 = sld [smem:[#allocation7 + $0x5b]]
        %v1185 = vstv %s1184
        %v1186 = vmul.f32 %v1185, %v1163
        %1188 = vrot.lane.b32.xlu0 %v1186, 127
        %v1189 = vpop.permute.xlu0 %1188
        %v1190 = vrot.slane %v1189, 1
        %v1191 = vsel %vm424, %v1189, %v1190
        %v1193 = vadd.f32 %v1157, %v1191
        %s1194 = sld [smem:[#allocation7 + $0x7f]]
        %v1195 = vstv %s1194
        %v1196 = vmul.f32 %v1195, %v1163
        %1198 = vrot.lane.b32.xlu0 %v1196, 127
        %v1199 = vpop.permute.xlu0 %1198
        %v1200 = vrot.slane %v1199, 1
        %v1201 = vsel %vm424, %v1199, %v1200
        %v1203 = vadd.f32 %v1161, %v1201
        %v1204 = vmul.f32 %v1162, %v465
        %s1205 = sld [smem:[#allocation7 + $0x14]]
        %v1206 = vstv %s1205
        %v1207 = vmul.f32 %v1206, %v1204
        %1209 = vrot.lane.b32.xlu0 %v1207, 126
        %v1210 = vpop.permute.xlu0 %1209
        %v1211 = vrot.slane %v1210, 1
        %v1212 = vsel %vm475, %v1210, %v1211
        %v1214 = vadd.f32 %v1173, %v1212
        %s1215 = sld [smem:[#allocation7 + $0x38]]
        %v1216 = vstv %s1215
        %v1217 = vmul.f32 %v1216, %v1204
        %1219 = vrot.lane.b32.xlu0 %v1217, 126
        %v1220 = vpop.permute.xlu0 %1219
        %v1221 = vrot.slane %v1220, 1
        %v1222 = vsel %vm475, %v1220, %v1221
        %v1224 = vadd.f32 %v1183, %v1222
        %s1225 = sld [smem:[#allocation7 + $0x5c]]
        %v1226 = vstv %s1225
        %v1227 = vmul.f32 %v1226, %v1204
        %1229 = vrot.lane.b32.xlu0 %v1227, 126
        %v1230 = vpop.permute.xlu0 %1229
        %v1231 = vrot.slane %v1230, 1
        %v1232 = vsel %vm475, %v1230, %v1231
        %v1234 = vadd.f32 %v1193, %v1232
        %s1235 = sld [smem:[#allocation7 + $0x80]]
        %v1236 = vstv %s1235
        %v1237 = vmul.f32 %v1236, %v1204
        %1239 = vrot.lane.b32.xlu0 %v1237, 126
        %v1240 = vpop.permute.xlu0 %1239
        %v1241 = vrot.slane %v1240, 1
        %v1242 = vsel %vm475, %v1240, %v1241
        %v1244 = vadd.f32 %v1203, %v1242
        %v1245 = vmul.f32 %v1162, %v514
        %s1246 = sld [smem:[#allocation7 + $0x15]]
        %v1247 = vstv %s1246
        %v1248 = vmul.f32 %v1247, %v1245
        %1250 = vrot.lane.b32.xlu0 %v1248, 112
        %v1251 = vpop.permute.xlu0 %1250
        %v1252 = vrot.slane %v1251, 1
        %v1253 = vsel %vm524, %v1251, %v1252
        %v1255 = vadd.f32 %v1214, %v1253
        %s1256 = sld [smem:[#allocation7 + $0x39]]
        %v1257 = vstv %s1256
        %v1258 = vmul.f32 %v1257, %v1245
        %1260 = vrot.lane.b32.xlu0 %v1258, 112
        %v1261 = vpop.permute.xlu0 %1260
        %v1262 = vrot.slane %v1261, 1
        %v1263 = vsel %vm524, %v1261, %v1262
        %v1265 = vadd.f32 %v1224, %v1263
        %s1266 = sld [smem:[#allocation7 + $0x5d]]
        %v1267 = vstv %s1266
        %v1268 = vmul.f32 %v1267, %v1245
        %1270 = vrot.lane.b32.xlu0 %v1268, 112
        %v1271 = vpop.permute.xlu0 %1270
        %v1272 = vrot.slane %v1271, 1
        %v1273 = vsel %vm524, %v1271, %v1272
        %v1275 = vadd.f32 %v1234, %v1273
        %s1276 = sld [smem:[#allocation7 + $0x81]]
        %v1277 = vstv %s1276
        %v1278 = vmul.f32 %v1277, %v1245
        %1280 = vrot.lane.b32.xlu0 %v1278, 112
        %v1281 = vpop.permute.xlu0 %1280
        %v1282 = vrot.slane %v1281, 1
        %v1283 = vsel %vm524, %v1281, %v1282
        %v1285 = vadd.f32 %v1244, %v1283
        %v1286 = vmul.f32 %v1162, %v561
        %s1287 = sld [smem:[#allocation7 + $0x16]]
        %v1288 = vstv %s1287
        %v1289 = vmul.f32 %v1288, %v1286
        %1291 = vrot.lane.b32.xlu0 %v1289, 111
        %v1292 = vpop.permute.xlu0 %1291
        %v1293 = vrot.slane %v1292, 1
        %v1294 = vsel %vm571, %v1292, %v1293
        %v1296 = vadd.f32 %v1255, %v1294
        %s1297 = sld [smem:[#allocation7 + $0x3a]]
        %v1298 = vstv %s1297
        %v1299 = vmul.f32 %v1298, %v1286
        %1301 = vrot.lane.b32.xlu0 %v1299, 111
        %v1302 = vpop.permute.xlu0 %1301
        %v1303 = vrot.slane %v1302, 1
        %v1304 = vsel %vm571, %v1302, %v1303
        %v1306 = vadd.f32 %v1265, %v1304
        %s1307 = sld [smem:[#allocation7 + $0x5e]]
        %v1308 = vstv %s1307
        %v1309 = vmul.f32 %v1308, %v1286
        %1311 = vrot.lane.b32.xlu0 %v1309, 111
        %v1312 = vpop.permute.xlu0 %1311
        %v1313 = vrot.slane %v1312, 1
        %v1314 = vsel %vm571, %v1312, %v1313
        %v1316 = vadd.f32 %v1275, %v1314
        %s1317 = sld [smem:[#allocation7 + $0x82]]
        %v1318 = vstv %s1317
        %v1319 = vmul.f32 %v1318, %v1286
        %1321 = vrot.lane.b32.xlu0 %v1319, 111
        %v1322 = vpop.permute.xlu0 %1321
        %v1323 = vrot.slane %v1322, 1
        %v1324 = vsel %vm571, %v1322, %v1323
        %v1326 = vadd.f32 %v1285, %v1324
        %v1327 = vmul.f32 %v1162, %v609
        %s1328 = sld [smem:[#allocation7 + $0x17]]
        %v1329 = vstv %s1328
        %v1330 = vmul.f32 %v1329, %v1327
        %1332 = vrot.lane.b32.xlu0 %v1330, 110
        %v1333 = vpop.permute.xlu0 %1332
        %v1334 = vrot.slane %v1333, 1
        %v1335 = vsel %vm619, %v1333, %v1334
        %v1337 = vadd.f32 %v1296, %v1335
        %s1338 = sld [smem:[#allocation7 + $0x3b]]
        %v1339 = vstv %s1338
        %v1340 = vmul.f32 %v1339, %v1327
        %1342 = vrot.lane.b32.xlu0 %v1340, 110
        %v1343 = vpop.permute.xlu0 %1342
        %v1344 = vrot.slane %v1343, 1
        %v1345 = vsel %vm619, %v1343, %v1344
        %v1347 = vadd.f32 %v1306, %v1345
        %s1348 = sld [smem:[#allocation7 + $0x5f]]
        %v1349 = vstv %s1348
        %v1350 = vmul.f32 %v1349, %v1327
        %1352 = vrot.lane.b32.xlu0 %v1350, 110
        %v1353 = vpop.permute.xlu0 %1352
        %v1354 = vrot.slane %v1353, 1
        %v1355 = vsel %vm619, %v1353, %v1354
        %v1357 = vadd.f32 %v1316, %v1355
        %s1358 = sld [smem:[#allocation7 + $0x83]]
        %v1359 = vstv %s1358
        %v1360 = vmul.f32 %v1359, %v1327
        %1362 = vrot.lane.b32.xlu0 %v1360, 110
        %v1363 = vpop.permute.xlu0 %1362
        %v1364 = vrot.slane %v1363, 1
        %v1365 = vsel %vm619, %v1363, %v1364
        %v1367 = vadd.f32 %v1326, %v1365
        %v1368 = vmul.f32 %v1162, %v657
        %s1369 = sld [smem:[#allocation7 + $0x18]]
        %v1370 = vstv %s1369
        %v1371 = vmul.f32 %v1370, %v1368
        %1373 = vrot.lane.b32.xlu0 %v1371, 96
        %v1374 = vpop.permute.xlu0 %1373
        %v1375 = vrot.slane %v1374, 1
        %v1376 = vsel %vm667, %v1374, %v1375
        %v1378 = vadd.f32 %v1337, %v1376
        %s1379 = sld [smem:[#allocation7 + $0x3c]]
        %v1380 = vstv %s1379
        %v1381 = vmul.f32 %v1380, %v1368
        %1383 = vrot.lane.b32.xlu0 %v1381, 96
        %v1384 = vpop.permute.xlu0 %1383
        %v1385 = vrot.slane %v1384, 1
        %v1386 = vsel %vm667, %v1384, %v1385
        %v1388 = vadd.f32 %v1347, %v1386
        %s1389 = sld [smem:[#allocation7 + $0x60]]
        %v1390 = vstv %s1389
        %v1391 = vmul.f32 %v1390, %v1368
        %1393 = vrot.lane.b32.xlu0 %v1391, 96
        %v1394 = vpop.permute.xlu0 %1393
        %v1395 = vrot.slane %v1394, 1
        %v1396 = vsel %vm667, %v1394, %v1395
        %v1398 = vadd.f32 %v1357, %v1396
        %s1399 = sld [smem:[#allocation7 + $0x84]]
        %v1400 = vstv %s1399
        %v1401 = vmul.f32 %v1400, %v1368
        %1403 = vrot.lane.b32.xlu0 %v1401, 96
        %v1404 = vpop.permute.xlu0 %1403
        %v1405 = vrot.slane %v1404, 1
        %v1406 = vsel %vm667, %v1404, %v1405
        %v1408 = vadd.f32 %v1367, %v1406
        %v1409 = vmul.f32 %v1162, %v705
        %s1410 = sld [smem:[#allocation7 + $0x19]]
        %v1411 = vstv %s1410
        %v1412 = vmul.f32 %v1411, %v1409
        %1414 = vrot.lane.b32.xlu0 %v1412, 95
        %v1415 = vpop.permute.xlu0 %1414
        %v1416 = vrot.slane %v1415, 1
        %v1417 = vsel %vm715, %v1415, %v1416
        %v1419 = vadd.f32 %v1378, %v1417
        %s1420 = sld [smem:[#allocation7 + $0x3d]]
        %v1421 = vstv %s1420
        %v1422 = vmul.f32 %v1421, %v1409
        %1424 = vrot.lane.b32.xlu0 %v1422, 95
        %v1425 = vpop.permute.xlu0 %1424
        %v1426 = vrot.slane %v1425, 1
        %v1427 = vsel %vm715, %v1425, %v1426
        %v1429 = vadd.f32 %v1388, %v1427
        %s1430 = sld [smem:[#allocation7 + $0x61]]
        %v1431 = vstv %s1430
        %v1432 = vmul.f32 %v1431, %v1409
        %1434 = vrot.lane.b32.xlu0 %v1432, 95
        %v1435 = vpop.permute.xlu0 %1434
        %v1436 = vrot.slane %v1435, 1
        %v1437 = vsel %vm715, %v1435, %v1436
        %v1439 = vadd.f32 %v1398, %v1437
        %s1440 = sld [smem:[#allocation7 + $0x85]]
        %v1441 = vstv %s1440
        %v1442 = vmul.f32 %v1441, %v1409
        %1444 = vrot.lane.b32.xlu0 %v1442, 95
        %v1445 = vpop.permute.xlu0 %1444
        %v1446 = vrot.slane %v1445, 1
        %v1447 = vsel %vm715, %v1445, %v1446
        %v1449 = vadd.f32 %v1408, %v1447
        %v1450 = vmul.f32 %v1162, %v753
        %s1451 = sld [smem:[#allocation7 + $0x1a]]
        %v1452 = vstv %s1451
        %v1453 = vmul.f32 %v1452, %v1450
        %1455 = vrot.lane.b32.xlu0 %v1453, 94
        %v1456 = vpop.permute.xlu0 %1455
        %v1457 = vrot.slane %v1456, 1
        %v1458 = vsel %vm763, %v1456, %v1457
        %v1460 = vadd.f32 %v1419, %v1458
        %s1461 = sld [smem:[#allocation7 + $0x3e]]
        %v1462 = vstv %s1461
        %v1463 = vmul.f32 %v1462, %v1450
        %1465 = vrot.lane.b32.xlu0 %v1463, 94
        %v1466 = vpop.permute.xlu0 %1465
        %v1467 = vrot.slane %v1466, 1
        %v1468 = vsel %vm763, %v1466, %v1467
        %v1470 = vadd.f32 %v1429, %v1468
        %s1471 = sld [smem:[#allocation7 + $0x62]]
        %v1472 = vstv %s1471
        %v1473 = vmul.f32 %v1472, %v1450
        %1475 = vrot.lane.b32.xlu0 %v1473, 94
        %v1476 = vpop.permute.xlu0 %1475
        %v1477 = vrot.slane %v1476, 1
        %v1478 = vsel %vm763, %v1476, %v1477
        %v1480 = vadd.f32 %v1439, %v1478
        %s1481 = sld [smem:[#allocation7 + $0x86]]
        %v1482 = vstv %s1481
        %v1483 = vmul.f32 %v1482, %v1450
        %1485 = vrot.lane.b32.xlu0 %v1483, 94
        %v1486 = vpop.permute.xlu0 %1485
        %v1487 = vrot.slane %v1486, 1
        %v1488 = vsel %vm763, %v1486, %v1487
        %v1490 = vadd.f32 %v1449, %v1488
        %v1491 = vld [vmem:[%s385] ss:$4 sm:$0x3]
        %v1492 = vmul.f32 %v1491, %v388
        %s1493 = sld [smem:[#allocation7 + $0x1b]]
        %v1494 = vstv %s1493
        %v1495 = vmul.f32 %v1494, %v1492
        %v1496 = vadd.f32 %v1460, %v1495
        %s1497 = sld [smem:[#allocation7 + $0x3f]]
        %v1498 = vstv %s1497
        %v1499 = vmul.f32 %v1498, %v1492
        %v1500 = vadd.f32 %v1470, %v1499
        %s1501 = sld [smem:[#allocation7 + $0x63]]
        %v1502 = vstv %s1501
        %v1503 = vmul.f32 %v1502, %v1492
        %v1504 = vadd.f32 %v1480, %v1503
        %s1505 = sld [smem:[#allocation7 + $0x87]]
        %v1506 = vstv %s1505
        %v1507 = vmul.f32 %v1506, %v1492
        %v1508 = vadd.f32 %v1490, %v1507
        %v1509 = vld [vmem:[%s385] ss:$4 sm:$0x7]
        %v1510 = vmul.f32 %v1509, %v414
        %s1511 = sld [smem:[#allocation7 + $0x1c]]
        %v1512 = vstv %s1511
        %v1513 = vmul.f32 %v1512, %v1510
        %1515 = vrot.lane.b32.xlu0 %v1513, 127
        %v1516 = vpop.permute.xlu0 %1515
        %v1517 = vrot.slane %v1516, 1
        %v1518 = vsel %vm424, %v1516, %v1517
        %v1520 = vadd.f32 %v1496, %v1518
        %s1521 = sld [smem:[#allocation7 + $0x40]]
        %v1522 = vstv %s1521
        %v1523 = vmul.f32 %v1522, %v1510
        %1525 = vrot.lane.b32.xlu0 %v1523, 127
        %v1526 = vpop.permute.xlu0 %1525
        %v1527 = vrot.slane %v1526, 1
        %v1528 = vsel %vm424, %v1526, %v1527
        %v1530 = vadd.f32 %v1500, %v1528
        %s1531 = sld [smem:[#allocation7 + $0x64]]
        %v1532 = vstv %s1531
        %v1533 = vmul.f32 %v1532, %v1510
        %1535 = vrot.lane.b32.xlu0 %v1533, 127
        %v1536 = vpop.permute.xlu0 %1535
        %v1537 = vrot.slane %v1536, 1
        %v1538 = vsel %vm424, %v1536, %v1537
        %v1540 = vadd.f32 %v1504, %v1538
        %s1541 = sld [smem:[#allocation7 + $0x88]]
        %v1542 = vstv %s1541
        %v1543 = vmul.f32 %v1542, %v1510
        %1545 = vrot.lane.b32.xlu0 %v1543, 127
        %v1546 = vpop.permute.xlu0 %1545
        %v1547 = vrot.slane %v1546, 1
        %v1548 = vsel %vm424, %v1546, %v1547
        %v1550 = vadd.f32 %v1508, %v1548
        %v1551 = vmul.f32 %v1509, %v465
        %s1552 = sld [smem:[#allocation7 + $0x1d]]
        %v1553 = vstv %s1552
        %v1554 = vmul.f32 %v1553, %v1551
        %1556 = vrot.lane.b32.xlu0 %v1554, 126
        %v1557 = vpop.permute.xlu0 %1556
        %v1558 = vrot.slane %v1557, 1
        %v1559 = vsel %vm475, %v1557, %v1558
        %v1561 = vadd.f32 %v1520, %v1559
        %s1562 = sld [smem:[#allocation7 + $0x41]]
        %v1563 = vstv %s1562
        %v1564 = vmul.f32 %v1563, %v1551
        %1566 = vrot.lane.b32.xlu0 %v1564, 126
        %v1567 = vpop.permute.xlu0 %1566
        %v1568 = vrot.slane %v1567, 1
        %v1569 = vsel %vm475, %v1567, %v1568
        %v1571 = vadd.f32 %v1530, %v1569
        %s1572 = sld [smem:[#allocation7 + $0x65]]
        %v1573 = vstv %s1572
        %v1574 = vmul.f32 %v1573, %v1551
        %1576 = vrot.lane.b32.xlu0 %v1574, 126
        %v1577 = vpop.permute.xlu0 %1576
        %v1578 = vrot.slane %v1577, 1
        %v1579 = vsel %vm475, %v1577, %v1578
        %v1581 = vadd.f32 %v1540, %v1579
        %s1582 = sld [smem:[#allocation7 + $0x89]]
        %v1583 = vstv %s1582
        %v1584 = vmul.f32 %v1583, %v1551
        %1586 = vrot.lane.b32.xlu0 %v1584, 126
        %v1587 = vpop.permute.xlu0 %1586
        %v1588 = vrot.slane %v1587, 1
        %v1589 = vsel %vm475, %v1587, %v1588
        %v1591 = vadd.f32 %v1550, %v1589
        %v1592 = vmul.f32 %v1509, %v514
        %s1593 = sld [smem:[#allocation7 + $0x1e]]
        %v1594 = vstv %s1593
        %v1595 = vmul.f32 %v1594, %v1592
        %1597 = vrot.lane.b32.xlu0 %v1595, 112
        %v1598 = vpop.permute.xlu0 %1597
        %v1599 = vrot.slane %v1598, 1
        %v1600 = vsel %vm524, %v1598, %v1599
        %v1602 = vadd.f32 %v1561, %v1600
        %s1603 = sld [smem:[#allocation7 + $0x42]]
        %v1604 = vstv %s1603
        %v1605 = vmul.f32 %v1604, %v1592
        %1607 = vrot.lane.b32.xlu0 %v1605, 112
        %v1608 = vpop.permute.xlu0 %1607
        %v1609 = vrot.slane %v1608, 1
        %v1610 = vsel %vm524, %v1608, %v1609
        %v1612 = vadd.f32 %v1571, %v1610
        %s1613 = sld [smem:[#allocation7 + $0x66]]
        %v1614 = vstv %s1613
        %v1615 = vmul.f32 %v1614, %v1592
        %1617 = vrot.lane.b32.xlu0 %v1615, 112
        %v1618 = vpop.permute.xlu0 %1617
        %v1619 = vrot.slane %v1618, 1
        %v1620 = vsel %vm524, %v1618, %v1619
        %v1622 = vadd.f32 %v1581, %v1620
        %s1623 = sld [smem:[#allocation7 + $0x8a]]
        %v1624 = vstv %s1623
        %v1625 = vmul.f32 %v1624, %v1592
        %1627 = vrot.lane.b32.xlu0 %v1625, 112
        %v1628 = vpop.permute.xlu0 %1627
        %v1629 = vrot.slane %v1628, 1
        %v1630 = vsel %vm524, %v1628, %v1629
        %v1632 = vadd.f32 %v1591, %v1630
        %v1633 = vmul.f32 %v1509, %v561
        %s1634 = sld [smem:[#allocation7 + $0x1f]]
        %v1635 = vstv %s1634
        %v1636 = vmul.f32 %v1635, %v1633
        %1638 = vrot.lane.b32.xlu0 %v1636, 111
        %v1639 = vpop.permute.xlu0 %1638
        %v1640 = vrot.slane %v1639, 1
        %v1641 = vsel %vm571, %v1639, %v1640
        %v1643 = vadd.f32 %v1602, %v1641
        %s1644 = sld [smem:[#allocation7 + $0x43]]
        %v1645 = vstv %s1644
        %v1646 = vmul.f32 %v1645, %v1633
        %1648 = vrot.lane.b32.xlu0 %v1646, 111
        %v1649 = vpop.permute.xlu0 %1648
        %v1650 = vrot.slane %v1649, 1
        %v1651 = vsel %vm571, %v1649, %v1650
        %v1653 = vadd.f32 %v1612, %v1651
        %s1654 = sld [smem:[#allocation7 + $0x67]]
        %v1655 = vstv %s1654
        %v1656 = vmul.f32 %v1655, %v1633
        %1658 = vrot.lane.b32.xlu0 %v1656, 111
        %v1659 = vpop.permute.xlu0 %1658
        %v1660 = vrot.slane %v1659, 1
        %v1661 = vsel %vm571, %v1659, %v1660
        %v1663 = vadd.f32 %v1622, %v1661
        %s1664 = sld [smem:[#allocation7 + $0x8b]]
        %v1665 = vstv %s1664
        %v1666 = vmul.f32 %v1665, %v1633
        %1668 = vrot.lane.b32.xlu0 %v1666, 111
        %v1669 = vpop.permute.xlu0 %1668
        %v1670 = vrot.slane %v1669, 1
        %v1671 = vsel %vm571, %v1669, %v1670
        %v1673 = vadd.f32 %v1632, %v1671
        %v1674 = vmul.f32 %v1509, %v609
        %s1675 = sld [smem:[#allocation7 + $0x20]]
        %v1676 = vstv %s1675
        %v1677 = vmul.f32 %v1676, %v1674
        %1679 = vrot.lane.b32.xlu0 %v1677, 110
        %v1680 = vpop.permute.xlu0 %1679
        %v1681 = vrot.slane %v1680, 1
        %v1682 = vsel %vm619, %v1680, %v1681
        %v1684 = vadd.f32 %v1643, %v1682
        %s1685 = sld [smem:[#allocation7 + $0x44]]
        %v1686 = vstv %s1685
        %v1687 = vmul.f32 %v1686, %v1674
        %1689 = vrot.lane.b32.xlu0 %v1687, 110
        %v1690 = vpop.permute.xlu0 %1689
        %v1691 = vrot.slane %v1690, 1
        %v1692 = vsel %vm619, %v1690, %v1691
        %v1694 = vadd.f32 %v1653, %v1692
        %s1695 = sld [smem:[#allocation7 + $0x68]]
        %v1696 = vstv %s1695
        %v1697 = vmul.f32 %v1696, %v1674
        %1699 = vrot.lane.b32.xlu0 %v1697, 110
        %v1700 = vpop.permute.xlu0 %1699
        %v1701 = vrot.slane %v1700, 1
        %v1702 = vsel %vm619, %v1700, %v1701
        %v1704 = vadd.f32 %v1663, %v1702
        %s1705 = sld [smem:[#allocation7 + $0x8c]]
        %v1706 = vstv %s1705
        %v1707 = vmul.f32 %v1706, %v1674
        %1709 = vrot.lane.b32.xlu0 %v1707, 110
        %v1710 = vpop.permute.xlu0 %1709
        %v1711 = vrot.slane %v1710, 1
        %v1712 = vsel %vm619, %v1710, %v1711
        %v1714 = vadd.f32 %v1673, %v1712
        %v1715 = vmul.f32 %v1509, %v657
        %s1716 = sld [smem:[#allocation7 + $0x21]]
        %v1717 = vstv %s1716
        %v1718 = vmul.f32 %v1717, %v1715
        %1720 = vrot.lane.b32.xlu0 %v1718, 96
        %v1721 = vpop.permute.xlu0 %1720
        %v1722 = vrot.slane %v1721, 1
        %v1723 = vsel %vm667, %v1721, %v1722
        %v1725 = vadd.f32 %v1684, %v1723
        %s1726 = sld [smem:[#allocation7 + $0x45]]
        %v1727 = vstv %s1726
        %v1728 = vmul.f32 %v1727, %v1715
        %1730 = vrot.lane.b32.xlu0 %v1728, 96
        %v1731 = vpop.permute.xlu0 %1730
        %v1732 = vrot.slane %v1731, 1
        %v1733 = vsel %vm667, %v1731, %v1732
        %v1735 = vadd.f32 %v1694, %v1733
        %s1736 = sld [smem:[#allocation7 + $0x69]]
        %v1737 = vstv %s1736
        %v1738 = vmul.f32 %v1737, %v1715
        %1740 = vrot.lane.b32.xlu0 %v1738, 96
        %v1741 = vpop.permute.xlu0 %1740
        %v1742 = vrot.slane %v1741, 1
        %v1743 = vsel %vm667, %v1741, %v1742
        %v1745 = vadd.f32 %v1704, %v1743
        %s1746 = sld [smem:[#allocation7 + $0x8d]]
        %v1747 = vstv %s1746
        %v1748 = vmul.f32 %v1747, %v1715
        %1750 = vrot.lane.b32.xlu0 %v1748, 96
        %v1751 = vpop.permute.xlu0 %1750
        %v1752 = vrot.slane %v1751, 1
        %v1753 = vsel %vm667, %v1751, %v1752
        %v1755 = vadd.f32 %v1714, %v1753
        %v1756 = vmul.f32 %v1509, %v705
        %s1757 = sld [smem:[#allocation7 + $0x22]]
        %v1758 = vstv %s1757
        %v1759 = vmul.f32 %v1758, %v1756
        %1761 = vrot.lane.b32.xlu0 %v1759, 95
        %v1762 = vpop.permute.xlu0 %1761
        %v1763 = vrot.slane %v1762, 1
        %v1764 = vsel %vm715, %v1762, %v1763
        %v1766 = vadd.f32 %v1725, %v1764
        %s1767 = sld [smem:[#allocation7 + $0x46]]
        %v1768 = vstv %s1767
        %v1769 = vmul.f32 %v1768, %v1756
        %1771 = vrot.lane.b32.xlu0 %v1769, 95
        %v1772 = vpop.permute.xlu0 %1771
        %v1773 = vrot.slane %v1772, 1
        %v1774 = vsel %vm715, %v1772, %v1773
        %v1776 = vadd.f32 %v1735, %v1774
        %s1777 = sld [smem:[#allocation7 + $0x6a]]
        %v1778 = vstv %s1777
        %v1779 = vmul.f32 %v1778, %v1756
        %1781 = vrot.lane.b32.xlu0 %v1779, 95
        %v1782 = vpop.permute.xlu0 %1781
        %v1783 = vrot.slane %v1782, 1
        %v1784 = vsel %vm715, %v1782, %v1783
        %v1786 = vadd.f32 %v1745, %v1784
        %s1787 = sld [smem:[#allocation7 + $0x8e]]
        %v1788 = vstv %s1787
        %v1789 = vmul.f32 %v1788, %v1756
        %1791 = vrot.lane.b32.xlu0 %v1789, 95
        %v1792 = vpop.permute.xlu0 %1791
        %v1793 = vrot.slane %v1792, 1
        %v1794 = vsel %vm715, %v1792, %v1793
        %v1796 = vadd.f32 %v1755, %v1794
        %v1797 = vmul.f32 %v1509, %v753
        %s1798 = sld [smem:[#allocation7 + $0x23]]
        %v1799 = vstv %s1798
        %v1800 = vmul.f32 %v1799, %v1797
        %1802 = vrot.lane.b32.xlu0 %v1800, 94
        %v1803 = vpop.permute.xlu0 %1802
        %v1804 = vrot.slane %v1803, 1
        %v1805 = vsel %vm763, %v1803, %v1804
        %v1807 = vadd.f32 %v1766, %v1805
        %s1808 = sld [smem:[#allocation7 + $0x47]]
        %v1809 = vstv %s1808
        %v1810 = vmul.f32 %v1809, %v1797
        %1812 = vrot.lane.b32.xlu0 %v1810, 94
        %v1813 = vpop.permute.xlu0 %1812
        %v1814 = vrot.slane %v1813, 1
        %v1815 = vsel %vm763, %v1813, %v1814
        %v1817 = vadd.f32 %v1776, %v1815
        %s1818 = sld [smem:[#allocation7 + $0x6b]]
        %v1819 = vstv %s1818
        %v1820 = vmul.f32 %v1819, %v1797
        %1822 = vrot.lane.b32.xlu0 %v1820, 94
        %v1823 = vpop.permute.xlu0 %1822
        %v1824 = vrot.slane %v1823, 1
        %v1825 = vsel %vm763, %v1823, %v1824
        %v1827 = vadd.f32 %v1786, %v1825
        %s1828 = sld [smem:[#allocation7 + $0x8f]]
        %v1829 = vstv %s1828
        %v1830 = vmul.f32 %v1829, %v1797
        %1832 = vrot.lane.b32.xlu0 %v1830, 94
        %v1833 = vpop.permute.xlu0 %1832
        %v1834 = vrot.slane %v1833, 1
        %v1835 = vsel %vm763, %v1833, %v1834
        %v1837 = vadd.f32 %v1796, %v1835
        %s1838 = sld [smem:[#allocation8]]
        %v1839 = vstv %s1838
        %v1840 = vadd.f32 %v1807, %v1839
        %v1841 = vld [vmem:[%s298] ss:$4 sm:$0x3]
        %v1842 = vadd.f32 %v1840, %v1841
        %vm1843 = vcmp.ge.s32.totalorder %v325, 0
        %vm1844 = vcmp.lt.s32.totalorder %v325, 256
        %vm1845 = vmand %vm1843, %vm1844
        %1846 = vst.msk [vmem:[%s303] ss:$4 sm:$0x3] %vm1845, %v1842
        %s1847 = sld [smem:[#allocation8 + $0x1]]
        %v1848 = vstv %s1847
        %v1849 = vadd.f32 %v1817, %v1848
        %v1850 = vld [vmem:[%s330] ss:$4 sm:$0x3]
        %v1851 = vadd.f32 %v1849, %v1850
        %s1852 = scalar_lea.vmem %s303, 1
        %1853 = vst.msk [vmem:[%s1852] ss:$4 sm:$0x3] %vm1845, %v1851
        %s1854 = sld [smem:[#allocation8 + $0x2]]
        %v1855 = vstv %s1854
        %v1856 = vadd.f32 %v1827, %v1855
        %v1857 = vld [vmem:[%s349] ss:$4 sm:$0x3]
        %v1858 = vadd.f32 %v1856, %v1857
        %s1859 = scalar_lea.vmem %s303, 2
        %1860 = vst.msk [vmem:[%s1859] ss:$4 sm:$0x3] %vm1845, %v1858
        %s1861 = sld [smem:[#allocation8 + $0x3]]
        %v1862 = vstv %s1861
        %v1863 = vadd.f32 %v1837, %v1862
        %v1864 = vld [vmem:[%s368] ss:$4 sm:$0x3]
        %v1865 = vadd.f32 %v1863, %v1864
        %s1866 = scalar_lea.vmem %s303, 3
        %1867 = vst.msk [vmem:[%s1866] ss:$4 sm:$0x3] %vm1845, %v1865
        %p1868 = scmp.lt.s32.totalorder %s20, 1
        %s1869 = scalar_select %p1868, %s20, 1
        %s1870 = smul.addr %s1869, 2
        %s1871 = smul.addr %s1870, 4
        %s1872 = scalar_lea.vmem %s6, %s1871
        // Predicated region
        $region61: #{residual_conv.3} parent=43 // pred_check
          %p1873 = pneg %p169
        $region62: #{residual_conv.3} parent=43 // pred_check_branch
          %1875 = sbr.rel (%p1873) target = $region64
        $region63: #{residual_conv.3} parent=43 // pred_region
          _
        $region64: #{residual_conv.3} parent=43 // pred_fallthru
          _
      $region44: #{residual_conv.3} parent=5 // pred_fallthru
        _
      %p1876 = scmp.le.s32.totalorder 2, %s15
      // Predicated region
      $region65: #{residual_conv.3} parent=5 // pred_check
        %p1877 = pneg %p1876
      $region66: #{residual_conv.3} parent=5 // pred_check_branch
        %1879 = sbr.rel (%p1877) target = $region68
      $region67: #{residual_conv.3} parent=5 // pred_region
        %s1880 = ssub.s32 %s15, 2
        // Predicated region
        $region69: #{residual_conv.3} parent=67 // pred_check
          %p1881 = pneg %p175
        $region70: #{residual_conv.3} parent=67 // pred_check_branch
          %1883 = sbr.rel (%p1881) target = $region72
        $region71: #{residual_conv.3} parent=67 // pred_region
          %p1884 = scmp.lt.s32.totalorder %s21, 1
          %s1885 = scalar_select %p1884, %s21, 1
          %s1886 = smul.addr %s1885, 2
          %s1887 = smul.addr %s1886, 4
          %s1888 = scalar_lea.vmem %s6, %s1887
        $region72: #{residual_conv.3} parent=67 // pred_fallthru
          _
      $region68: #{residual_conv.3} parent=5 // pred_fallthru
        _
    $region6: #{residual_conv.3} parent=1 // loop_footer
      %s19 = sadd.s32 1, %s15
    $region7: #{residual_conv.3} parent=1 // loop_footer_branch
      %14 = sbr.rel target = $region3
    $region8: #{residual_conv.3} parent=1 // loop_exit
      _
    %1889 = vsyncpa [#allocation4], 1
    %s1890 = scalar_lea.sflag [#allocation4], 1
    %1891 = vsyncpa %s1890, 1
    %1892 = vsyncpa [#allocation6], 1
    %1893 = vsyncpa [#allocation9], 1

</llo_original>
